<compile_context>
chip_gen: v5e
topology: v5e:2x2
jax: 0.10.0
libtpu: 0.0.40
codegen_flags: <defaults>
</compile_context>

<pallas_src>
import functools

import numpy as np

import jax
import jax.numpy as jnp
from jax.experimental import pallas as pl
from jax.experimental.pallas import tpu as pltpu

BN_EPS = 1e-5
CP = 128          # channel count padded to a full lane tile (real channels = 64)
HEADP = 128       # head output padded to a lane-dense width
POOL_ROWS = 8     # pooled-feature rows (row 0 real, rows 1..7 zero padding)


# ---------------------------------------------------------------------------
# Wrapper-side parameter folding (pure data shuffling, no hot-path math)
# ---------------------------------------------------------------------------
def _fold_bn(bn):
    scale = bn["gamma"] * jax.lax.rsqrt(bn["var"] + BN_EPS)
    bias = bn["beta"] - bn["mean"] * scale
    return scale, bias


def _prep_stem(w_kio, bn, kcp):
    """(49, Cin, 64) conv + BN -> (KCp, CP) bf16 weight and (1, CP) f32 bias."""
    scale, bias = _fold_bn(bn)
    w = w_kio * scale[None, None, :]
    k, cin, cout = w.shape
    w2d = w.reshape(k * cin, cout)
    wp = jnp.zeros((kcp, CP), jnp.float32).at[:k * cin, :cout].set(w2d)
    bp = jnp.zeros((1, CP), jnp.float32).at[0, :cout].set(bias)
    return wp.astype(jnp.bfloat16), bp


def _prep_block_conv(w_kio, bn):
    """(9, 64, 64) conv + BN -> (9*CP, CP) bf16 weight and (1, CP) f32 bias."""
    scale, bias = _fold_bn(bn)
    w = w_kio * scale[None, None, :]
    k, cin, cout = w.shape
    wp = jnp.zeros((k, CP, CP), jnp.float32).at[:, :cin, :cout].set(w)
    bp = jnp.zeros((1, CP), jnp.float32).at[0, :cout].set(bias)
    return wp.reshape(k * CP, CP).astype(jnp.bfloat16), bp


# ---------------------------------------------------------------------------
# Fused kernel: stem conv -> maxpool -> layer1 (2 BasicBlocks) -> avgpool -> MLP
# (one grid step == one batch sample)
# ---------------------------------------------------------------------------
def _fused_kernel(*refs, RS1, PWs, PW, R1, SLOP, n_lin):
    (xcol_ref, w_stem_ref, b_stem_ref, stem_mask_ref, sel_ref, mask_ref,
     pool_ref,
     w01_ref, b01_ref, w02_ref, b02_ref,
     w11_ref, b11_ref, w12_ref, b12_ref) = refs[:15]
    lin_refs = refs[15:15 + 2 * n_lin]
    wh_ref, bh_ref, o_ref, pbb = refs[15 + 2 * n_lin:]

    f32 = jnp.float32
    bf16 = jnp.bfloat16

    # Border rows of the zero-padded 3x3-conv layout must read as exact zeros.
    pbb[...] = jnp.zeros_like(pbb)

    # --- stem 7x7/2 conv (+ folded BN, + ReLU) as ONE lane-dense MXU matmul.
    #     Rows are already laid out on the zero-padded maxpool grid; pad rows
    #     (which matmul to bias-only values) are forced back to zero. ----------
    stem = jnp.dot(xcol_ref[0], w_stem_ref[...], preferred_element_type=f32)
    stem = jnp.maximum(stem + b_stem_ref[...], 0.0)
    stem = jnp.where(stem_mask_ref[...] > 0.5, stem, 0.0)       # (RS1, CP) >= 0

    # --- maxpool 3x3 / stride 2 / pad 1, fully vectorised: separable whole-slab
    #     maxima over row-shifted slices (zero padding == -inf padding because
    #     stem >= 0), then the stride-2 downselect + placement into the padded
    #     conv layout folded into one small selection matmul. ------------------
    lh = RS1 - 2
    lm = RS1 - 2 * PWs - 2
    mh = jnp.maximum(jnp.maximum(stem[0:lh], stem[1:lh + 1]), stem[2:lh + 2])
    mv = jnp.maximum(jnp.maximum(mh[0:lm], mh[PWs:PWs + lm]),
                     mh[2 * PWs:2 * PWs + lm])
    a = jnp.dot(sel_ref[...], mv, preferred_element_type=f32)   # (R1, CP), zero borders
    pbb[SLOP:SLOP + R1, :] = a.astype(bf16)

    maskv = mask_ref[...] > 0.5                                 # (R1, 1)

    def conv3x3(w_ref, b_ref):
        # Activation is resident (bf16, cast once) in the zero-padded buffer;
        # every 3x3 tap is a uniform row shift, so gather the 9 shifted slabs
        # once, lane-concatenate them into a single (R1, 9*CP) im2col slab, and
        # run ONE big-K MXU matmul with f32 accumulation.
        slabs = [pbb[SLOP + (di - 1) * PW + (dj - 1):
                     SLOP + (di - 1) * PW + (dj - 1) + R1, :]
                 for di in range(3) for dj in range(3)]
        cols = jnp.concatenate(slabs, axis=1)                   # (R1, 9*CP) bf16
        return jnp.dot(cols, w_ref[...], preferred_element_type=f32) + b_ref[...]

    # --- layer1: two BasicBlocks with identity shortcuts, fully VMEM resident --
    for bi, (w1_ref, b1_ref, w2_ref, b2_ref) in enumerate((
            (w01_ref, b01_ref, w02_ref, b02_ref),
            (w11_ref, b11_ref, w12_ref, b12_ref))):
        identity = a
        h = jnp.where(maskv, jnp.maximum(conv3x3(w1_ref, b1_ref), 0.0), 0.0)
        pbb[SLOP:SLOP + R1, :] = h.astype(bf16)
        a = jnp.where(maskv,
                      jnp.maximum(conv3x3(w2_ref, b2_ref) + identity, 0.0),
                      0.0)
        if bi == 0:
            pbb[SLOP:SLOP + R1, :] = a.astype(bf16)

    # --- global average pool as one matmul (the pool matrix carries both the
    #     interior mask and the 1/(Hp*Wp) factor); dropout rate 0 => identity ---
    h = jnp.dot(pool_ref[...], a, preferred_element_type=f32)   # (POOL_ROWS, CP)
    for i in range(n_lin):
        h = jnp.maximum(
            jnp.dot(h, lin_refs[2 * i][...], preferred_element_type=f32)
            + lin_refs[2 * i + 1][...], 0.0)
    out = jnp.dot(h, wh_ref[...], preferred_element_type=f32) + bh_ref[...]
    o_ref[0] = out[0:1, :].astype(o_ref.dtype)


# ---------------------------------------------------------------------------
# Forward-pass wrapper (single pallas_call, grid over the batch)
# ---------------------------------------------------------------------------
def spatial_only_resnet18_forward(numerical, spatial_nchw, params):
    # `numerical` is accepted but unused, matching the reference forward().
    del numerical
    p = params
    x = jnp.transpose(spatial_nchw, (0, 2, 3, 1)).astype(jnp.float32)  # NCHW->NHWC
    N, H, W, Cin = map(int, x.shape)

    # --- geometry ------------------------------------------------------------
    KH = KW = 7
    STR, PAD = 2, 3
    Hs = (H + 2 * PAD - KH) // STR + 1
    Ws = (W + 2 * PAD - KW) // STR + 1
    Hp = (Hs + 2 - 3) // 2 + 1                 # maxpool 3x3 / stride 2 / pad 1
    Wp = (Ws + 2 - 3) // 2 + 1
    PHs, PWs = Hs + 2, Ws + 2                  # zero-padded maxpool grid
    PH, PW = Hp + 2, Wp + 2                    # zero-padded 3x3-conv grid
    RS1 = PHs * PWs
    R1 = PH * PW
    SLOP = ((PW + 1 + 15) // 16) * 16          # bf16-sublane-aligned shift slack
    LM = RS1 - 2 * PWs - 2

    # --- stem im2col, embedded directly on the zero-padded maxpool grid -------
    KC = KH * KW * Cin
    KCp = max(128, ((KC + 127) // 128) * 128)
    xp = jnp.pad(x, ((0, 0), (PAD, PAD), (PAD, PAD), (0, 0)))
    taps = []
    for i in range(KH):
        for j in range(KW):
            taps.append(xp[:, i:i + STR * Hs:STR, j:j + STR * Ws:STR, :])
    xcol = jnp.concatenate(taps, axis=-1)                      # (N, Hs, Ws, KC)
    xcol_p = jnp.zeros((N, PHs, PWs, KCp), jnp.float32)
    xcol_p = xcol_p.at[:, 1:Hs + 1, 1:Ws + 1, :KC].set(xcol)
    xcol_p = xcol_p.reshape(N, RS1, KCp).astype(jnp.bfloat16)

    # --- folded-BN conv weights ------------------------------------------------
    w_stem, b_stem = _prep_stem(p["conv1_w"], p["bn1"], KCp)
    blk = []
    for name in ("block0", "block1"):
        bp = p[name]
        for wname, bnname in (("conv1_w", "bn1"), ("conv2_w", "bn2")):
            w2d, b2d = _prep_block_conv(bp[wname], bp[bnname])
            blk += [w2d, b2d]

    # --- static masks / selection / pooling matrices (built once, host side) ---
    stem_mask = np.zeros((RS1, 1), np.float32)
    for r in range(1, Hs + 1):
        stem_mask[r * PWs + 1:r * PWs + 1 + Ws, 0] = 1.0
    sel = np.zeros((R1, LM), np.float32)
    maskc = np.zeros((R1, 1), np.float32)
    pool = np.zeros((POOL_ROWS, R1), np.float32)
    inv = 1.0 / float(Hp * Wp)
    for oh in range(Hp):
        for ow in range(Wp):
            r = (oh + 1) * PW + (ow + 1)
            sel[r, 2 * oh * PWs + 2 * ow] = 1.0
            maskc[r, 0] = 1.0
            pool[0, r] = inv
    stem_mask = jnp.asarray(stem_mask)
    sel = jnp.asarray(sel)
    maskc = jnp.asarray(maskc)
    pool = jnp.asarray(pool)

    # --- FC stack + head (first matmul input padded to CP channels) ------------
    lin = []
    fc_in = CP
    for (lw, lb) in p["lin_layers"]:
        n_in, n_out = lw.shape
        lwp = jnp.zeros((fc_in, n_out), jnp.float32).at[:n_in, :].set(lw)
        lin += [lwp, lb.reshape(1, -1).astype(jnp.float32)]
        fc_in = n_out
    n_lin = len(p["lin_layers"])
    n_in_head = p["head_w"].shape[0]
    wh = jnp.zeros((fc_in, HEADP), jnp.float32).at[:n_in_head, 0].set(p["head_w"][:, 0])
    bh = jnp.zeros((1, HEADP), jnp.float32).at[0, 0].set(p["head_b"][0])

    kernel = functools.partial(_fused_kernel, RS1=RS1, PWs=PWs, PW=PW, R1=R1,
                               SLOP=SLOP, n_lin=n_lin)

    def _shared(arr):
        nd = arr.ndim
        return pl.BlockSpec(arr.shape, lambda b: (0,) * nd)

    inputs = [xcol_p, w_stem, b_stem, stem_mask, sel, maskc, pool,
              *blk, *lin, wh, bh]
    in_specs = ([pl.BlockSpec((1, RS1, KCp), lambda b: (b, 0, 0))]
                + [_shared(a) for a in inputs[1:]])

    out = pl.pallas_call(
        kernel,
        out_shape=jax.ShapeDtypeStruct((N, 1, HEADP), jnp.float32),
        grid_spec=pltpu.PrefetchScalarGridSpec(
            num_scalar_prefetch=0,
            grid=(N,),
            in_specs=in_specs,
            out_specs=pl.BlockSpec((1, 1, HEADP), lambda b: (b, 0, 0)),
            scratch_shapes=[
                pltpu.VMEM((R1 + 2 * SLOP, CP), jnp.bfloat16),  # padded activation
            ],
        ),
        compiler_params=pltpu.CompilerParams(
            dimension_semantics=("parallel",),
            vmem_limit_bytes=32 * 1024 * 1024),
    )(*inputs)
    return out[:, :, 0]                                          # (N, 1)


# ---------------------------------------------------------------------------
# Deterministic synthetic parameter init (same layout as before)
# ---------------------------------------------------------------------------
def _init_bn(key, c):
    k1, k2, k3, k4 = jax.random.split(key, 4)
    return {
        "gamma": 1.0 + 0.1 * jax.random.normal(k1, (c,), jnp.float32),
        "beta": 0.1 * jax.random.normal(k2, (c,), jnp.float32),
        "mean": 0.1 * jax.random.normal(k3, (c,), jnp.float32),
        "var": jax.random.uniform(k4, (c,), jnp.float32, 0.5, 1.5),
    }


def _init_conv(key, kh, kw, cin, cout):
    # stored directly in kernel layout: (KH*KW, Cin, Cout)
    fan_in = kh * kw * cin
    w = jax.random.normal(key, (kh * kw, cin, cout), jnp.float32)
    return w * (2.0 / fan_in) ** 0.5


def init_params(key, in_chans, hidden_layers_sizes):
    keys = jax.random.split(key, 16)
    params = {
        "conv1_w": _init_conv(keys[0], 7, 7, in_chans, 64),
        "bn1": _init_bn(keys[1], 64),
        "block0": {
            "conv1_w": _init_conv(keys[2], 3, 3, 64, 64),
            "bn1": _init_bn(keys[3], 64),
            "conv2_w": _init_conv(keys[4], 3, 3, 64, 64),
            "bn2": _init_bn(keys[5], 64),
        },
        "block1": {
            "conv1_w": _init_conv(keys[6], 3, 3, 64, 64),
            "bn1": _init_bn(keys[7], 64),
            "conv2_w": _init_conv(keys[8], 3, 3, 64, 64),
            "bn2": _init_bn(keys[9], 64),
        },
    }
    lin_layers = []
    n_in = 64  # resnet18_channels[2]
    lkey = keys[10]
    for n_out in hidden_layers_sizes:
        lkey, kw_, kb_ = jax.random.split(lkey, 3)
        w = jax.random.normal(kw_, (n_in, n_out), jnp.float32) / (n_in ** 0.5)
        bvec = 0.01 * jax.random.normal(kb_, (n_out,), jnp.float32)
        lin_layers.append((w, bvec))
        n_in = n_out
    params["lin_layers"] = lin_layers
    params["head_w"] = jax.random.normal(keys[11], (n_in, 1), jnp.float32) / (n_in ** 0.5)
    params["head_b"] = 0.01 * jax.random.normal(keys[12], (1,), jnp.float32)
    return params


if __name__ == "__main__":
    key = jax.random.PRNGKey(0)
    N, C_IN, S = 2, 4, 16           # batch, spatial_feature_channels, spatial_input_size
    HIDDEN = [32, 16]               # hidden_layers_sizes

    kp, kx, kn = jax.random.split(key, 3)
    params = init_params(kp, C_IN, HIDDEN)
    spatial = jax.random.normal(kx, (N, C_IN, S, S), jnp.float32)   # PyTorch NCHW
    numerical = jax.random.normal(kn, (N, 0), jnp.float32)          # n_numeric forced to 0

    fwd = jax.jit(spatial_only_resnet18_forward)
    out = fwd(numerical, spatial, params)
    out = jax.block_until_ready(out)
    assert out.shape == (N, 1) and out.dtype == jnp.float32
    assert bool(jnp.all(jnp.isfinite(out)))
    print("KERNEL_OK")
</pallas_src>

<mosaic_0001>
module attributes {stable_mosaic.version = 11 : i64} {
  func.func @_fused_kernel(%arg0: i32, %arg1: memref<1x100x256xbf16, #tpu.memory_space<vmem>>, %arg2: memref<256x128xbf16, #tpu.memory_space<vmem>>, %arg3: memref<1x128xf32, #tpu.memory_space<vmem>>, %arg4: memref<100x1xf32, #tpu.memory_space<vmem>>, %arg5: memref<36x78xf32, #tpu.memory_space<vmem>>, %arg6: memref<36x1xf32, #tpu.memory_space<vmem>>, %arg7: memref<8x36xf32, #tpu.memory_space<vmem>>, %arg8: memref<1152x128xbf16, #tpu.memory_space<vmem>>, %arg9: memref<1x128xf32, #tpu.memory_space<vmem>>, %arg10: memref<1152x128xbf16, #tpu.memory_space<vmem>>, %arg11: memref<1x128xf32, #tpu.memory_space<vmem>>, %arg12: memref<1152x128xbf16, #tpu.memory_space<vmem>>, %arg13: memref<1x128xf32, #tpu.memory_space<vmem>>, %arg14: memref<1152x128xbf16, #tpu.memory_space<vmem>>, %arg15: memref<1x128xf32, #tpu.memory_space<vmem>>, %arg16: memref<128x32xf32, #tpu.memory_space<vmem>>, %arg17: memref<1x32xf32, #tpu.memory_space<vmem>>, %arg18: memref<32x16xf32, #tpu.memory_space<vmem>>, %arg19: memref<1x16xf32, #tpu.memory_space<vmem>>, %arg20: memref<16x128xf32, #tpu.memory_space<vmem>>, %arg21: memref<1x128xf32, #tpu.memory_space<vmem>>, %arg22: memref<1x1x128xf32, #tpu.memory_space<vmem>>, %arg23: memref<68x128xbf16, #tpu.memory_space<vmem>>) attributes {dimension_semantics = [#tpu.dimension_semantics<parallel>], iteration_bounds = array<i64: 2>, scalar_prefetch = 0 : i64, scratch_operands = 1 : i64, tpu.core_type = #tpu.core_type<tc>, window_params = [{transform_indices = @transform_0, window_bounds = array<i64: 1, 100, 256>}, {pipeline_mode = #tpu.pipeline_mode<synchronous>, transform_indices = @transform_1, window_bounds = array<i64: 256, 128>}, {pipeline_mode = #tpu.pipeline_mode<synchronous>, transform_indices = @transform_2, window_bounds = array<i64: 1, 128>}, {pipeline_mode = #tpu.pipeline_mode<synchronous>, transform_indices = @transform_3, window_bounds = array<i64: 100, 1>}, {pipeline_mode = #tpu.pipeline_mode<synchronous>, transform_indices = @transform_4, window_bounds = array<i64: 36, 78>}, {pipeline_mode = #tpu.pipeline_mode<synchronous>, transform_indices = @transform_5, window_bounds = array<i64: 36, 1>}, {pipeline_mode = #tpu.pipeline_mode<synchronous>, transform_indices = @transform_6, window_bounds = array<i64: 8, 36>}, {pipeline_mode = #tpu.pipeline_mode<synchronous>, transform_indices = @transform_7, window_bounds = array<i64: 1152, 128>}, {pipeline_mode = #tpu.pipeline_mode<synchronous>, transform_indices = @transform_8, window_bounds = array<i64: 1, 128>}, {pipeline_mode = #tpu.pipeline_mode<synchronous>, transform_indices = @transform_9, window_bounds = array<i64: 1152, 128>}, {pipeline_mode = #tpu.pipeline_mode<synchronous>, transform_indices = @transform_10, window_bounds = array<i64: 1, 128>}, {pipeline_mode = #tpu.pipeline_mode<synchronous>, transform_indices = @transform_11, window_bounds = array<i64: 1152, 128>}, {pipeline_mode = #tpu.pipeline_mode<synchronous>, transform_indices = @transform_12, window_bounds = array<i64: 1, 128>}, {pipeline_mode = #tpu.pipeline_mode<synchronous>, transform_indices = @transform_13, window_bounds = array<i64: 1152, 128>}, {pipeline_mode = #tpu.pipeline_mode<synchronous>, transform_indices = @transform_14, window_bounds = array<i64: 1, 128>}, {pipeline_mode = #tpu.pipeline_mode<synchronous>, transform_indices = @transform_15, window_bounds = array<i64: 128, 32>}, {pipeline_mode = #tpu.pipeline_mode<synchronous>, transform_indices = @transform_16, window_bounds = array<i64: 1, 32>}, {pipeline_mode = #tpu.pipeline_mode<synchronous>, transform_indices = @transform_17, window_bounds = array<i64: 32, 16>}, {pipeline_mode = #tpu.pipeline_mode<synchronous>, transform_indices = @transform_18, window_bounds = array<i64: 1, 16>}, {pipeline_mode = #tpu.pipeline_mode<synchronous>, transform_indices = @transform_19, window_bounds = array<i64: 16, 128>}, {pipeline_mode = #tpu.pipeline_mode<synchronous>, transform_indices = @transform_20, window_bounds = array<i64: 1, 128>}, {transform_indices = @transform_21, window_bounds = array<i64: 1, 1, 128>}]} {
    %cst = arith.constant 0.000000e+00 : bf16
    %0 = vector.broadcast %cst : bf16 to vector<68x128xbf16>
    %c0 = arith.constant 0 : index
    %c0_0 = arith.constant 0 : index
    %1 = vector.load %arg23[%c0, %c0_0] : memref<68x128xbf16, #tpu.memory_space<vmem>>, vector<68x128xbf16>
    tpu.vector_store %arg23[%c0, %c0_0], %0 {strides = array<i32>} : memref<68x128xbf16, #tpu.memory_space<vmem>>, vector<68x128xbf16>,
    %c0_1 = arith.constant 0 : index
    %c0_2 = arith.constant 0 : index
    %c0_3 = arith.constant 0 : index
    %2 = vector.load %arg1[%c0_1, %c0_2, %c0_3] : memref<1x100x256xbf16, #tpu.memory_space<vmem>>, vector<1x100x256xbf16>
    %3 = vector.shape_cast %2 : vector<1x100x256xbf16> to vector<100x256xbf16>
    %c0_4 = arith.constant 0 : index
    %c0_5 = arith.constant 0 : index
    %4 = vector.load %arg2[%c0_4, %c0_5] : memref<256x128xbf16, #tpu.memory_space<vmem>>, vector<256x128xbf16>
    %cst_6 = arith.constant dense<0.000000e+00> : vector<100x128xf32>
    %5 = tpu.matmul %3, %4, %cst_6 {dimension_numbers = #tpu.dot_dimension_numbers<[1], [0], [0], [1], [0, 0, 1, 1], [], []>} : vector<100x256xbf16>, vector<256x128xbf16>, vector<100x128xf32> -> vector<100x128xf32>
    %c0_7 = arith.constant 0 : index
    %c0_8 = arith.constant 0 : index
    %6 = vector.load %arg3[%c0_7, %c0_8] : memref<1x128xf32, #tpu.memory_space<vmem>>, vector<1x128xf32>
    %7 = vector.broadcast %6 : vector<1x128xf32> to vector<100x128xf32>
    %8 = arith.addf %5, %7 : vector<100x128xf32>
    %cst_9 = arith.constant 0.000000e+00 : f32
    %9 = vector.broadcast %cst_9 : f32 to vector<100x128xf32>
    %10 = arith.maximumf %8, %9 : vector<100x128xf32>
    %c0_10 = arith.constant 0 : index
    %c0_11 = arith.constant 0 : index
    %11 = vector.load %arg4[%c0_10, %c0_11] : memref<100x1xf32, #tpu.memory_space<vmem>>, vector<100x1xf32>
    %cst_12 = arith.constant 5.000000e-01 : f32
    %12 = vector.broadcast %cst_12 : f32 to vector<100x1xf32>
    %13 = arith.cmpf ogt, %11, %12 : vector<100x1xf32>
    %cst_13 = arith.constant 0.000000e+00 : f32
    %14 = vector.shape_cast %13 : vector<100x1xi1> to vector<100x1xi1>
    %15 = vector.broadcast %14 : vector<100x1xi1> to vector<100x128xi1>
    %16 = vector.broadcast %cst_13 : f32 to vector<100x128xf32>
    %17 = arith.select %15, %10, %16 : vector<100x128xi1>, vector<100x128xf32>
    %18 = vector.extract_strided_slice %17 {offsets = [0, 0], sizes = [98, 128], strides = [1, 1]} : vector<100x128xf32> to vector<98x128xf32>
    %19 = vector.extract_strided_slice %17 {offsets = [1, 0], sizes = [98, 128], strides = [1, 1]} : vector<100x128xf32> to vector<98x128xf32>
    %20 = arith.maximumf %18, %19 : vector<98x128xf32>
    %21 = vector.extract_strided_slice %17 {offsets = [2, 0], sizes = [98, 128], strides = [1, 1]} : vector<100x128xf32> to vector<98x128xf32>
    %22 = arith.maximumf %20, %21 : vector<98x128xf32>
    %23 = vector.extract_strided_slice %22 {offsets = [0, 0], sizes = [78, 128], strides = [1, 1]} : vector<98x128xf32> to vector<78x128xf32>
    %24 = vector.extract_strided_slice %22 {offsets = [10, 0], sizes = [78, 128], strides = [1, 1]} : vector<98x128xf32> to vector<78x128xf32>
    %25 = arith.maximumf %23, %24 : vector<78x128xf32>
    %26 = vector.extract_strided_slice %22 {offsets = [20, 0], sizes = [78, 128], strides = [1, 1]} : vector<98x128xf32> to vector<78x128xf32>
    %27 = arith.maximumf %25, %26 : vector<78x128xf32>
    %c0_14 = arith.constant 0 : index
    %c0_15 = arith.constant 0 : index
    %28 = vector.load %arg5[%c0_14, %c0_15] : memref<36x78xf32, #tpu.memory_space<vmem>>, vector<36x78xf32>
    %cst_16 = arith.constant dense<0.000000e+00> : vector<36x128xf32>
    %29 = tpu.matmul %28, %27, %cst_16 {dimension_numbers = #tpu.dot_dimension_numbers<[1], [0], [0], [1], [0, 0, 1, 1], [], []>} : vector<36x78xf32>, vector<78x128xf32>, vector<36x128xf32> -> vector<36x128xf32>
    %30 = arith.truncf %29 : vector<36x128xf32> to vector<36x128xbf16>
    %c16 = arith.constant 16 : index
    %c0_17 = arith.constant 0 : index
    %31 = vector.load %arg23[%c16, %c0_17] : memref<68x128xbf16, #tpu.memory_space<vmem>>, vector<36x128xbf16>
    tpu.vector_store %arg23[%c16, %c0_17], %30 {strides = array<i32>} : memref<68x128xbf16, #tpu.memory_space<vmem>>, vector<36x128xbf16>,
    %c0_18 = arith.constant 0 : index
    %c0_19 = arith.constant 0 : index
    %32 = vector.load %arg6[%c0_18, %c0_19] : memref<36x1xf32, #tpu.memory_space<vmem>>, vector<36x1xf32>
    %cst_20 = arith.constant 5.000000e-01 : f32
    %33 = vector.broadcast %cst_20 : f32 to vector<36x1xf32>
    %34 = arith.cmpf ogt, %32, %33 : vector<36x1xf32>
    %c9 = arith.constant 9 : index
    %c0_21 = arith.constant 0 : index
    %35 = vector.load %arg23[%c9, %c0_21] : memref<68x128xbf16, #tpu.memory_space<vmem>>, vector<36x128xbf16>
    %c10 = arith.constant 10 : index
    %c0_22 = arith.constant 0 : index
    %36 = vector.load %arg23[%c10, %c0_22] : memref<68x128xbf16, #tpu.memory_space<vmem>>, vector<36x128xbf16>
    %c11 = arith.constant 11 : index
    %c0_23 = arith.constant 0 : index
    %37 = vector.load %arg23[%c11, %c0_23] : memref<68x128xbf16, #tpu.memory_space<vmem>>, vector<36x128xbf16>
    %c15 = arith.constant 15 : index
    %c0_24 = arith.constant 0 : index
    %38 = vector.load %arg23[%c15, %c0_24] : memref<68x128xbf16, #tpu.memory_space<vmem>>, vector<36x128xbf16>
    %c16_25 = arith.constant 16 : index
    %c0_26 = arith.constant 0 : index
    %39 = vector.load %arg23[%c16_25, %c0_26] : memref<68x128xbf16, #tpu.memory_space<vmem>>, vector<36x128xbf16>
    %c17 = arith.constant 17 : index
    %c0_27 = arith.constant 0 : index
    %40 = vector.load %arg23[%c17, %c0_27] : memref<68x128xbf16, #tpu.memory_space<vmem>>, vector<36x128xbf16>
    %c21 = arith.constant 21 : index
    %c0_28 = arith.constant 0 : index
    %41 = vector.load %arg23[%c21, %c0_28] : memref<68x128xbf16, #tpu.memory_space<vmem>>, vector<36x128xbf16>
    %c22 = arith.constant 22 : index
    %c0_29 = arith.constant 0 : index
    %42 = vector.load %arg23[%c22, %c0_29] : memref<68x128xbf16, #tpu.memory_space<vmem>>, vector<36x128xbf16>
    %c23 = arith.constant 23 : index
    %c0_30 = arith.constant 0 : index
    %43 = vector.load %arg23[%c23, %c0_30] : memref<68x128xbf16, #tpu.memory_space<vmem>>, vector<36x128xbf16>
    %44 = tpu.concatenate %35, %36, %37, %38, %39, %40, %41, %42, %43 in 1 : vector<36x128xbf16>, vector<36x128xbf16>, vector<36x128xbf16>, vector<36x128xbf16>, vector<36x128xbf16>, vector<36x128xbf16>, vector<36x128xbf16>, vector<36x128xbf16>, vector<36x128xbf16> -> vector<36x1152xbf16>
    %c0_31 = arith.constant 0 : index
    %c0_32 = arith.constant 0 : index
    %45 = vector.load %arg8[%c0_31, %c0_32] : memref<1152x128xbf16, #tpu.memory_space<vmem>>, vector<1152x128xbf16>
    %cst_33 = arith.constant dense<0.000000e+00> : vector<36x128xf32>
    %46 = tpu.matmul %44, %45, %cst_33 {dimension_numbers = #tpu.dot_dimension_numbers<[1], [0], [0], [1], [0, 0, 1, 1], [], []>} : vector<36x1152xbf16>, vector<1152x128xbf16>, vector<36x128xf32> -> vector<36x128xf32>
    %c0_34 = arith.constant 0 : index
    %c0_35 = arith.constant 0 : index
    %47 = vector.load %arg9[%c0_34, %c0_35] : memref<1x128xf32, #tpu.memory_space<vmem>>, vector<1x128xf32>
    %48 = vector.broadcast %47 : vector<1x128xf32> to vector<36x128xf32>
    %49 = arith.addf %46, %48 : vector<36x128xf32>
    %cst_36 = arith.constant 0.000000e+00 : f32
    %50 = vector.broadcast %cst_36 : f32 to vector<36x128xf32>
    %51 = arith.maximumf %49, %50 : vector<36x128xf32>
    %cst_37 = arith.constant 0.000000e+00 : f32
    %52 = vector.shape_cast %34 : vector<36x1xi1> to vector<36x1xi1>
    %53 = vector.broadcast %52 : vector<36x1xi1> to vector<36x128xi1>
    %54 = vector.broadcast %cst_37 : f32 to vector<36x128xf32>
    %55 = arith.select %53, %51, %54 : vector<36x128xi1>, vector<36x128xf32>
    %56 = arith.truncf %55 : vector<36x128xf32> to vector<36x128xbf16>
    %c16_38 = arith.constant 16 : index
    %c0_39 = arith.constant 0 : index
    %57 = vector.load %arg23[%c16_38, %c0_39] : memref<68x128xbf16, #tpu.memory_space<vmem>>, vector<36x128xbf16>
    tpu.vector_store %arg23[%c16_38, %c0_39], %56 {strides = array<i32>} : memref<68x128xbf16, #tpu.memory_space<vmem>>, vector<36x128xbf16>,
    %c9_40 = arith.constant 9 : index
    %c0_41 = arith.constant 0 : index
    %58 = vector.load %arg23[%c9_40, %c0_41] : memref<68x128xbf16, #tpu.memory_space<vmem>>, vector<36x128xbf16>
    %c10_42 = arith.constant 10 : index
    %c0_43 = arith.constant 0 : index
    %59 = vector.load %arg23[%c10_42, %c0_43] : memref<68x128xbf16, #tpu.memory_space<vmem>>, vector<36x128xbf16>
    %c11_44 = arith.constant 11 : index
    %c0_45 = arith.constant 0 : index
    %60 = vector.load %arg23[%c11_44, %c0_45] : memref<68x128xbf16, #tpu.memory_space<vmem>>, vector<36x128xbf16>
    %c15_46 = arith.constant 15 : index
    %c0_47 = arith.constant 0 : index
    %61 = vector.load %arg23[%c15_46, %c0_47] : memref<68x128xbf16, #tpu.memory_space<vmem>>, vector<36x128xbf16>
    %c16_48 = arith.constant 16 : index
    %c0_49 = arith.constant 0 : index
    %62 = vector.load %arg23[%c16_48, %c0_49] : memref<68x128xbf16, #tpu.memory_space<vmem>>, vector<36x128xbf16>
    %c17_50 = arith.constant 17 : index
    %c0_51 = arith.constant 0 : index
    %63 = vector.load %arg23[%c17_50, %c0_51] : memref<68x128xbf16, #tpu.memory_space<vmem>>, vector<36x128xbf16>
    %c21_52 = arith.constant 21 : index
    %c0_53 = arith.constant 0 : index
    %64 = vector.load %arg23[%c21_52, %c0_53] : memref<68x128xbf16, #tpu.memory_space<vmem>>, vector<36x128xbf16>
    %c22_54 = arith.constant 22 : index
    %c0_55 = arith.constant 0 : index
    %65 = vector.load %arg23[%c22_54, %c0_55] : memref<68x128xbf16, #tpu.memory_space<vmem>>, vector<36x128xbf16>
    %c23_56 = arith.constant 23 : index
    %c0_57 = arith.constant 0 : index
    %66 = vector.load %arg23[%c23_56, %c0_57] : memref<68x128xbf16, #tpu.memory_space<vmem>>, vector<36x128xbf16>
    %67 = tpu.concatenate %58, %59, %60, %61, %62, %63, %64, %65, %66 in 1 : vector<36x128xbf16>, vector<36x128xbf16>, vector<36x128xbf16>, vector<36x128xbf16>, vector<36x128xbf16>, vector<36x128xbf16>, vector<36x128xbf16>, vector<36x128xbf16>, vector<36x128xbf16> -> vector<36x1152xbf16>
    %c0_58 = arith.constant 0 : index
    %c0_59 = arith.constant 0 : index
    %68 = vector.load %arg10[%c0_58, %c0_59] : memref<1152x128xbf16, #tpu.memory_space<vmem>>, vector<1152x128xbf16>
    %cst_60 = arith.constant dense<0.000000e+00> : vector<36x128xf32>
    %69 = tpu.matmul %67, %68, %cst_60 {dimension_numbers = #tpu.dot_dimension_numbers<[1], [0], [0], [1], [0, 0, 1, 1], [], []>} : vector<36x1152xbf16>, vector<1152x128xbf16>, vector<36x128xf32> -> vector<36x128xf32>
    %c0_61 = arith.constant 0 : index
    %c0_62 = arith.constant 0 : index
    %70 = vector.load %arg11[%c0_61, %c0_62] : memref<1x128xf32, #tpu.memory_space<vmem>>, vector<1x128xf32>
    %71 = vector.broadcast %70 : vector<1x128xf32> to vector<36x128xf32>
    %72 = arith.addf %69, %71 : vector<36x128xf32>
    %73 = arith.addf %72, %29 : vector<36x128xf32>
    %cst_63 = arith.constant 0.000000e+00 : f32
    %74 = vector.broadcast %cst_63 : f32 to vector<36x128xf32>
    %75 = arith.maximumf %73, %74 : vector<36x128xf32>
    %cst_64 = arith.constant 0.000000e+00 : f32
    %76 = vector.shape_cast %34 : vector<36x1xi1> to vector<36x1xi1>
    %77 = vector.broadcast %76 : vector<36x1xi1> to vector<36x128xi1>
    %78 = vector.broadcast %cst_64 : f32 to vector<36x128xf32>
    %79 = arith.select %77, %75, %78 : vector<36x128xi1>, vector<36x128xf32>
    %80 = arith.truncf %79 : vector<36x128xf32> to vector<36x128xbf16>
    %c16_65 = arith.constant 16 : index
    %c0_66 = arith.constant 0 : index
    %81 = vector.load %arg23[%c16_65, %c0_66] : memref<68x128xbf16, #tpu.memory_space<vmem>>, vector<36x128xbf16>
    tpu.vector_store %arg23[%c16_65, %c0_66], %80 {strides = array<i32>} : memref<68x128xbf16, #tpu.memory_space<vmem>>, vector<36x128xbf16>,
    %c9_67 = arith.constant 9 : index
    %c0_68 = arith.constant 0 : index
    %82 = vector.load %arg23[%c9_67, %c0_68] : memref<68x128xbf16, #tpu.memory_space<vmem>>, vector<36x128xbf16>
    %c10_69 = arith.constant 10 : index
    %c0_70 = arith.constant 0 : index
    %83 = vector.load %arg23[%c10_69, %c0_70] : memref<68x128xbf16, #tpu.memory_space<vmem>>, vector<36x128xbf16>
    %c11_71 = arith.constant 11 : index
    %c0_72 = arith.constant 0 : index
    %84 = vector.load %arg23[%c11_71, %c0_72] : memref<68x128xbf16, #tpu.memory_space<vmem>>, vector<36x128xbf16>
    %c15_73 = arith.constant 15 : index
    %c0_74 = arith.constant 0 : index
    %85 = vector.load %arg23[%c15_73, %c0_74] : memref<68x128xbf16, #tpu.memory_space<vmem>>, vector<36x128xbf16>
    %c16_75 = arith.constant 16 : index
    %c0_76 = arith.constant 0 : index
    %86 = vector.load %arg23[%c16_75, %c0_76] : memref<68x128xbf16, #tpu.memory_space<vmem>>, vector<36x128xbf16>
    %c17_77 = arith.constant 17 : index
    %c0_78 = arith.constant 0 : index
    %87 = vector.load %arg23[%c17_77, %c0_78] : memref<68x128xbf16, #tpu.memory_space<vmem>>, vector<36x128xbf16>
    %c21_79 = arith.constant 21 : index
    %c0_80 = arith.constant 0 : index
    %88 = vector.load %arg23[%c21_79, %c0_80] : memref<68x128xbf16, #tpu.memory_space<vmem>>, vector<36x128xbf16>
    %c22_81 = arith.constant 22 : index
    %c0_82 = arith.constant 0 : index
    %89 = vector.load %arg23[%c22_81, %c0_82] : memref<68x128xbf16, #tpu.memory_space<vmem>>, vector<36x128xbf16>
    %c23_83 = arith.constant 23 : index
    %c0_84 = arith.constant 0 : index
    %90 = vector.load %arg23[%c23_83, %c0_84] : memref<68x128xbf16, #tpu.memory_space<vmem>>, vector<36x128xbf16>
    %91 = tpu.concatenate %82, %83, %84, %85, %86, %87, %88, %89, %90 in 1 : vector<36x128xbf16>, vector<36x128xbf16>, vector<36x128xbf16>, vector<36x128xbf16>, vector<36x128xbf16>, vector<36x128xbf16>, vector<36x128xbf16>, vector<36x128xbf16>, vector<36x128xbf16> -> vector<36x1152xbf16>
    %c0_85 = arith.constant 0 : index
    %c0_86 = arith.constant 0 : index
    %92 = vector.load %arg12[%c0_85, %c0_86] : memref<1152x128xbf16, #tpu.memory_space<vmem>>, vector<1152x128xbf16>
    %cst_87 = arith.constant dense<0.000000e+00> : vector<36x128xf32>
    %93 = tpu.matmul %91, %92, %cst_87 {dimension_numbers = #tpu.dot_dimension_numbers<[1], [0], [0], [1], [0, 0, 1, 1], [], []>} : vector<36x1152xbf16>, vector<1152x128xbf16>, vector<36x128xf32> -> vector<36x128xf32>
    %c0_88 = arith.constant 0 : index
    %c0_89 = arith.constant 0 : index
    %94 = vector.load %arg13[%c0_88, %c0_89] : memref<1x128xf32, #tpu.memory_space<vmem>>, vector<1x128xf32>
    %95 = vector.broadcast %94 : vector<1x128xf32> to vector<36x128xf32>
    %96 = arith.addf %93, %95 : vector<36x128xf32>
    %cst_90 = arith.constant 0.000000e+00 : f32
    %97 = vector.broadcast %cst_90 : f32 to vector<36x128xf32>
    %98 = arith.maximumf %96, %97 : vector<36x128xf32>
    %cst_91 = arith.constant 0.000000e+00 : f32
    %99 = vector.shape_cast %34 : vector<36x1xi1> to vector<36x1xi1>
    %100 = vector.broadcast %99 : vector<36x1xi1> to vector<36x128xi1>
    %101 = vector.broadcast %cst_91 : f32 to vector<36x128xf32>
    %102 = arith.select %100, %98, %101 : vector<36x128xi1>, vector<36x128xf32>
    %103 = arith.truncf %102 : vector<36x128xf32> to vector<36x128xbf16>
    %c16_92 = arith.constant 16 : index
    %c0_93 = arith.constant 0 : index
    %104 = vector.load %arg23[%c16_92, %c0_93] : memref<68x128xbf16, #tpu.memory_space<vmem>>, vector<36x128xbf16>
    tpu.vector_store %arg23[%c16_92, %c0_93], %103 {strides = array<i32>} : memref<68x128xbf16, #tpu.memory_space<vmem>>, vector<36x128xbf16>,
    %c9_94 = arith.constant 9 : index
    %c0_95 = arith.constant 0 : index
    %105 = vector.load %arg23[%c9_94, %c0_95] : memref<68x128xbf16, #tpu.memory_space<vmem>>, vector<36x128xbf16>
    %c10_96 = arith.constant 10 : index
    %c0_97 = arith.constant 0 : index
    %106 = vector.load %arg23[%c10_96, %c0_97] : memref<68x128xbf16, #tpu.memory_space<vmem>>, vector<36x128xbf16>
    %c11_98 = arith.constant 11 : index
    %c0_99 = arith.constant 0 : index
    %107 = vector.load %arg23[%c11_98, %c0_99] : memref<68x128xbf16, #tpu.memory_space<vmem>>, vector<36x128xbf16>
    %c15_100 = arith.constant 15 : index
    %c0_101 = arith.constant 0 : index
    %108 = vector.load %arg23[%c15_100, %c0_101] : memref<68x128xbf16, #tpu.memory_space<vmem>>, vector<36x128xbf16>
    %c16_102 = arith.constant 16 : index
    %c0_103 = arith.constant 0 : index
    %109 = vector.load %arg23[%c16_102, %c0_103] : memref<68x128xbf16, #tpu.memory_space<vmem>>, vector<36x128xbf16>
    %c17_104 = arith.constant 17 : index
    %c0_105 = arith.constant 0 : index
    %110 = vector.load %arg23[%c17_104, %c0_105] : memref<68x128xbf16, #tpu.memory_space<vmem>>, vector<36x128xbf16>
    %c21_106 = arith.constant 21 : index
    %c0_107 = arith.constant 0 : index
    %111 = vector.load %arg23[%c21_106, %c0_107] : memref<68x128xbf16, #tpu.memory_space<vmem>>, vector<36x128xbf16>
    %c22_108 = arith.constant 22 : index
    %c0_109 = arith.constant 0 : index
    %112 = vector.load %arg23[%c22_108, %c0_109] : memref<68x128xbf16, #tpu.memory_space<vmem>>, vector<36x128xbf16>
    %c23_110 = arith.constant 23 : index
    %c0_111 = arith.constant 0 : index
    %113 = vector.load %arg23[%c23_110, %c0_111] : memref<68x128xbf16, #tpu.memory_space<vmem>>, vector<36x128xbf16>
    %114 = tpu.concatenate %105, %106, %107, %108, %109, %110, %111, %112, %113 in 1 : vector<36x128xbf16>, vector<36x128xbf16>, vector<36x128xbf16>, vector<36x128xbf16>, vector<36x128xbf16>, vector<36x128xbf16>, vector<36x128xbf16>, vector<36x128xbf16>, vector<36x128xbf16> -> vector<36x1152xbf16>
    %c0_112 = arith.constant 0 : index
    %c0_113 = arith.constant 0 : index
    %115 = vector.load %arg14[%c0_112, %c0_113] : memref<1152x128xbf16, #tpu.memory_space<vmem>>, vector<1152x128xbf16>
    %cst_114 = arith.constant dense<0.000000e+00> : vector<36x128xf32>
    %116 = tpu.matmul %114, %115, %cst_114 {dimension_numbers = #tpu.dot_dimension_numbers<[1], [0], [0], [1], [0, 0, 1, 1], [], []>} : vector<36x1152xbf16>, vector<1152x128xbf16>, vector<36x128xf32> -> vector<36x128xf32>
    %c0_115 = arith.constant 0 : index
    %c0_116 = arith.constant 0 : index
    %117 = vector.load %arg15[%c0_115, %c0_116] : memref<1x128xf32, #tpu.memory_space<vmem>>, vector<1x128xf32>
    %118 = vector.broadcast %117 : vector<1x128xf32> to vector<36x128xf32>
    %119 = arith.addf %116, %118 : vector<36x128xf32>
    %120 = arith.addf %119, %79 : vector<36x128xf32>
    %cst_117 = arith.constant 0.000000e+00 : f32
    %121 = vector.broadcast %cst_117 : f32 to vector<36x128xf32>
    %122 = arith.maximumf %120, %121 : vector<36x128xf32>
    %cst_118 = arith.constant 0.000000e+00 : f32
    %123 = vector.shape_cast %34 : vector<36x1xi1> to vector<36x1xi1>
    %124 = vector.broadcast %123 : vector<36x1xi1> to vector<36x128xi1>
    %125 = vector.broadcast %cst_118 : f32 to vector<36x128xf32>
    %126 = arith.select %124, %122, %125 : vector<36x128xi1>, vector<36x128xf32>
    %c0_119 = arith.constant 0 : index
    %c0_120 = arith.constant 0 : index
    %127 = vector.load %arg7[%c0_119, %c0_120] : memref<8x36xf32, #tpu.memory_space<vmem>>, vector<8x36xf32>
    %cst_121 = arith.constant dense<0.000000e+00> : vector<8x128xf32>
    %128 = tpu.matmul %127, %126, %cst_121 {dimension_numbers = #tpu.dot_dimension_numbers<[1], [0], [0], [1], [0, 0, 1, 1], [], []>} : vector<8x36xf32>, vector<36x128xf32>, vector<8x128xf32> -> vector<8x128xf32>
    %c0_122 = arith.constant 0 : index
    %c0_123 = arith.constant 0 : index
    %129 = vector.load %arg16[%c0_122, %c0_123] : memref<128x32xf32, #tpu.memory_space<vmem>>, vector<128x32xf32>
    %cst_124 = arith.constant dense<0.000000e+00> : vector<8x32xf32>
    %130 = tpu.matmul %128, %129, %cst_124 {dimension_numbers = #tpu.dot_dimension_numbers<[1], [0], [0], [1], [0, 0, 1, 1], [], []>} : vector<8x128xf32>, vector<128x32xf32>, vector<8x32xf32> -> vector<8x32xf32>
    %c0_125 = arith.constant 0 : index
    %c0_126 = arith.constant 0 : index
    %131 = vector.load %arg17[%c0_125, %c0_126] : memref<1x32xf32, #tpu.memory_space<vmem>>, vector<1x32xf32>
    %132 = vector.broadcast %131 : vector<1x32xf32> to vector<8x32xf32>
    %133 = arith.addf %130, %132 : vector<8x32xf32>
    %cst_127 = arith.constant 0.000000e+00 : f32
    %134 = vector.broadcast %cst_127 : f32 to vector<8x32xf32>
    %135 = arith.maximumf %133, %134 : vector<8x32xf32>
    %c0_128 = arith.constant 0 : index
    %c0_129 = arith.constant 0 : index
    %136 = vector.load %arg18[%c0_128, %c0_129] : memref<32x16xf32, #tpu.memory_space<vmem>>, vector<32x16xf32>
    %cst_130 = arith.constant dense<0.000000e+00> : vector<8x16xf32>
    %137 = tpu.matmul %135, %136, %cst_130 {dimension_numbers = #tpu.dot_dimension_numbers<[1], [0], [0], [1], [0, 0, 1, 1], [], []>} : vector<8x32xf32>, vector<32x16xf32>, vector<8x16xf32> -> vector<8x16xf32>
    %c0_131 = arith.constant 0 : index
    %c0_132 = arith.constant 0 : index
    %138 = vector.load %arg19[%c0_131, %c0_132] : memref<1x16xf32, #tpu.memory_space<vmem>>, vector<1x16xf32>
    %139 = vector.broadcast %138 : vector<1x16xf32> to vector<8x16xf32>
    %140 = arith.addf %137, %139 : vector<8x16xf32>
    %cst_133 = arith.constant 0.000000e+00 : f32
    %141 = vector.broadcast %cst_133 : f32 to vector<8x16xf32>
    %142 = arith.maximumf %140, %141 : vector<8x16xf32>
    %c0_134 = arith.constant 0 : index
    %c0_135 = arith.constant 0 : index
    %143 = vector.load %arg20[%c0_134, %c0_135] : memref<16x128xf32, #tpu.memory_space<vmem>>, vector<16x128xf32>
    %cst_136 = arith.constant dense<0.000000e+00> : vector<8x128xf32>
    %144 = tpu.matmul %142, %143, %cst_136 {dimension_numbers = #tpu.dot_dimension_numbers<[1], [0], [0], [1], [0, 0, 1, 1], [], []>} : vector<8x16xf32>, vector<16x128xf32>, vector<8x128xf32> -> vector<8x128xf32>
    %c0_137 = arith.constant 0 : index
    %c0_138 = arith.constant 0 : index
    %145 = vector.load %arg21[%c0_137, %c0_138] : memref<1x128xf32, #tpu.memory_space<vmem>>, vector<1x128xf32>
    %146 = vector.broadcast %145 : vector<1x128xf32> to vector<8x128xf32>
    %147 = arith.addf %144, %146 : vector<8x128xf32>
    %148 = vector.extract_strided_slice %147 {offsets = [0, 0], sizes = [1, 128], strides = [1, 1]} : vector<8x128xf32> to vector<1x128xf32>
    %c0_139 = arith.constant 0 : index
    %c0_140 = arith.constant 0 : index
    %c0_141 = arith.constant 0 : index
    %149 = vector.load %arg22[%c0_139, %c0_140, %c0_141] : memref<1x1x128xf32, #tpu.memory_space<vmem>>, vector<1x1x128xf32>
    %150 = vector.shape_cast %149 : vector<1x1x128xf32> to vector<1x128xf32>
    %151 = vector.shape_cast %148 : vector<1x128xf32> to vector<1x1x128xf32>
    tpu.vector_store %arg22[%c0_139, %c0_140, %c0_141], %151 {strides = array<i32>} : memref<1x1x128xf32, #tpu.memory_space<vmem>>, vector<1x1x128xf32>,
    return
  }
  func.func @transform_0(%arg0: i32) -> (i32, i32, i32) {
    %c0_i32 = arith.constant 0 : i32
    %c0_i32_0 = arith.constant 0 : i32
    %c0_i32_1 = arith.constant 0 : i32
    return %arg0, %c0_i32, %c0_i32_0 : i32, i32, i32
  }
  func.func @transform_1(%arg0: i32) -> (i32, i32) {
    %c0_i32 = arith.constant 0 : i32
    %c0_i32_0 = arith.constant 0 : i32
    %c0_i32_1 = arith.constant 0 : i32
    return %c0_i32, %c0_i32_0 : i32, i32
  }
  func.func @transform_2(%arg0: i32) -> (i32, i32) {
    %c0_i32 = arith.constant 0 : i32
    %c0_i32_0 = arith.constant 0 : i32
    %c0_i32_1 = arith.constant 0 : i32
    return %c0_i32, %c0_i32_0 : i32, i32
  }
  func.func @transform_3(%arg0: i32) -> (i32, i32) {
    %c0_i32 = arith.constant 0 : i32
    %c0_i32_0 = arith.constant 0 : i32
    %c0_i32_1 = arith.constant 0 : i32
    return %c0_i32, %c0_i32_0 : i32, i32
  }
  func.func @transform_4(%arg0: i32) -> (i32, i32) {
    %c0_i32 = arith.constant 0 : i32
    %c0_i32_0 = arith.constant 0 : i32
    %c0_i32_1 = arith.constant 0 : i32
    return %c0_i32, %c0_i32_0 : i32, i32
  }
  func.func @transform_5(%arg0: i32) -> (i32, i32) {
    %c0_i32 = arith.constant 0 : i32
    %c0_i32_0 = arith.constant 0 : i32
    %c0_i32_1 = arith.constant 0 : i32
    return %c0_i32, %c0_i32_0 : i32, i32
  }
  func.func @transform_6(%arg0: i32) -> (i32, i32) {
    %c0_i32 = arith.constant 0 : i32
    %c0_i32_0 = arith.constant 0 : i32
    %c0_i32_1 = arith.constant 0 : i32
    return %c0_i32, %c0_i32_0 : i32, i32
  }
  func.func @transform_7(%arg0: i32) -> (i32, i32) {
    %c0_i32 = arith.constant 0 : i32
    %c0_i32_0 = arith.constant 0 : i32
    %c0_i32_1 = arith.constant 0 : i32
    return %c0_i32, %c0_i32_0 : i32, i32
  }
  func.func @transform_8(%arg0: i32) -> (i32, i32) {
    %c0_i32 = arith.constant 0 : i32
    %c0_i32_0 = arith.constant 0 : i32
    %c0_i32_1 = arith.constant 0 : i32
    return %c0_i32, %c0_i32_0 : i32, i32
  }
  func.func @transform_9(%arg0: i32) -> (i32, i32) {
    %c0_i32 = arith.constant 0 : i32
    %c0_i32_0 = arith.constant 0 : i32
    %c0_i32_1 = arith.constant 0 : i32
    return %c0_i32, %c0_i32_0 : i32, i32
  }
  func.func @transform_10(%arg0: i32) -> (i32, i32) {
    %c0_i32 = arith.constant 0 : i32
    %c0_i32_0 = arith.constant 0 : i32
    %c0_i32_1 = arith.constant 0 : i32
    return %c0_i32, %c0_i32_0 : i32, i32
  }
  func.func @transform_11(%arg0: i32) -> (i32, i32) {
    %c0_i32 = arith.constant 0 : i32
    %c0_i32_0 = arith.constant 0 : i32
    %c0_i32_1 = arith.constant 0 : i32
    return %c0_i32, %c0_i32_0 : i32, i32
  }
  func.func @transform_12(%arg0: i32) -> (i32, i32) {
    %c0_i32 = arith.constant 0 : i32
    %c0_i32_0 = arith.constant 0 : i32
    %c0_i32_1 = arith.constant 0 : i32
    return %c0_i32, %c0_i32_0 : i32, i32
  }
  func.func @transform_13(%arg0: i32) -> (i32, i32) {
    %c0_i32 = arith.constant 0 : i32
    %c0_i32_0 = arith.constant 0 : i32
    %c0_i32_1 = arith.constant 0 : i32
    return %c0_i32, %c0_i32_0 : i32, i32
  }
  func.func @transform_14(%arg0: i32) -> (i32, i32) {
    %c0_i32 = arith.constant 0 : i32
    %c0_i32_0 = arith.constant 0 : i32
    %c0_i32_1 = arith.constant 0 : i32
    return %c0_i32, %c0_i32_0 : i32, i32
  }
  func.func @transform_15(%arg0: i32) -> (i32, i32) {
    %c0_i32 = arith.constant 0 : i32
    %c0_i32_0 = arith.constant 0 : i32
    %c0_i32_1 = arith.constant 0 : i32
    return %c0_i32, %c0_i32_0 : i32, i32
  }
  func.func @transform_16(%arg0: i32) -> (i32, i32) {
    %c0_i32 = arith.constant 0 : i32
    %c0_i32_0 = arith.constant 0 : i32
    %c0_i32_1 = arith.constant 0 : i32
    return %c0_i32, %c0_i32_0 : i32, i32
  }
  func.func @transform_17(%arg0: i32) -> (i32, i32) {
    %c0_i32 = arith.constant 0 : i32
    %c0_i32_0 = arith.constant 0 : i32
    %c0_i32_1 = arith.constant 0 : i32
    return %c0_i32, %c0_i32_0 : i32, i32
  }
  func.func @transform_18(%arg0: i32) -> (i32, i32) {
    %c0_i32 = arith.constant 0 : i32
    %c0_i32_0 = arith.constant 0 : i32
    %c0_i32_1 = arith.constant 0 : i32
    return %c0_i32, %c0_i32_0 : i32, i32
  }
  func.func @transform_19(%arg0: i32) -> (i32, i32) {
    %c0_i32 = arith.constant 0 : i32
    %c0_i32_0 = arith.constant 0 : i32
    %c0_i32_1 = arith.constant 0 : i32
    return %c0_i32, %c0_i32_0 : i32, i32
  }
  func.func @transform_20(%arg0: i32) -> (i32, i32) {
    %c0_i32 = arith.constant 0 : i32
    %c0_i32_0 = arith.constant 0 : i32
    %c0_i32_1 = arith.constant 0 : i32
    return %c0_i32, %c0_i32_0 : i32, i32
  }
  func.func @transform_21(%arg0: i32) -> (i32, i32, i32) {
    %c0_i32 = arith.constant 0 : i32
    %c0_i32_0 = arith.constant 0 : i32
    %c0_i32_1 = arith.constant 0 : i32
    return %arg0, %c0_i32, %c0_i32_0 : i32, i32, i32
  }
}

</mosaic_0001>

<llo_original>
// kernel: spatial_only_resnet18_forward.1
$region0: #{spatial_only_resnet18_forward.1}
  #allocation0 [shape = 'u32[]', space=smem, size = 0x4, offset = 0x4, fixed_abs, tag = 'smem constant byte address 0x4 - core index']
  #allocation1 [shape = 'u32[72,128]{1,0:T(1,128)}', space=vmem, size = 0x9000, scoped, tag = 'internal scratch']
  #allocation2 [shape = 'bf16[68,128]{1,0:T(8,128)(2,1)}', space=vmem, size = 0x4800, scoped, tag = 'scratch operand']
  %s0 = inlined_call_operand.vmem [shape: bf16[2,100,256], index: 0, kind: input, shape index: {}]
  %s1 = inlined_call_operand.vmem [shape: bf16[256,128], index: 1, kind: input, shape index: {}]
  %s2 = inlined_call_operand.vmem [shape: f32[1,128], index: 2, kind: input, shape index: {}]
  %s3 = inlined_call_operand.vmem [shape: f32[100,1], index: 3, kind: input, shape index: {}]
  %s4 = inlined_call_operand.vmem [shape: f32[36,78], index: 4, kind: input, shape index: {}]
  %s5 = inlined_call_operand.vmem [shape: f32[36,1], index: 5, kind: input, shape index: {}]
  %s6 = inlined_call_operand.vmem [shape: f32[8,36], index: 6, kind: input, shape index: {}]
  %s7 = inlined_call_operand.vmem [shape: bf16[1152,128], index: 7, kind: input, shape index: {}]
  %s8 = inlined_call_operand.vmem [shape: f32[1,128], index: 8, kind: input, shape index: {}]
  %s9 = inlined_call_operand.vmem [shape: bf16[1152,128], index: 9, kind: input, shape index: {}]
  %s10 = inlined_call_operand.vmem [shape: f32[1,128], index: 10, kind: input, shape index: {}]
  %s11 = inlined_call_operand.vmem [shape: bf16[1152,128], index: 11, kind: input, shape index: {}]
  %s12 = inlined_call_operand.vmem [shape: f32[1,128], index: 12, kind: input, shape index: {}]
  %s13 = inlined_call_operand.vmem [shape: bf16[1152,128], index: 13, kind: input, shape index: {}]
  %s14 = inlined_call_operand.vmem [shape: f32[1,128], index: 14, kind: input, shape index: {}]
  %s15 = inlined_call_operand.vmem [shape: f32[128,32], index: 15, kind: input, shape index: {}]
  %s16 = inlined_call_operand.vmem [shape: f32[1,32], index: 16, kind: input, shape index: {}]
  %s17 = inlined_call_operand.vmem [shape: f32[32,16], index: 17, kind: input, shape index: {}]
  %s18 = inlined_call_operand.vmem [shape: f32[1,16], index: 18, kind: input, shape index: {}]
  %s19 = inlined_call_operand.vmem [shape: f32[16,128], index: 19, kind: input, shape index: {}]
  %s20 = inlined_call_operand.vmem [shape: f32[1,128], index: 20, kind: input, shape index: {}]
  %s21 = inlined_call_operand.vmem [shape: f32[2,1,128], index: 21, kind: output, shape index: {}]
  %s22 = sld [smem:[#allocation0]]
  $region117: #{spatial_only_resnet18_forward.1} parent=0
    _
  %s24 = ssub.s32 1, %s22
  %s25 = scalar_select 0, %s24, %s22
  loop: start=0, step=1, limit=4
  $region2: #{spatial_only_resnet18_forward.1} parent=0 // loop_pre_header
    _
  $region3: #{spatial_only_resnet18_forward.1} parent=0 // loop_header
    %s27 = sphi 0, %s31
    %p28 = scmp.ge.s32.totalorder %s27, 4
    %s37 = sphi 0, %s39
    %s40 = sphi 0, %s37
    %s41 = sphi 0, %s40
    %s57 = sphi 0, %s41
    %s61 = sphi 0, %s61
    %s63 = sphi 0, %s61
    %s64 = sphi 0, %s63
    %s78 = sphi 0, %s64
    %s82 = sphi 0, %s82
    %s84 = sphi 0, %s82
    %s85 = sphi 0, %s84
    %s99 = sphi 0, %s85
    %s103 = sphi 0, %s103
    %s105 = sphi 0, %s103
    %s106 = sphi 0, %s105
    %s120 = sphi 0, %s106
    %s124 = sphi 0, %s124
    %s126 = sphi 0, %s124
    %s127 = sphi 0, %s126
    %s141 = sphi 0, %s127
    %s145 = sphi 0, %s145
    %s147 = sphi 0, %s145
    %s148 = sphi 0, %s147
    %s162 = sphi 0, %s148
    %s166 = sphi 0, %s166
    %s168 = sphi 0, %s166
    %s169 = sphi 0, %s168
    %s183 = sphi 0, %s169
    %s187 = sphi 0, %s187
    %s189 = sphi 0, %s187
    %s190 = sphi 0, %s189
    %s204 = sphi 0, %s190
    %s208 = sphi 0, %s208
    %s210 = sphi 0, %s208
    %s211 = sphi 0, %s210
    %s225 = sphi 0, %s211
    %s229 = sphi 0, %s229
    %s231 = sphi 0, %s229
    %s232 = sphi 0, %s231
    %s246 = sphi 0, %s232
    %s250 = sphi 0, %s250
    %s252 = sphi 0, %s250
    %s253 = sphi 0, %s252
    %s267 = sphi 0, %s253
    %s271 = sphi 0, %s271
    %s273 = sphi 0, %s271
    %s274 = sphi 0, %s273
    %s288 = sphi 0, %s274
    %s292 = sphi 0, %s292
    %s294 = sphi 0, %s292
    %s295 = sphi 0, %s294
    %s309 = sphi 0, %s295
    %s313 = sphi 0, %s313
    %s315 = sphi 0, %s313
    %s316 = sphi 0, %s315
    %s330 = sphi 0, %s316
    %s334 = sphi 0, %s334
    %s336 = sphi 0, %s334
    %s337 = sphi 0, %s336
    %s351 = sphi 0, %s337
    %s355 = sphi 0, %s355
    %s357 = sphi 0, %s355
    %s358 = sphi 0, %s357
    %s372 = sphi 0, %s358
    %s376 = sphi 0, %s376
    %s378 = sphi 0, %s376
    %s379 = sphi 0, %s378
    %s393 = sphi 0, %s379
    %s397 = sphi 0, %s397
    %s399 = sphi 0, %s397
    %s400 = sphi 0, %s399
    %s414 = sphi 0, %s400
    %s418 = sphi 0, %s418
    %s420 = sphi 0, %s418
    %s421 = sphi 0, %s420
    %s435 = sphi 0, %s421
    %s439 = sphi 0, %s439
    %s441 = sphi 0, %s439
    %s442 = sphi 0, %s441
    %s456 = sphi 0, %s442
    %s460 = sphi 0, %s460
    %s462 = sphi 0, %s460
    %s463 = sphi 0, %s462
    %s477 = sphi 0, %s463
    %s483 = sphi 0, %s485
    %s486 = sphi 0, %s483
    %s487 = sphi 0, %s486
    %s503 = sphi 0, %s487
  $region4: #{spatial_only_resnet18_forward.1} parent=0 // loop_header_branch
    %30 = sbr.rel (%p28) target = $region8
  $region5: #{spatial_only_resnet18_forward.1} parent=0 // loop_body
    %s32 = ssub.s32 %s27, 1
    %s33 = ssub.s32 %s27, 2
    %s34 = sadd.s32 %s27, 1
    %s35 = ssub.s32 %s27, %s34
    %p36 = scmp.eq.s32.totalorder %s35, 0
    %s38 = sadd.s32 %s37, 1
    %s39 = scalar_select %p36, %s37, %s38
    %p42 = pneg %p36
    %p43 = scmp.eq.s32.totalorder %s27, 1
    %p44 = por %p42, %p43
    %p45 = scmp.ne.s32.totalorder %s37, %s40
    %p46 = scmp.eq.s32.totalorder %s27, 0
    %p47 = por %p45, %p46
    %p48 = scmp.ne.s32.totalorder %s37, %s40
    %p49 = scmp.eq.s32.totalorder %s32, 1
    %p50 = por %p48, %p49
    %p51 = scmp.ne.s32.totalorder %s40, %s41
    %p52 = scmp.eq.s32.totalorder %s32, 0
    %p53 = por %p51, %p52
    %p54 = scmp.ne.s32.totalorder %s40, %s41
    %p55 = scmp.eq.s32.totalorder %s33, 1
    %p56 = por %p54, %p55
    %p58 = scmp.ne.s32.totalorder %s41, %s57
    %p59 = scmp.eq.s32.totalorder %s33, 0
    %p60 = por %p58, %p59
    %s62 = sadd.s32 %s61, 1
    %p65 = scmp.eq.s32.totalorder %s27, 1
    %p66 = scmp.ne.s32.totalorder %s61, %s63
    %p67 = scmp.eq.s32.totalorder %s27, 0
    %p68 = por %p66, %p67
    %p69 = scmp.ne.s32.totalorder %s61, %s63
    %p70 = scmp.eq.s32.totalorder %s32, 1
    %p71 = por %p69, %p70
    %p72 = scmp.ne.s32.totalorder %s63, %s64
    %p73 = scmp.eq.s32.totalorder %s32, 0
    %p74 = por %p72, %p73
    %p75 = scmp.ne.s32.totalorder %s63, %s64
    %p76 = scmp.eq.s32.totalorder %s33, 1
    %p77 = por %p75, %p76
    %p79 = scmp.ne.s32.totalorder %s64, %s78
    %p80 = scmp.eq.s32.totalorder %s33, 0
    %p81 = por %p79, %p80
    %s83 = sadd.s32 %s82, 1
    %p86 = scmp.eq.s32.totalorder %s27, 1
    %p87 = scmp.ne.s32.totalorder %s82, %s84
    %p88 = scmp.eq.s32.totalorder %s27, 0
    %p89 = por %p87, %p88
    %p90 = scmp.ne.s32.totalorder %s82, %s84
    %p91 = scmp.eq.s32.totalorder %s32, 1
    %p92 = por %p90, %p91
    %p93 = scmp.ne.s32.totalorder %s84, %s85
    %p94 = scmp.eq.s32.totalorder %s32, 0
    %p95 = por %p93, %p94
    %p96 = scmp.ne.s32.totalorder %s84, %s85
    %p97 = scmp.eq.s32.totalorder %s33, 1
    %p98 = por %p96, %p97
    %p100 = scmp.ne.s32.totalorder %s85, %s99
    %p101 = scmp.eq.s32.totalorder %s33, 0
    %p102 = por %p100, %p101
    %s104 = sadd.s32 %s103, 1
    %p107 = scmp.eq.s32.totalorder %s27, 1
    %p108 = scmp.ne.s32.totalorder %s103, %s105
    %p109 = scmp.eq.s32.totalorder %s27, 0
    %p110 = por %p108, %p109
    %p111 = scmp.ne.s32.totalorder %s103, %s105
    %p112 = scmp.eq.s32.totalorder %s32, 1
    %p113 = por %p111, %p112
    %p114 = scmp.ne.s32.totalorder %s105, %s106
    %p115 = scmp.eq.s32.totalorder %s32, 0
    %p116 = por %p114, %p115
    %p117 = scmp.ne.s32.totalorder %s105, %s106
    %p118 = scmp.eq.s32.totalorder %s33, 1
    %p119 = por %p117, %p118
    %p121 = scmp.ne.s32.totalorder %s106, %s120
    %p122 = scmp.eq.s32.totalorder %s33, 0
    %p123 = por %p121, %p122
    %s125 = sadd.s32 %s124, 1
    %p128 = scmp.eq.s32.totalorder %s27, 1
    %p129 = scmp.ne.s32.totalorder %s124, %s126
    %p130 = scmp.eq.s32.totalorder %s27, 0
    %p131 = por %p129, %p130
    %p132 = scmp.ne.s32.totalorder %s124, %s126
    %p133 = scmp.eq.s32.totalorder %s32, 1
    %p134 = por %p132, %p133
    %p135 = scmp.ne.s32.totalorder %s126, %s127
    %p136 = scmp.eq.s32.totalorder %s32, 0
    %p137 = por %p135, %p136
    %p138 = scmp.ne.s32.totalorder %s126, %s127
    %p139 = scmp.eq.s32.totalorder %s33, 1
    %p140 = por %p138, %p139
    %p142 = scmp.ne.s32.totalorder %s127, %s141
    %p143 = scmp.eq.s32.totalorder %s33, 0
    %p144 = por %p142, %p143
    %s146 = sadd.s32 %s145, 1
    %p149 = scmp.eq.s32.totalorder %s27, 1
    %p150 = scmp.ne.s32.totalorder %s145, %s147
    %p151 = scmp.eq.s32.totalorder %s27, 0
    %p152 = por %p150, %p151
    %p153 = scmp.ne.s32.totalorder %s145, %s147
    %p154 = scmp.eq.s32.totalorder %s32, 1
    %p155 = por %p153, %p154
    %p156 = scmp.ne.s32.totalorder %s147, %s148
    %p157 = scmp.eq.s32.totalorder %s32, 0
    %p158 = por %p156, %p157
    %p159 = scmp.ne.s32.totalorder %s147, %s148
    %p160 = scmp.eq.s32.totalorder %s33, 1
    %p161 = por %p159, %p160
    %p163 = scmp.ne.s32.totalorder %s148, %s162
    %p164 = scmp.eq.s32.totalorder %s33, 0
    %p165 = por %p163, %p164
    %s167 = sadd.s32 %s166, 1
    %p170 = scmp.eq.s32.totalorder %s27, 1
    %p171 = scmp.ne.s32.totalorder %s166, %s168
    %p172 = scmp.eq.s32.totalorder %s27, 0
    %p173 = por %p171, %p172
    %p174 = scmp.ne.s32.totalorder %s166, %s168
    %p175 = scmp.eq.s32.totalorder %s32, 1
    %p176 = por %p174, %p175
    %p177 = scmp.ne.s32.totalorder %s168, %s169
    %p178 = scmp.eq.s32.totalorder %s32, 0
    %p179 = por %p177, %p178
    %p180 = scmp.ne.s32.totalorder %s168, %s169
    %p181 = scmp.eq.s32.totalorder %s33, 1
    %p182 = por %p180, %p181
    %p184 = scmp.ne.s32.totalorder %s169, %s183
    %p185 = scmp.eq.s32.totalorder %s33, 0
    %p186 = por %p184, %p185
    %s188 = sadd.s32 %s187, 1
    %p191 = scmp.eq.s32.totalorder %s27, 1
    %p192 = scmp.ne.s32.totalorder %s187, %s189
    %p193 = scmp.eq.s32.totalorder %s27, 0
    %p194 = por %p192, %p193
    %p195 = scmp.ne.s32.totalorder %s187, %s189
    %p196 = scmp.eq.s32.totalorder %s32, 1
    %p197 = por %p195, %p196
    %p198 = scmp.ne.s32.totalorder %s189, %s190
    %p199 = scmp.eq.s32.totalorder %s32, 0
    %p200 = por %p198, %p199
    %p201 = scmp.ne.s32.totalorder %s189, %s190
    %p202 = scmp.eq.s32.totalorder %s33, 1
    %p203 = por %p201, %p202
    %p205 = scmp.ne.s32.totalorder %s190, %s204
    %p206 = scmp.eq.s32.totalorder %s33, 0
    %p207 = por %p205, %p206
    %s209 = sadd.s32 %s208, 1
    %p212 = scmp.eq.s32.totalorder %s27, 1
    %p213 = scmp.ne.s32.totalorder %s208, %s210
    %p214 = scmp.eq.s32.totalorder %s27, 0
    %p215 = por %p213, %p214
    %p216 = scmp.ne.s32.totalorder %s208, %s210
    %p217 = scmp.eq.s32.totalorder %s32, 1
    %p218 = por %p216, %p217
    %p219 = scmp.ne.s32.totalorder %s210, %s211
    %p220 = scmp.eq.s32.totalorder %s32, 0
    %p221 = por %p219, %p220
    %p222 = scmp.ne.s32.totalorder %s210, %s211
    %p223 = scmp.eq.s32.totalorder %s33, 1
    %p224 = por %p222, %p223
    %p226 = scmp.ne.s32.totalorder %s211, %s225
    %p227 = scmp.eq.s32.totalorder %s33, 0
    %p228 = por %p226, %p227
    %s230 = sadd.s32 %s229, 1
    %p233 = scmp.eq.s32.totalorder %s27, 1
    %p234 = scmp.ne.s32.totalorder %s229, %s231
    %p235 = scmp.eq.s32.totalorder %s27, 0
    %p236 = por %p234, %p235
    %p237 = scmp.ne.s32.totalorder %s229, %s231
    %p238 = scmp.eq.s32.totalorder %s32, 1
    %p239 = por %p237, %p238
    %p240 = scmp.ne.s32.totalorder %s231, %s232
    %p241 = scmp.eq.s32.totalorder %s32, 0
    %p242 = por %p240, %p241
    %p243 = scmp.ne.s32.totalorder %s231, %s232
    %p244 = scmp.eq.s32.totalorder %s33, 1
    %p245 = por %p243, %p244
    %p247 = scmp.ne.s32.totalorder %s232, %s246
    %p248 = scmp.eq.s32.totalorder %s33, 0
    %p249 = por %p247, %p248
    %s251 = sadd.s32 %s250, 1
    %p254 = scmp.eq.s32.totalorder %s27, 1
    %p255 = scmp.ne.s32.totalorder %s250, %s252
    %p256 = scmp.eq.s32.totalorder %s27, 0
    %p257 = por %p255, %p256
    %p258 = scmp.ne.s32.totalorder %s250, %s252
    %p259 = scmp.eq.s32.totalorder %s32, 1
    %p260 = por %p258, %p259
    %p261 = scmp.ne.s32.totalorder %s252, %s253
    %p262 = scmp.eq.s32.totalorder %s32, 0
    %p263 = por %p261, %p262
    %p264 = scmp.ne.s32.totalorder %s252, %s253
    %p265 = scmp.eq.s32.totalorder %s33, 1
    %p266 = por %p264, %p265
    %p268 = scmp.ne.s32.totalorder %s253, %s267
    %p269 = scmp.eq.s32.totalorder %s33, 0
    %p270 = por %p268, %p269
    %s272 = sadd.s32 %s271, 1
    %p275 = scmp.eq.s32.totalorder %s27, 1
    %p276 = scmp.ne.s32.totalorder %s271, %s273
    %p277 = scmp.eq.s32.totalorder %s27, 0
    %p278 = por %p276, %p277
    %p279 = scmp.ne.s32.totalorder %s271, %s273
    %p280 = scmp.eq.s32.totalorder %s32, 1
    %p281 = por %p279, %p280
    %p282 = scmp.ne.s32.totalorder %s273, %s274
    %p283 = scmp.eq.s32.totalorder %s32, 0
    %p284 = por %p282, %p283
    %p285 = scmp.ne.s32.totalorder %s273, %s274
    %p286 = scmp.eq.s32.totalorder %s33, 1
    %p287 = por %p285, %p286
    %p289 = scmp.ne.s32.totalorder %s274, %s288
    %p290 = scmp.eq.s32.totalorder %s33, 0
    %p291 = por %p289, %p290
    %s293 = sadd.s32 %s292, 1
    %p296 = scmp.eq.s32.totalorder %s27, 1
    %p297 = scmp.ne.s32.totalorder %s292, %s294
    %p298 = scmp.eq.s32.totalorder %s27, 0
    %p299 = por %p297, %p298
    %p300 = scmp.ne.s32.totalorder %s292, %s294
    %p301 = scmp.eq.s32.totalorder %s32, 1
    %p302 = por %p300, %p301
    %p303 = scmp.ne.s32.totalorder %s294, %s295
    %p304 = scmp.eq.s32.totalorder %s32, 0
    %p305 = por %p303, %p304
    %p306 = scmp.ne.s32.totalorder %s294, %s295
    %p307 = scmp.eq.s32.totalorder %s33, 1
    %p308 = por %p306, %p307
    %p310 = scmp.ne.s32.totalorder %s295, %s309
    %p311 = scmp.eq.s32.totalorder %s33, 0
    %p312 = por %p310, %p311
    %s314 = sadd.s32 %s313, 1
    %p317 = scmp.eq.s32.totalorder %s27, 1
    %p318 = scmp.ne.s32.totalorder %s313, %s315
    %p319 = scmp.eq.s32.totalorder %s27, 0
    %p320 = por %p318, %p319
    %p321 = scmp.ne.s32.totalorder %s313, %s315
    %p322 = scmp.eq.s32.totalorder %s32, 1
    %p323 = por %p321, %p322
    %p324 = scmp.ne.s32.totalorder %s315, %s316
    %p325 = scmp.eq.s32.totalorder %s32, 0
    %p326 = por %p324, %p325
    %p327 = scmp.ne.s32.totalorder %s315, %s316
    %p328 = scmp.eq.s32.totalorder %s33, 1
    %p329 = por %p327, %p328
    %p331 = scmp.ne.s32.totalorder %s316, %s330
    %p332 = scmp.eq.s32.totalorder %s33, 0
    %p333 = por %p331, %p332
    %s335 = sadd.s32 %s334, 1
    %p338 = scmp.eq.s32.totalorder %s27, 1
    %p339 = scmp.ne.s32.totalorder %s334, %s336
    %p340 = scmp.eq.s32.totalorder %s27, 0
    %p341 = por %p339, %p340
    %p342 = scmp.ne.s32.totalorder %s334, %s336
    %p343 = scmp.eq.s32.totalorder %s32, 1
    %p344 = por %p342, %p343
    %p345 = scmp.ne.s32.totalorder %s336, %s337
    %p346 = scmp.eq.s32.totalorder %s32, 0
    %p347 = por %p345, %p346
    %p348 = scmp.ne.s32.totalorder %s336, %s337
    %p349 = scmp.eq.s32.totalorder %s33, 1
    %p350 = por %p348, %p349
    %p352 = scmp.ne.s32.totalorder %s337, %s351
    %p353 = scmp.eq.s32.totalorder %s33, 0
    %p354 = por %p352, %p353
    %s356 = sadd.s32 %s355, 1
    %p359 = scmp.eq.s32.totalorder %s27, 1
    %p360 = scmp.ne.s32.totalorder %s355, %s357
    %p361 = scmp.eq.s32.totalorder %s27, 0
    %p362 = por %p360, %p361
    %p363 = scmp.ne.s32.totalorder %s355, %s357
    %p364 = scmp.eq.s32.totalorder %s32, 1
    %p365 = por %p363, %p364
    %p366 = scmp.ne.s32.totalorder %s357, %s358
    %p367 = scmp.eq.s32.totalorder %s32, 0
    %p368 = por %p366, %p367
    %p369 = scmp.ne.s32.totalorder %s357, %s358
    %p370 = scmp.eq.s32.totalorder %s33, 1
    %p371 = por %p369, %p370
    %p373 = scmp.ne.s32.totalorder %s358, %s372
    %p374 = scmp.eq.s32.totalorder %s33, 0
    %p375 = por %p373, %p374
    %s377 = sadd.s32 %s376, 1
    %p380 = scmp.eq.s32.totalorder %s27, 1
    %p381 = scmp.ne.s32.totalorder %s376, %s378
    %p382 = scmp.eq.s32.totalorder %s27, 0
    %p383 = por %p381, %p382
    %p384 = scmp.ne.s32.totalorder %s376, %s378
    %p385 = scmp.eq.s32.totalorder %s32, 1
    %p386 = por %p384, %p385
    %p387 = scmp.ne.s32.totalorder %s378, %s379
    %p388 = scmp.eq.s32.totalorder %s32, 0
    %p389 = por %p387, %p388
    %p390 = scmp.ne.s32.totalorder %s378, %s379
    %p391 = scmp.eq.s32.totalorder %s33, 1
    %p392 = por %p390, %p391
    %p394 = scmp.ne.s32.totalorder %s379, %s393
    %p395 = scmp.eq.s32.totalorder %s33, 0
    %p396 = por %p394, %p395
    %s398 = sadd.s32 %s397, 1
    %p401 = scmp.eq.s32.totalorder %s27, 1
    %p402 = scmp.ne.s32.totalorder %s397, %s399
    %p403 = scmp.eq.s32.totalorder %s27, 0
    %p404 = por %p402, %p403
    %p405 = scmp.ne.s32.totalorder %s397, %s399
    %p406 = scmp.eq.s32.totalorder %s32, 1
    %p407 = por %p405, %p406
    %p408 = scmp.ne.s32.totalorder %s399, %s400
    %p409 = scmp.eq.s32.totalorder %s32, 0
    %p410 = por %p408, %p409
    %p411 = scmp.ne.s32.totalorder %s399, %s400
    %p412 = scmp.eq.s32.totalorder %s33, 1
    %p413 = por %p411, %p412
    %p415 = scmp.ne.s32.totalorder %s400, %s414
    %p416 = scmp.eq.s32.totalorder %s33, 0
    %p417 = por %p415, %p416
    %s419 = sadd.s32 %s418, 1
    %p422 = scmp.eq.s32.totalorder %s27, 1
    %p423 = scmp.ne.s32.totalorder %s418, %s420
    %p424 = scmp.eq.s32.totalorder %s27, 0
    %p425 = por %p423, %p424
    %p426 = scmp.ne.s32.totalorder %s418, %s420
    %p427 = scmp.eq.s32.totalorder %s32, 1
    %p428 = por %p426, %p427
    %p429 = scmp.ne.s32.totalorder %s420, %s421
    %p430 = scmp.eq.s32.totalorder %s32, 0
    %p431 = por %p429, %p430
    %p432 = scmp.ne.s32.totalorder %s420, %s421
    %p433 = scmp.eq.s32.totalorder %s33, 1
    %p434 = por %p432, %p433
    %p436 = scmp.ne.s32.totalorder %s421, %s435
    %p437 = scmp.eq.s32.totalorder %s33, 0
    %p438 = por %p436, %p437
    %s440 = sadd.s32 %s439, 1
    %p443 = scmp.eq.s32.totalorder %s27, 1
    %p444 = scmp.ne.s32.totalorder %s439, %s441
    %p445 = scmp.eq.s32.totalorder %s27, 0
    %p446 = por %p444, %p445
    %p447 = scmp.ne.s32.totalorder %s439, %s441
    %p448 = scmp.eq.s32.totalorder %s32, 1
    %p449 = por %p447, %p448
    %p450 = scmp.ne.s32.totalorder %s441, %s442
    %p451 = scmp.eq.s32.totalorder %s32, 0
    %p452 = por %p450, %p451
    %p453 = scmp.ne.s32.totalorder %s441, %s442
    %p454 = scmp.eq.s32.totalorder %s33, 1
    %p455 = por %p453, %p454
    %p457 = scmp.ne.s32.totalorder %s442, %s456
    %p458 = scmp.eq.s32.totalorder %s33, 0
    %p459 = por %p457, %p458
    %s461 = sadd.s32 %s460, 1
    %p464 = scmp.eq.s32.totalorder %s27, 1
    %p465 = scmp.ne.s32.totalorder %s460, %s462
    %p466 = scmp.eq.s32.totalorder %s27, 0
    %p467 = por %p465, %p466
    %p468 = scmp.ne.s32.totalorder %s460, %s462
    %p469 = scmp.eq.s32.totalorder %s32, 1
    %p470 = por %p468, %p469
    %p471 = scmp.ne.s32.totalorder %s462, %s463
    %p472 = scmp.eq.s32.totalorder %s32, 0
    %p473 = por %p471, %p472
    %p474 = scmp.ne.s32.totalorder %s462, %s463
    %p475 = scmp.eq.s32.totalorder %s33, 1
    %p476 = por %p474, %p475
    %p478 = scmp.ne.s32.totalorder %s463, %s477
    %p479 = scmp.eq.s32.totalorder %s33, 0
    %p480 = por %p478, %p479
    %s481 = ssub.s32 %s27, %s34
    %p482 = scmp.eq.s32.totalorder %s481, 0
    %s484 = sadd.s32 %s483, 1
    %s485 = scalar_select %p482, %s483, %s484
    %p488 = pneg %p482
    %p489 = scmp.eq.s32.totalorder %s27, 1
    %p490 = por %p488, %p489
    %p491 = scmp.ne.s32.totalorder %s483, %s486
    %p492 = scmp.eq.s32.totalorder %s27, 0
    %p493 = por %p491, %p492
    %p494 = scmp.ne.s32.totalorder %s483, %s486
    %p495 = scmp.eq.s32.totalorder %s32, 1
    %p496 = por %p494, %p495
    %p497 = scmp.ne.s32.totalorder %s486, %s487
    %p498 = scmp.eq.s32.totalorder %s32, 0
    %p499 = por %p497, %p498
    %p500 = scmp.ne.s32.totalorder %s486, %s487
    %p501 = scmp.eq.s32.totalorder %s33, 1
    %p502 = por %p500, %p501
    %p504 = scmp.ne.s32.totalorder %s487, %s503
    %p505 = scmp.eq.s32.totalorder %s33, 0
    %p506 = por %p504, %p505
    %p507 = scmp.le.s32.totalorder 1, %s27
    %p508 = scmp.lt.s32.totalorder %s27, 3
    %p509 = pnand %p507, %p508
    %p510 = pneg %p509
    // Predicated region
    $region9: #{spatial_only_resnet18_forward.1} parent=5 // pred_check
      _
    $region10: #{spatial_only_resnet18_forward.1} parent=5 // pred_check_branch
      %512 = sbr.rel (%p509) target = $region12
    $region11: #{spatial_only_resnet18_forward.1} parent=5 // pred_region
      %s513 = ssub.s32 %s27, 1
      // Predicated region
      $region13: #{spatial_only_resnet18_forward.1} parent=11 // pred_check
        %p514 = pneg %p74
      $region14: #{spatial_only_resnet18_forward.1} parent=11 // pred_check_branch
        %516 = sbr.rel (%p514) target = $region16
      $region15: #{spatial_only_resnet18_forward.1} parent=11 // pred_region
        _
      $region16: #{spatial_only_resnet18_forward.1} parent=11 // pred_fallthru
        _
      // Predicated region
      $region17: #{spatial_only_resnet18_forward.1} parent=11 // pred_check
        %p517 = pneg %p95
      $region18: #{spatial_only_resnet18_forward.1} parent=11 // pred_check_branch
        %519 = sbr.rel (%p517) target = $region20
      $region19: #{spatial_only_resnet18_forward.1} parent=11 // pred_region
        _
      $region20: #{spatial_only_resnet18_forward.1} parent=11 // pred_fallthru
        _
      // Predicated region
      $region21: #{spatial_only_resnet18_forward.1} parent=11 // pred_check
        %p520 = pneg %p116
      $region22: #{spatial_only_resnet18_forward.1} parent=11 // pred_check_branch
        %522 = sbr.rel (%p520) target = $region24
      $region23: #{spatial_only_resnet18_forward.1} parent=11 // pred_region
        _
      $region24: #{spatial_only_resnet18_forward.1} parent=11 // pred_fallthru
        _
      // Predicated region
      $region25: #{spatial_only_resnet18_forward.1} parent=11 // pred_check
        %p523 = pneg %p137
      $region26: #{spatial_only_resnet18_forward.1} parent=11 // pred_check_branch
        %525 = sbr.rel (%p523) target = $region28
      $region27: #{spatial_only_resnet18_forward.1} parent=11 // pred_region
        _
      $region28: #{spatial_only_resnet18_forward.1} parent=11 // pred_fallthru
        _
      // Predicated region
      $region29: #{spatial_only_resnet18_forward.1} parent=11 // pred_check
        %p526 = pneg %p158
      $region30: #{spatial_only_resnet18_forward.1} parent=11 // pred_check_branch
        %528 = sbr.rel (%p526) target = $region32
      $region31: #{spatial_only_resnet18_forward.1} parent=11 // pred_region
        _
      $region32: #{spatial_only_resnet18_forward.1} parent=11 // pred_fallthru
        _
      // Predicated region
      $region33: #{spatial_only_resnet18_forward.1} parent=11 // pred_check
        %p529 = pneg %p179
      $region34: #{spatial_only_resnet18_forward.1} parent=11 // pred_check_branch
        %531 = sbr.rel (%p529) target = $region36
      $region35: #{spatial_only_resnet18_forward.1} parent=11 // pred_region
        _
      $region36: #{spatial_only_resnet18_forward.1} parent=11 // pred_fallthru
        _
      // Predicated region
      $region37: #{spatial_only_resnet18_forward.1} parent=11 // pred_check
        %p532 = pneg %p200
      $region38: #{spatial_only_resnet18_forward.1} parent=11 // pred_check_branch
        %534 = sbr.rel (%p532) target = $region40
      $region39: #{spatial_only_resnet18_forward.1} parent=11 // pred_region
        _
      $region40: #{spatial_only_resnet18_forward.1} parent=11 // pred_fallthru
        _
      // Predicated region
      $region41: #{spatial_only_resnet18_forward.1} parent=11 // pred_check
        %p535 = pneg %p221
      $region42: #{spatial_only_resnet18_forward.1} parent=11 // pred_check_branch
        %537 = sbr.rel (%p535) target = $region44
      $region43: #{spatial_only_resnet18_forward.1} parent=11 // pred_region
        _
      $region44: #{spatial_only_resnet18_forward.1} parent=11 // pred_fallthru
        _
      // Predicated region
      $region45: #{spatial_only_resnet18_forward.1} parent=11 // pred_check
        %p538 = pneg %p242
      $region46: #{spatial_only_resnet18_forward.1} parent=11 // pred_check_branch
        %540 = sbr.rel (%p538) target = $region48
      $region47: #{spatial_only_resnet18_forward.1} parent=11 // pred_region
        _
      $region48: #{spatial_only_resnet18_forward.1} parent=11 // pred_fallthru
        _
      // Predicated region
      $region49: #{spatial_only_resnet18_forward.1} parent=11 // pred_check
        %p541 = pneg %p263
      $region50: #{spatial_only_resnet18_forward.1} parent=11 // pred_check_branch
        %543 = sbr.rel (%p541) target = $region52
      $region51: #{spatial_only_resnet18_forward.1} parent=11 // pred_region
        _
      $region52: #{spatial_only_resnet18_forward.1} parent=11 // pred_fallthru
        _
      // Predicated region
      $region53: #{spatial_only_resnet18_forward.1} parent=11 // pred_check
        %p544 = pneg %p284
      $region54: #{spatial_only_resnet18_forward.1} parent=11 // pred_check_branch
        %546 = sbr.rel (%p544) target = $region56
      $region55: #{spatial_only_resnet18_forward.1} parent=11 // pred_region
        _
      $region56: #{spatial_only_resnet18_forward.1} parent=11 // pred_fallthru
        _
      // Predicated region
      $region57: #{spatial_only_resnet18_forward.1} parent=11 // pred_check
        %p547 = pneg %p305
      $region58: #{spatial_only_resnet18_forward.1} parent=11 // pred_check_branch
        %549 = sbr.rel (%p547) target = $region60
      $region59: #{spatial_only_resnet18_forward.1} parent=11 // pred_region
        _
      $region60: #{spatial_only_resnet18_forward.1} parent=11 // pred_fallthru
        _
      // Predicated region
      $region61: #{spatial_only_resnet18_forward.1} parent=11 // pred_check
        %p550 = pneg %p326
      $region62: #{spatial_only_resnet18_forward.1} parent=11 // pred_check_branch
        %552 = sbr.rel (%p550) target = $region64
      $region63: #{spatial_only_resnet18_forward.1} parent=11 // pred_region
        _
      $region64: #{spatial_only_resnet18_forward.1} parent=11 // pred_fallthru
        _
      // Predicated region
      $region65: #{spatial_only_resnet18_forward.1} parent=11 // pred_check
        %p553 = pneg %p347
      $region66: #{spatial_only_resnet18_forward.1} parent=11 // pred_check_branch
        %555 = sbr.rel (%p553) target = $region68
      $region67: #{spatial_only_resnet18_forward.1} parent=11 // pred_region
        _
      $region68: #{spatial_only_resnet18_forward.1} parent=11 // pred_fallthru
        _
      // Predicated region
      $region69: #{spatial_only_resnet18_forward.1} parent=11 // pred_check
        %p556 = pneg %p368
      $region70: #{spatial_only_resnet18_forward.1} parent=11 // pred_check_branch
        %558 = sbr.rel (%p556) target = $region72
      $region71: #{spatial_only_resnet18_forward.1} parent=11 // pred_region
        _
      $region72: #{spatial_only_resnet18_forward.1} parent=11 // pred_fallthru
        _
      // Predicated region
      $region73: #{spatial_only_resnet18_forward.1} parent=11 // pred_check
        %p559 = pneg %p389
      $region74: #{spatial_only_resnet18_forward.1} parent=11 // pred_check_branch
        %561 = sbr.rel (%p559) target = $region76
      $region75: #{spatial_only_resnet18_forward.1} parent=11 // pred_region
        _
      $region76: #{spatial_only_resnet18_forward.1} parent=11 // pred_fallthru
        _
      // Predicated region
      $region77: #{spatial_only_resnet18_forward.1} parent=11 // pred_check
        %p562 = pneg %p410
      $region78: #{spatial_only_resnet18_forward.1} parent=11 // pred_check_branch
        %564 = sbr.rel (%p562) target = $region80
      $region79: #{spatial_only_resnet18_forward.1} parent=11 // pred_region
        _
      $region80: #{spatial_only_resnet18_forward.1} parent=11 // pred_fallthru
        _
      // Predicated region
      $region81: #{spatial_only_resnet18_forward.1} parent=11 // pred_check
        %p565 = pneg %p431
      $region82: #{spatial_only_resnet18_forward.1} parent=11 // pred_check_branch
        %567 = sbr.rel (%p565) target = $region84
      $region83: #{spatial_only_resnet18_forward.1} parent=11 // pred_region
        _
      $region84: #{spatial_only_resnet18_forward.1} parent=11 // pred_fallthru
        _
      // Predicated region
      $region85: #{spatial_only_resnet18_forward.1} parent=11 // pred_check
        %p568 = pneg %p452
      $region86: #{spatial_only_resnet18_forward.1} parent=11 // pred_check_branch
        %570 = sbr.rel (%p568) target = $region88
      $region87: #{spatial_only_resnet18_forward.1} parent=11 // pred_region
        _
      $region88: #{spatial_only_resnet18_forward.1} parent=11 // pred_fallthru
        _
      // Predicated region
      $region89: #{spatial_only_resnet18_forward.1} parent=11 // pred_check
        %p571 = pneg %p473
      $region90: #{spatial_only_resnet18_forward.1} parent=11 // pred_check_branch
        %573 = sbr.rel (%p571) target = $region92
      $region91: #{spatial_only_resnet18_forward.1} parent=11 // pred_region
        _
      $region92: #{spatial_only_resnet18_forward.1} parent=11 // pred_fallthru
        _
    $region12: #{spatial_only_resnet18_forward.1} parent=5 // pred_fallthru
      _
    %p574 = scmp.lt.s32.totalorder %s27, 2
    // Predicated region
    $region93: #{spatial_only_resnet18_forward.1} parent=5 // pred_check
      %p575 = pneg %p574
    $region94: #{spatial_only_resnet18_forward.1} parent=5 // pred_check_branch
      %577 = sbr.rel (%p575) target = $region96
    $region95: #{spatial_only_resnet18_forward.1} parent=5 // pred_region
      // Predicated region
      $region97: #{spatial_only_resnet18_forward.1} parent=95 // pred_check
        %p578 = pneg %p47
      $region98: #{spatial_only_resnet18_forward.1} parent=95 // pred_check_branch
        %580 = sbr.rel (%p578) target = $region100
      $region99: #{spatial_only_resnet18_forward.1} parent=95 // pred_region
        %p581 = scmp.lt.s32.totalorder %s27, 1
        %s582 = scalar_select %p581, %s27, 1
        %s583 = smul.addr %s582, 26
        %s584 = smul.addr %s583, 4
        %s585 = scalar_lea.vmem %s0, %s584
      $region100: #{spatial_only_resnet18_forward.1} parent=95 // pred_fallthru
        _
    $region96: #{spatial_only_resnet18_forward.1} parent=5 // pred_fallthru
      _
    %p586 = scmp.le.s32.totalorder 1, %s27
    %p587 = scmp.lt.s32.totalorder %s27, 3
    %p588 = pnand %p586, %p587
    %p589 = pneg %p588
    // Predicated region
    $region101: #{spatial_only_resnet18_forward.1} parent=5 // pred_check
      _
    $region102: #{spatial_only_resnet18_forward.1} parent=5 // pred_check_branch
      %591 = sbr.rel (%p588) target = $region104
    $region103: #{spatial_only_resnet18_forward.1} parent=5 // pred_region
      %s592 = ssub.s32 %s27, 1
      %p593 = scmp.lt.s32.totalorder %s32, 1
      %s594 = scalar_select %p593, %s32, 1
      %s595 = smul.addr %s594, 26
      %s596 = smul.addr %s595, 4
      %s597 = scalar_lea.vmem %s0, %s596
      %p598 = pneg %p53
      %p599 = pneg %p50
      %p600 = pneg %p74
      %p601 = pneg %p71
      %p602 = pneg %p95
      %p603 = pneg %p92
      %p604 = pneg %p116
      %p605 = pneg %p113
      %p606 = pneg %p137
      %p607 = pneg %p134
      %p608 = pneg %p158
      %p609 = pneg %p155
      %p610 = pneg %p179
      %p611 = pneg %p176
      %p612 = pneg %p200
      %p613 = pneg %p197
      %p614 = pneg %p221
      %p615 = pneg %p218
      %p616 = pneg %p242
      %p617 = pneg %p239
      %p618 = pneg %p263
      %p619 = pneg %p260
      %p620 = pneg %p284
      %p621 = pneg %p281
      %p622 = pneg %p305
      %p623 = pneg %p302
      %p624 = pneg %p326
      %p625 = pneg %p323
      %p626 = pneg %p347
      %p627 = pneg %p344
      %p628 = pneg %p368
      %p629 = pneg %p365
      %p630 = pneg %p389
      %p631 = pneg %p386
      %p632 = pneg %p410
      %p633 = pneg %p407
      %p634 = pneg %p431
      %p635 = pneg %p428
      %p636 = pneg %p452
      %p637 = pneg %p449
      %p638 = pneg %p473
      %p639 = pneg %p470
      %p640 = pneg %p499
      %p641 = pneg %p496
      %p642 = scmp.lt.s32.totalorder %s32, 1
      %s643 = scalar_select %p642, %s32, 1
      %s644 = scalar_lea.vmem %s21, %s643
      %p645 = scmp.lt.s32.totalorder %s32, 1
      %s646 = scalar_select %p645, %s32, 1
      %s647 = smul.addr %s646, 26
      %s648 = smul.addr %s647, 4
      %s649 = scalar_lea.vmem %s0, %s648
      %p650 = scmp.lt.s32.totalorder %s32, 1
      %s651 = scalar_select %p650, %s32, 1
      %s652 = scalar_lea.vmem %s21, %s651
      %654 = vst [vmem:[#allocation2] sm:$0xf] 0
      %655 = vst [vmem:[#allocation2 + $0x4] sm:$0xf] 0
      %656 = vst [vmem:[#allocation2 + $0x8] sm:$0xf] 0
      %657 = vst [vmem:[#allocation2 + $0xc] sm:$0xf] 0
      %658 = vst [vmem:[#allocation2 + $0x10] sm:$0xf] 0
      %659 = vst [vmem:[#allocation2 + $0x14] sm:$0xf] 0
      %660 = vst [vmem:[#allocation2 + $0x18] sm:$0xf] 0
      %661 = vst [vmem:[#allocation2 + $0x1c] sm:$0xf] 0
      %662 = vst [vmem:[#allocation2 + $0x20] sm:$0x3] 0
      %v663 = vld [vmem:[%s649] sm:$0xff]
      %v664 = vld [vmem:[%s649 + $0x8] sm:$0xff]
      %v665 = vld [vmem:[%s649 + $0x10] sm:$0xff]
      %v666 = vld [vmem:[%s649 + $0x18] sm:$0xff]
      %v667 = vld [vmem:[%s649 + $0x20] sm:$0xff]
      %v668 = vld [vmem:[%s649 + $0x28] sm:$0xff]
      %v669 = vld [vmem:[%s649 + $0x30] sm:$0xff]
      %v670 = vld [vmem:[%s649 + $0x38] sm:$0xff]
      %v671 = vld [vmem:[%s649 + $0x40] sm:$0xff]
      %v672 = vld [vmem:[%s649 + $0x48] sm:$0xff]
      %v673 = vld [vmem:[%s649 + $0x50] sm:$0xff]
      %v674 = vld [vmem:[%s649 + $0x58] sm:$0xff]
      %v675 = vld [vmem:[%s649 + $0x60] sm:$0x33]
      %v676 = vld [vmem:[%s1] sm:$0xf]
      %v677 = vld [vmem:[%s1 + $0x4] sm:$0xf]
      %v678 = vld [vmem:[%s1 + $0x8] sm:$0xf]
      %v679 = vld [vmem:[%s1 + $0xc] sm:$0xf]
      %v680 = vld [vmem:[%s1 + $0x10] sm:$0xf]
      %v681 = vld [vmem:[%s1 + $0x14] sm:$0xf]
      %v682 = vld [vmem:[%s1 + $0x18] sm:$0xf]
      %v683 = vld [vmem:[%s1 + $0x1c] sm:$0xf]
      %v684 = vld [vmem:[%s1 + $0x20] sm:$0xf]
      %v685 = vld [vmem:[%s1 + $0x24] sm:$0xf]
      %v686 = vld [vmem:[%s1 + $0x28] sm:$0xf]
      %v687 = vld [vmem:[%s1 + $0x2c] sm:$0xf]
      %v688 = vld [vmem:[%s1 + $0x30] sm:$0xf]
      %v689 = vld [vmem:[%s1 + $0x34] sm:$0xf]
      %v690 = vld [vmem:[%s1 + $0x38] sm:$0xf]
      %v691 = vld [vmem:[%s1 + $0x3c] sm:$0xf]
      %v692 = vld [vmem:[%s1 + $0x40] sm:$0xf]
      %v693 = vld [vmem:[%s1 + $0x44] sm:$0xf]
      %v694 = vld [vmem:[%s1 + $0x48] sm:$0xf]
      %v695 = vld [vmem:[%s1 + $0x4c] sm:$0xf]
      %v696 = vld [vmem:[%s1 + $0x50] sm:$0xf]
      %v697 = vld [vmem:[%s1 + $0x54] sm:$0xf]
      %v698 = vld [vmem:[%s1 + $0x58] sm:$0xf]
      %v699 = vld [vmem:[%s1 + $0x5c] sm:$0xf]
      %v700 = vld [vmem:[%s1 + $0x60] sm:$0xf]
      %v701 = vld [vmem:[%s1 + $0x64] sm:$0xf]
      %v702 = vld [vmem:[%s1 + $0x68] sm:$0xf]
      %v703 = vld [vmem:[%s1 + $0x6c] sm:$0xf]
      %v704 = vld [vmem:[%s1 + $0x70] sm:$0xf]
      %v705 = vld [vmem:[%s1 + $0x74] sm:$0xf]
      %v706 = vld [vmem:[%s1 + $0x78] sm:$0xf]
      %v707 = vld [vmem:[%s1 + $0x7c] sm:$0xf]
      %v708 = vld [vmem:[%s2] sm:$0x1]
      %v710 = vperm.slane %v708, 0
      %v725 = vunpack.c.l.b16 %v663
      %v726 = vunpack.c.h.b16 %v663
      %v727 = vunpack.c.l.b16 %v664
      %v728 = vunpack.c.h.b16 %v664
      %v729 = vunpack.c.l.b16 %v665
      %v730 = vunpack.c.h.b16 %v665
      %v731 = vunpack.c.l.b16 %v666
      %v732 = vunpack.c.h.b16 %v666
      %v733 = vunpack.c.l.b16 %v667
      %v734 = vunpack.c.h.b16 %v667
      %v735 = vunpack.c.l.b16 %v668
      %v736 = vunpack.c.h.b16 %v668
      %v737 = vunpack.c.l.b16 %v669
      %v738 = vunpack.c.h.b16 %v669
      %v739 = vunpack.c.l.b16 %v670
      %v740 = vunpack.c.h.b16 %v670
      %v741 = vunpack.c.l.b16 %v671
      %v742 = vunpack.c.h.b16 %v671
      %v743 = vunpack.c.l.b16 %v672
      %v744 = vunpack.c.h.b16 %v672
      %v745 = vunpack.c.l.b16 %v673
      %v746 = vunpack.c.h.b16 %v673
      %v747 = vunpack.c.l.b16 %v674
      %v748 = vunpack.c.h.b16 %v674
      %v749 = vunpack.c.l.b16 %v675
      %v750 = vunpack.c.h.b16 %v675
      %v751 = vpack.c.b16 %v727, %v725
      %v752 = vpack.c.b16 %v728, %v726
      %v753 = vpack.c.b16 %v731, %v729
      %v754 = vpack.c.b16 %v732, %v730
      %v755 = vpack.c.b16 %v735, %v733
      %v756 = vpack.c.b16 %v736, %v734
      %v757 = vpack.c.b16 %v739, %v737
      %v758 = vpack.c.b16 %v740, %v738
      %v759 = vpack.c.b16 %v743, %v741
      %v760 = vpack.c.b16 %v744, %v742
      %v761 = vpack.c.b16 %v747, %v745
      %v762 = vpack.c.b16 %v748, %v746
      %v763 = vpack.c.b16 %v749, %v749
      %v764 = vpack.c.b16 %v750, %v750
      %v811 = vunpack.c.l.b16 %v676
      %v812 = vunpack.c.l.b16 %v677
      %v813 = vunpack.c.l.b16 %v678
      %v814 = vunpack.c.l.b16 %v679
      %v815 = vunpack.c.l.b16 %v680
      %v816 = vunpack.c.l.b16 %v681
      %v817 = vunpack.c.l.b16 %v682
      %v818 = vunpack.c.l.b16 %v683
      %v819 = vunpack.c.l.b16 %v684
      %v820 = vunpack.c.l.b16 %v685
      %v821 = vunpack.c.l.b16 %v686
      %v822 = vunpack.c.l.b16 %v687
      %v823 = vunpack.c.l.b16 %v688
      %v824 = vunpack.c.l.b16 %v689
      %v825 = vunpack.c.l.b16 %v690
      %v826 = vunpack.c.l.b16 %v691
      %v827 = vunpack.c.l.b16 %v692
      %v828 = vunpack.c.l.b16 %v693
      %v829 = vunpack.c.l.b16 %v694
      %v830 = vunpack.c.l.b16 %v695
      %v831 = vunpack.c.l.b16 %v696
      %v832 = vunpack.c.l.b16 %v697
      %v833 = vunpack.c.l.b16 %v698
      %v834 = vunpack.c.l.b16 %v699
      %v835 = vunpack.c.l.b16 %v700
      %v836 = vunpack.c.l.b16 %v701
      %v837 = vunpack.c.l.b16 %v702
      %v838 = vunpack.c.l.b16 %v703
      %v839 = vunpack.c.l.b16 %v704
      %v840 = vunpack.c.l.b16 %v705
      %v841 = vunpack.c.l.b16 %v706
      %v842 = vunpack.c.l.b16 %v707
      %v843 = vpack.c.b16 %v812, %v811
      %v844 = vpack.c.b16 %v814, %v813
      %v845 = vpack.c.b16 %v816, %v815
      %v846 = vpack.c.b16 %v818, %v817
      %v847 = vpack.c.b16 %v820, %v819
      %v848 = vpack.c.b16 %v822, %v821
      %v849 = vpack.c.b16 %v824, %v823
      %v850 = vpack.c.b16 %v826, %v825
      %v851 = vpack.c.b16 %v828, %v827
      %v852 = vpack.c.b16 %v830, %v829
      %v853 = vpack.c.b16 %v832, %v831
      %v854 = vpack.c.b16 %v834, %v833
      %v855 = vpack.c.b16 %v836, %v835
      %v856 = vpack.c.b16 %v838, %v837
      %v857 = vpack.c.b16 %v840, %v839
      %v858 = vpack.c.b16 %v842, %v841
      %875 = vmatpush.bf16.msra.mxu0 %v850
      %876 = vmatpush.bf16.msra.mxu0 %v849
      %877 = vmatpush.bf16.msra.mxu0 %v848
      %878 = vmatpush.bf16.msra.mxu0 %v847
      %879 = vmatpush.bf16.msra.mxu0 %v846
      %880 = vmatpush.bf16.msra.mxu0 %v845
      %881 = vmatpush.bf16.msra.mxu0 %v844
      %882 = vmatpush.bf16.msra.mxu0 %v843
      %883 = vmatmul.bf16.gmra.mxu0 %v751
      %v884 = vpop.f32.mrf.mxu0
      %v885 = vadd.f32 %v710, %v884
      %v886 = vpop.f32.mrf.mxu0
      %v887 = vadd.f32 %v710, %v886
      %888 = vmatmul.bf16.gmra.mxu0 %v753
      %v889 = vpop.f32.mrf.mxu0
      %v890 = vadd.f32 %v710, %v889
      %v891 = vpop.f32.mrf.mxu0
      %v892 = vadd.f32 %v710, %v891
      %893 = vmatmul.bf16.gmra.mxu0 %v755
      %v894 = vpop.f32.mrf.mxu0
      %v895 = vadd.f32 %v710, %v894
      %v896 = vpop.f32.mrf.mxu0
      %v897 = vadd.f32 %v710, %v896
      %898 = vmatmul.bf16.gmra.mxu0 %v757
      %v899 = vpop.f32.mrf.mxu0
      %v900 = vadd.f32 %v710, %v899
      %v901 = vpop.f32.mrf.mxu0
      %v902 = vadd.f32 %v710, %v901
      %903 = vmatmul.bf16.gmra.mxu0 %v759
      %v904 = vpop.f32.mrf.mxu0
      %v905 = vadd.f32 %v710, %v904
      %v906 = vpop.f32.mrf.mxu0
      %v907 = vadd.f32 %v710, %v906
      %908 = vmatmul.bf16.gmra.mxu0 %v761
      %v909 = vpop.f32.mrf.mxu0
      %v910 = vadd.f32 %v710, %v909
      %v911 = vpop.f32.mrf.mxu0
      %v912 = vadd.f32 %v710, %v911
      %913 = vmatmul.bf16.gmra.mxu0 %v763
      %v914 = vpop.f32.mrf.mxu0
      %v915 = vadd.f32 %v710, %v914
      %v916 = vpop.f32.mrf.mxu0
      %917 = vdwg.mxu0
      %918 = vmatpush.bf16.msra.mxu0 %v858
      %919 = vmatpush.bf16.msra.mxu0 %v857
      %920 = vmatpush.bf16.msra.mxu0 %v856
      %921 = vmatpush.bf16.msra.mxu0 %v855
      %922 = vmatpush.bf16.msra.mxu0 %v854
      %923 = vmatpush.bf16.msra.mxu0 %v853
      %924 = vmatpush.bf16.msra.mxu0 %v852
      %925 = vmatpush.bf16.msra.mxu0 %v851
      %926 = vmatmul.bf16.gmra.mxu0 %v752
      %v927 = vpop.f32.mrf.mxu0
      %v928 = vadd.f32 %v885, %v927
      %v929 = vpop.f32.mrf.mxu0
      %v930 = vadd.f32 %v887, %v929
      %931 = vmatmul.bf16.gmra.mxu0 %v754
      %v932 = vpop.f32.mrf.mxu0
      %v933 = vadd.f32 %v890, %v932
      %v934 = vpop.f32.mrf.mxu0
      %v935 = vadd.f32 %v892, %v934
      %936 = vmatmul.bf16.gmra.mxu0 %v756
      %v937 = vpop.f32.mrf.mxu0
      %v938 = vadd.f32 %v895, %v937
      %v939 = vpop.f32.mrf.mxu0
      %v940 = vadd.f32 %v897, %v939
      %941 = vmatmul.bf16.gmra.mxu0 %v758
      %v942 = vpop.f32.mrf.mxu0
      %v943 = vadd.f32 %v900, %v942
      %v944 = vpop.f32.mrf.mxu0
      %v945 = vadd.f32 %v902, %v944
      %946 = vmatmul.bf16.gmra.mxu0 %v760
      %v947 = vpop.f32.mrf.mxu0
      %v948 = vadd.f32 %v905, %v947
      %v949 = vpop.f32.mrf.mxu0
      %v950 = vadd.f32 %v907, %v949
      %951 = vmatmul.bf16.gmra.mxu0 %v762
      %v952 = vpop.f32.mrf.mxu0
      %v953 = vadd.f32 %v910, %v952
      %v954 = vpop.f32.mrf.mxu0
      %v955 = vadd.f32 %v912, %v954
      %956 = vmatmul.bf16.gmra.mxu0 %v764
      %v957 = vpop.f32.mrf.mxu0
      %v958 = vadd.f32 %v915, %v957
      %v959 = vpop.f32.mrf.mxu0
      %960 = vdwg.mxu0
      %v961 = vmax.f32 %v928, 0.0
      %v962 = vmax.f32 %v930, 0.0
      %v963 = vmax.f32 %v933, 0.0
      %v964 = vmax.f32 %v935, 0.0
      %v965 = vmax.f32 %v938, 0.0
      %v966 = vmax.f32 %v940, 0.0
      %v967 = vmax.f32 %v943, 0.0
      %v968 = vmax.f32 %v945, 0.0
      %v969 = vmax.f32 %v948, 0.0
      %v970 = vmax.f32 %v950, 0.0
      %v971 = vmax.f32 %v953, 0.0
      %v972 = vmax.f32 %v955, 0.0
      %v973 = vmax.f32 %v958, 0.0
      %v974 = vld [vmem:[%s3] sm:$0xff]
      %v975 = vld [vmem:[%s3 + $0x8] sm:$0xff]
      %v976 = vld [vmem:[%s3 + $0x10] sm:$0xff]
      %v977 = vld [vmem:[%s3 + $0x18] sm:$0xff]
      %v978 = vld [vmem:[%s3 + $0x20] sm:$0xff]
      %v979 = vld [vmem:[%s3 + $0x28] sm:$0xff]
      %v980 = vld [vmem:[%s3 + $0x30] sm:$0xff]
      %v981 = vld [vmem:[%s3 + $0x38] sm:$0xff]
      %v982 = vld [vmem:[%s3 + $0x40] sm:$0xff]
      %v983 = vld [vmem:[%s3 + $0x48] sm:$0xff]
      %v984 = vld [vmem:[%s3 + $0x50] sm:$0xff]
      %v985 = vld [vmem:[%s3 + $0x58] sm:$0xff]
      %v986 = vld [vmem:[%s3 + $0x60] sm:$0xf]
      %vm987 = vcmp.gt.f32.partialorder %v974, 0.5
      %vm988 = vcmp.gt.f32.partialorder %v975, 0.5
      %vm989 = vcmp.gt.f32.partialorder %v976, 0.5
      %vm990 = vcmp.gt.f32.partialorder %v977, 0.5
      %vm991 = vcmp.gt.f32.partialorder %v978, 0.5
      %vm992 = vcmp.gt.f32.partialorder %v979, 0.5
      %vm993 = vcmp.gt.f32.partialorder %v980, 0.5
      %vm994 = vcmp.gt.f32.partialorder %v981, 0.5
      %vm995 = vcmp.gt.f32.partialorder %v982, 0.5
      %vm996 = vcmp.gt.f32.partialorder %v983, 0.5
      %vm997 = vcmp.gt.f32.partialorder %v984, 0.5
      %vm998 = vcmp.gt.f32.partialorder %v985, 0.5
      %vm999 = vcmp.gt.f32.partialorder %v986, 0.5
      %v1000 = vsel %vm987, 1, 0
      %v1001 = vsel %vm988, 1, 0
      %v1002 = vsel %vm989, 1, 0
      %v1003 = vsel %vm990, 1, 0
      %v1004 = vsel %vm991, 1, 0
      %v1005 = vsel %vm992, 1, 0
      %v1006 = vsel %vm993, 1, 0
      %v1007 = vsel %vm994, 1, 0
      %v1008 = vsel %vm995, 1, 0
      %v1009 = vsel %vm996, 1, 0
      %v1010 = vsel %vm997, 1, 0
      %v1011 = vsel %vm998, 1, 0
      %v1012 = vsel %vm999, 1, 0
      %1013 = vset.pattern.permute.xlu0 0
      %1014 = vperm.xlu0 %1013, %v1000
      %v1015 = vpop.permute.xlu0 %1014
      %1016 = vset.pattern.permute.xlu0 0
      %1017 = vperm.xlu0 %1016, %v1001
      %v1018 = vpop.permute.xlu0 %1017
      %1019 = vset.pattern.permute.xlu0 0
      %1020 = vperm.xlu0 %1019, %v1002
      %v1021 = vpop.permute.xlu0 %1020
      %1022 = vset.pattern.permute.xlu0 0
      %1023 = vperm.xlu0 %1022, %v1003
      %v1024 = vpop.permute.xlu0 %1023
      %1025 = vset.pattern.permute.xlu0 0
      %1026 = vperm.xlu0 %1025, %v1004
      %v1027 = vpop.permute.xlu0 %1026
      %1028 = vset.pattern.permute.xlu0 0
      %1029 = vperm.xlu0 %1028, %v1005
      %v1030 = vpop.permute.xlu0 %1029
      %1031 = vset.pattern.permute.xlu0 0
      %1032 = vperm.xlu0 %1031, %v1006
      %v1033 = vpop.permute.xlu0 %1032
      %1034 = vset.pattern.permute.xlu0 0
      %1035 = vperm.xlu0 %1034, %v1007
      %v1036 = vpop.permute.xlu0 %1035
      %1037 = vset.pattern.permute.xlu0 0
      %1038 = vperm.xlu0 %1037, %v1008
      %v1039 = vpop.permute.xlu0 %1038
      %1040 = vset.pattern.permute.xlu0 0
      %1041 = vperm.xlu0 %1040, %v1009
      %v1042 = vpop.permute.xlu0 %1041
      %1043 = vset.pattern.permute.xlu0 0
      %1044 = vperm.xlu0 %1043, %v1010
      %v1045 = vpop.permute.xlu0 %1044
      %1046 = vset.pattern.permute.xlu0 0
      %1047 = vperm.xlu0 %1046, %v1011
      %v1048 = vpop.permute.xlu0 %1047
      %1049 = vset.pattern.permute.xlu0 0
      %1050 = vperm.xlu0 %1049, %v1012
      %v1051 = vpop.permute.xlu0 %1050
      %vm1052 = vcmp.eq.s32.totalorder %v1015, 1
      %vm1053 = vcmp.eq.s32.totalorder %v1018, 1
      %vm1054 = vcmp.eq.s32.totalorder %v1021, 1
      %vm1055 = vcmp.eq.s32.totalorder %v1024, 1
      %vm1056 = vcmp.eq.s32.totalorder %v1027, 1
      %vm1057 = vcmp.eq.s32.totalorder %v1030, 1
      %vm1058 = vcmp.eq.s32.totalorder %v1033, 1
      %vm1059 = vcmp.eq.s32.totalorder %v1036, 1
      %vm1060 = vcmp.eq.s32.totalorder %v1039, 1
      %vm1061 = vcmp.eq.s32.totalorder %v1042, 1
      %vm1062 = vcmp.eq.s32.totalorder %v1045, 1
      %vm1063 = vcmp.eq.s32.totalorder %v1048, 1
      %vm1064 = vcmp.eq.s32.totalorder %v1051, 1
      %v1065 = vsel %vm1052, %v961, 0.0
      %v1066 = vsel %vm1053, %v962, 0.0
      %v1067 = vsel %vm1054, %v963, 0.0
      %v1068 = vsel %vm1055, %v964, 0.0
      %v1069 = vsel %vm1056, %v965, 0.0
      %v1070 = vsel %vm1057, %v966, 0.0
      %v1071 = vsel %vm1058, %v967, 0.0
      %v1072 = vsel %vm1059, %v968, 0.0
      %v1073 = vsel %vm1060, %v969, 0.0
      %v1074 = vsel %vm1061, %v970, 0.0
      %v1075 = vsel %vm1062, %v971, 0.0
      %v1076 = vsel %vm1063, %v972, 0.0
      %v1077 = vsel %vm1064, %v973, 0.0
      %vm1091 = vcmask 1046528
      %v1092 = vrot.slane %v1065, 1
      %v1093 = vrot.slane %v1066, 1
      %v1094 = vsel %vm1091, %v1092, %v1093
      %v1095 = vrot.slane %v1067, 1
      %v1096 = vsel %vm1091, %v1093, %v1095
      %v1097 = vrot.slane %v1068, 1
      %v1098 = vsel %vm1091, %v1095, %v1097
      %v1099 = vrot.slane %v1069, 1
      %v1100 = vsel %vm1091, %v1097, %v1099
      %v1101 = vrot.slane %v1070, 1
      %v1102 = vsel %vm1091, %v1099, %v1101
      %v1103 = vrot.slane %v1071, 1
      %v1104 = vsel %vm1091, %v1101, %v1103
      %v1105 = vrot.slane %v1072, 1
      %v1106 = vsel %vm1091, %v1103, %v1105
      %v1107 = vrot.slane %v1073, 1
      %v1108 = vsel %vm1091, %v1105, %v1107
      %v1109 = vrot.slane %v1074, 1
      %v1110 = vsel %vm1091, %v1107, %v1109
      %v1111 = vrot.slane %v1075, 1
      %v1112 = vsel %vm1091, %v1109, %v1111
      %v1113 = vrot.slane %v1076, 1
      %v1114 = vsel %vm1091, %v1111, %v1113
      %v1115 = vrot.slane %v1077, 1
      %v1116 = vsel %vm1091, %v1113, %v1115
      %v1130 = vmax.f32 %v1065, %v1094
      %v1131 = vmax.f32 %v1066, %v1096
      %v1132 = vmax.f32 %v1067, %v1098
      %v1133 = vmax.f32 %v1068, %v1100
      %v1134 = vmax.f32 %v1069, %v1102
      %v1135 = vmax.f32 %v1070, %v1104
      %v1136 = vmax.f32 %v1071, %v1106
      %v1137 = vmax.f32 %v1072, %v1108
      %v1138 = vmax.f32 %v1073, %v1110
      %v1139 = vmax.f32 %v1074, %v1112
      %v1140 = vmax.f32 %v1075, %v1114
      %v1141 = vmax.f32 %v1076, %v1116
      %v1142 = vmax.f32 %v1077, %v1115
      %vm1143 = vcmask 1045504
      %v1144 = vrot.slane %v1065, 2
      %v1145 = vrot.slane %v1066, 2
      %v1146 = vsel %vm1143, %v1144, %v1145
      %v1147 = vrot.slane %v1067, 2
      %v1148 = vsel %vm1143, %v1145, %v1147
      %v1149 = vrot.slane %v1068, 2
      %v1150 = vsel %vm1143, %v1147, %v1149
      %v1151 = vrot.slane %v1069, 2
      %v1152 = vsel %vm1143, %v1149, %v1151
      %v1153 = vrot.slane %v1070, 2
      %v1154 = vsel %vm1143, %v1151, %v1153
      %v1155 = vrot.slane %v1071, 2
      %v1156 = vsel %vm1143, %v1153, %v1155
      %v1157 = vrot.slane %v1072, 2
      %v1158 = vsel %vm1143, %v1155, %v1157
      %v1159 = vrot.slane %v1073, 2
      %v1160 = vsel %vm1143, %v1157, %v1159
      %v1161 = vrot.slane %v1074, 2
      %v1162 = vsel %vm1143, %v1159, %v1161
      %v1163 = vrot.slane %v1075, 2
      %v1164 = vsel %vm1143, %v1161, %v1163
      %v1165 = vrot.slane %v1076, 2
      %v1166 = vsel %vm1143, %v1163, %v1165
      %v1167 = vrot.slane %v1077, 2
      %v1168 = vsel %vm1143, %v1165, %v1167
      %v1182 = vmax.f32 %v1130, %v1146
      %v1183 = vmax.f32 %v1131, %v1148
      %v1184 = vmax.f32 %v1132, %v1150
      %v1185 = vmax.f32 %v1133, %v1152
      %v1186 = vmax.f32 %v1134, %v1154
      %v1187 = vmax.f32 %v1135, %v1156
      %v1188 = vmax.f32 %v1136, %v1158
      %v1189 = vmax.f32 %v1137, %v1160
      %v1190 = vmax.f32 %v1138, %v1162
      %v1191 = vmax.f32 %v1139, %v1164
      %v1192 = vmax.f32 %v1140, %v1166
      %v1193 = vmax.f32 %v1141, %v1168
      %v1194 = vmax.f32 %v1142, %v1167
      %v1205 = vrot.slane %v1183, 2
      %v1206 = vrot.slane %v1184, 2
      %v1207 = vsel %vm1143, %v1205, %v1206
      %v1208 = vrot.slane %v1185, 2
      %v1209 = vsel %vm1143, %v1206, %v1208
      %v1210 = vrot.slane %v1186, 2
      %v1211 = vsel %vm1143, %v1208, %v1210
      %v1212 = vrot.slane %v1187, 2
      %v1213 = vsel %vm1143, %v1210, %v1212
      %v1214 = vrot.slane %v1188, 2
      %v1215 = vsel %vm1143, %v1212, %v1214
      %v1216 = vrot.slane %v1189, 2
      %v1217 = vsel %vm1143, %v1214, %v1216
      %v1218 = vrot.slane %v1190, 2
      %v1219 = vsel %vm1143, %v1216, %v1218
      %v1220 = vrot.slane %v1191, 2
      %v1221 = vsel %vm1143, %v1218, %v1220
      %v1222 = vrot.slane %v1192, 2
      %v1223 = vsel %vm1143, %v1220, %v1222
      %v1234 = vmax.f32 %v1182, %v1207
      %v1235 = vmax.f32 %v1183, %v1209
      %v1236 = vmax.f32 %v1184, %v1211
      %v1237 = vmax.f32 %v1185, %v1213
      %v1238 = vmax.f32 %v1186, %v1215
      %v1239 = vmax.f32 %v1187, %v1217
      %v1240 = vmax.f32 %v1188, %v1219
      %v1241 = vmax.f32 %v1189, %v1221
      %v1242 = vmax.f32 %v1190, %v1223
      %v1243 = vmax.f32 %v1191, %v1222
      %vm1246 = vcmask 1043456
      %v1247 = vrot.slane %v1184, 4
      %v1248 = vrot.slane %v1185, 4
      %v1249 = vsel %vm1246, %v1247, %v1248
      %v1250 = vrot.slane %v1186, 4
      %v1251 = vsel %vm1246, %v1248, %v1250
      %v1252 = vrot.slane %v1187, 4
      %v1253 = vsel %vm1246, %v1250, %v1252
      %v1254 = vrot.slane %v1188, 4
      %v1255 = vsel %vm1246, %v1252, %v1254
      %v1256 = vrot.slane %v1189, 4
      %v1257 = vsel %vm1246, %v1254, %v1256
      %v1258 = vrot.slane %v1190, 4
      %v1259 = vsel %vm1246, %v1256, %v1258
      %v1260 = vrot.slane %v1191, 4
      %v1261 = vsel %vm1246, %v1258, %v1260
      %v1262 = vrot.slane %v1192, 4
      %v1263 = vsel %vm1246, %v1260, %v1262
      %v1264 = vrot.slane %v1193, 4
      %v1265 = vsel %vm1246, %v1262, %v1264
      %v1266 = vrot.slane %v1194, 4
      %v1267 = vsel %vm1246, %v1264, %v1266
      %v1278 = vmax.f32 %v1234, %v1249
      %v1279 = vmax.f32 %v1235, %v1251
      %v1280 = vmax.f32 %v1236, %v1253
      %v1281 = vmax.f32 %v1237, %v1255
      %v1282 = vmax.f32 %v1238, %v1257
      %v1283 = vmax.f32 %v1239, %v1259
      %v1284 = vmax.f32 %v1240, %v1261
      %v1285 = vmax.f32 %v1241, %v1263
      %v1286 = vmax.f32 %v1242, %v1265
      %v1287 = vmax.f32 %v1243, %v1267
      %v1288 = vld [vmem:[%s4] sm:$0xff]
      %v1289 = vld [vmem:[%s4 + $0x8] sm:$0xff]
      %v1290 = vld [vmem:[%s4 + $0x10] sm:$0xff]
      %v1291 = vld [vmem:[%s4 + $0x18] sm:$0xff]
      %v1292 = vld [vmem:[%s4 + $0x20] sm:$0xf]
      %vm1293 = vcmask 637952
      %v1295 = vsel %vm1293, %v1288, 0
      %v1298 = vsel %vm1293, %v1289, 0
      %v1301 = vsel %vm1293, %v1290, 0
      %v1304 = vsel %vm1293, %v1291, 0
      %v1307 = vsel %vm1293, %v1292, 0
      %v1310 = vsel %vm1143, %v1287, 0
      %1312 = vmatpush.msra.mxu0 0.0
      %1313 = vmatpush.msra.mxu0 0.0
      %1314 = vmatpush.msra.mxu0 0.0
      %1315 = vmatpush.msra.mxu0 0.0
      %1316 = vmatpush.msra.mxu0 0.0
      %1317 = vmatpush.msra.mxu0 0.0
      %1318 = vmatpush.msra.mxu0 %v1310
      %1319 = vmatpush.msra.mxu0 %v1286
      %1320 = vmatpush.msra.mxu0 %v1285
      %1321 = vmatpush.msra.mxu0 %v1284
      %1322 = vmatpush.msra.mxu0 %v1283
      %1323 = vmatpush.msra.mxu0 %v1282
      %1324 = vmatpush.msra.mxu0 %v1281
      %1325 = vmatpush.msra.mxu0 %v1280
      %1326 = vmatpush.msra.mxu0 %v1279
      %1327 = vmatpush.msra.mxu0 %v1278
      %1328 = vmatmul.f32.gmra.mxu0 %v1295
      %v1329 = vpop.f32.mrf.mxu0
      %v1330 = vadd.f32 0.0, %v1329
      %1331 = vmatmul.f32.gmra.mxu0 %v1298
      %v1332 = vpop.f32.mrf.mxu0
      %v1333 = vadd.f32 0.0, %v1332
      %1334 = vmatmul.f32.gmra.mxu0 %v1301
      %v1335 = vpop.f32.mrf.mxu0
      %v1336 = vadd.f32 0.0, %v1335
      %1337 = vmatmul.f32.gmra.mxu0 %v1304
      %v1338 = vpop.f32.mrf.mxu0
      %v1339 = vadd.f32 0.0, %v1338
      %1340 = vmatmul.f32.gmra.mxu0 %v1307
      %v1341 = vpop.f32.mrf.mxu0
      %v1342 = vadd.f32 0.0, %v1341
      %1343 = vdwg.mxu0
      %v1344 = vpack.c.bf16 %v1330, %v1330
      %v1345 = vpack.c.bf16 %v1333, %v1333
      %v1346 = vpack.c.bf16 %v1336, %v1336
      %v1347 = vpack.c.bf16 %v1339, %v1339
      %v1348 = vpack.c.bf16 %v1342, %v1342
      %1349 = vst [vmem:[#allocation2 + $0x8] sm:$0xf] %v1344
      %1350 = vst [vmem:[#allocation2 + $0xc] sm:$0xf] %v1345
      %1351 = vst [vmem:[#allocation2 + $0x10] sm:$0xf] %v1346
      %1352 = vst [vmem:[#allocation2 + $0x14] sm:$0xf] %v1347
      %1353 = vst [vmem:[#allocation2 + $0x18] sm:$0x3] %v1348
      %v1354 = vld [vmem:[%s5] sm:$0xff]
      %v1355 = vld [vmem:[%s5 + $0x8] sm:$0xff]
      %v1356 = vld [vmem:[%s5 + $0x10] sm:$0xff]
      %v1357 = vld [vmem:[%s5 + $0x18] sm:$0xff]
      %v1358 = vld [vmem:[%s5 + $0x20] sm:$0xf]
      %vm1359 = vcmp.gt.f32.partialorder %v1354, 0.5
      %vm1360 = vcmp.gt.f32.partialorder %v1355, 0.5
      %vm1361 = vcmp.gt.f32.partialorder %v1356, 0.5
      %vm1362 = vcmp.gt.f32.partialorder %v1357, 0.5
      %vm1363 = vcmp.gt.f32.partialorder %v1358, 0.5
      %v1364 = vld [vmem:[#allocation2 + $0x4] sm:$0xf]
      %v1365 = vld [vmem:[#allocation2 + $0x8] sm:$0xf]
      %v1366 = vld [vmem:[#allocation2 + $0xc] sm:$0xf]
      %v1367 = vld [vmem:[#allocation2 + $0x10] sm:$0xf]
      %v1368 = vld [vmem:[#allocation2 + $0x14] sm:$0x7]
      %v1369 = vld [vmem:[#allocation2 + $0x4] sm:$0xe]
      %v1370 = vld [vmem:[#allocation2 + $0x14] sm:$0xf]
      %v1371 = vld [vmem:[#allocation2 + $0x4] sm:$0x8]
      %v1372 = vld [vmem:[#allocation2 + $0x18] sm:$0x3]
      %v1373 = vld [vmem:[#allocation2 + $0x18] sm:$0x7]
      %v1374 = vld [vmem:[#allocation2 + $0x8] sm:$0xc]
      %v1375 = vld [vmem:[#allocation2 + $0x18] sm:$0xf]
      %v1376 = vld [vmem:[#allocation2 + $0x1c] sm:$0x1]
      %v1377 = vld [vmem:[#allocation2 + $0x8] sm:$0x8]
      %v1378 = vld [vmem:[#allocation2 + $0x1c] sm:$0x3]
      %v1384 = vunpack.c.l.b16 %v1364
      %v1385 = vunpack.c.l.b16 %v1365
      %v1386 = vunpack.c.l.b16 %v1366
      %v1387 = vunpack.c.l.b16 %v1367
      %v1388 = vunpack.c.l.b16 %v1368
      %v1389 = vpack.c.b16 %v1385, %v1384
      %v1390 = vpack.c.b16 %v1387, %v1386
      %v1391 = vpack.c.b16 %v1388, %v1388
      %v1393 = vunpack.c.l.b16 %v1369
      %v1394 = vpack.c.b16 %v1385, %v1393
      %vm1395 = vsmask.f32 7424
      %v1397 = vshrl.u32 %v1394, 16
      %v1399 = vshll.u32 %v1394, 16
      %v1401 = vrot.slane %v1399, 1
      %v1402 = vor.u32 %v1397, %v1401
      %v1404 = vshll.u32 %v1390, 16
      %v1406 = vrot.slane %v1404, 1
      %v1407 = vsel %vm1395, %v1402, %v1406
      %v1408 = vshrl.u32 %v1390, 16
      %v1410 = vor.u32 %v1408, %v1406
      %v1412 = vshll.u32 %v1391, 16
      %v1414 = vrot.slane %v1412, 1
      %v1415 = vsel %vm1395, %v1410, %v1414
      %v1416 = vshrl.u32 %v1391, 16
      %v1418 = vor.u32 %v1416, %v1414
      %v1420 = vunpack.c.l.b16 %v1370
      %v1421 = vpack.c.b16 %v1420, %v1420
      %vm1422 = vcmask 1046528
      %v1423 = vrot.slane %v1394, 1
      %v1424 = vrot.slane %v1390, 1
      %v1425 = vsel %vm1422, %v1423, %v1424
      %v1426 = vrot.slane %v1421, 1
      %v1427 = vsel %vm1422, %v1424, %v1426
      %v1430 = vunpack.c.l.b16 %v1371
      %v1431 = vunpack.c.l.b16 %v1372
      %v1432 = vpack.c.b16 %v1385, %v1430
      %v1433 = vpack.c.b16 %v1431, %v1420
      %vm1434 = vcmask 1044480
      %v1435 = vrot.slane %v1432, 3
      %v1436 = vrot.slane %v1390, 3
      %v1437 = vsel %vm1434, %v1435, %v1436
      %v1438 = vrot.slane %v1433, 3
      %v1439 = vsel %vm1434, %v1436, %v1438
      %v1440 = vpack.c.b16 %v1386, %v1385
      %v1441 = vpack.c.b16 %v1420, %v1387
      %v1442 = vpack.c.b16 %v1431, %v1431
      %vm1443 = vsmask.f32 256
      %v1445 = vshrl.u32 %v1440, 16
      %v1447 = vrot.slane %v1445, 7
      %v1448 = vshll.u32 %v1440, 16
      %v1450 = vor.u32 %v1447, %v1448
      %v1452 = vshrl.u32 %v1441, 16
      %v1454 = vrot.slane %v1452, 7
      %v1455 = vshll.u32 %v1441, 16
      %v1457 = vor.u32 %v1454, %v1455
      %v1458 = vsel %vm1443, %v1447, %v1457
      %v1460 = vshrl.u32 %v1442, 16
      %v1462 = vrot.slane %v1460, 7
      %v1463 = vshll.u32 %v1442, 16
      %v1465 = vor.u32 %v1462, %v1463
      %v1466 = vsel %vm1443, %v1454, %v1465
      %v1468 = vunpack.c.l.b16 %v1373
      %v1469 = vpack.c.b16 %v1468, %v1468
      %v1473 = vunpack.c.l.b16 %v1374
      %v1474 = vunpack.c.l.b16 %v1375
      %v1475 = vunpack.c.l.b16 %v1376
      %v1476 = vpack.c.b16 %v1386, %v1473
      %v1477 = vpack.c.b16 %v1475, %v1474
      %vm1478 = vcmask 1045504
      %v1479 = vrot.slane %v1476, 2
      %v1480 = vrot.slane %v1441, 2
      %v1481 = vsel %vm1478, %v1479, %v1480
      %v1482 = vrot.slane %v1477, 2
      %v1483 = vsel %vm1478, %v1480, %v1482
      %v1485 = vunpack.c.l.b16 %v1377
      %v1486 = vpack.c.b16 %v1386, %v1485
      %vm1487 = vsmask.f32 5376
      %v1489 = vshrl.u32 %v1486, 16
      %v1491 = vrot.slane %v1489, 2
      %v1492 = vshll.u32 %v1486, 16
      %v1494 = vrot.slane %v1492, 3
      %v1495 = vor.u32 %v1491, %v1494
      %v1496 = vrot.slane %v1452, 2
      %v1497 = vrot.slane %v1455, 3
      %v1498 = vor.u32 %v1496, %v1497
      %v1499 = vsel %vm1487, %v1495, %v1498
      %v1501 = vshrl.u32 %v1477, 16
      %v1503 = vrot.slane %v1501, 2
      %v1504 = vshll.u32 %v1477, 16
      %v1506 = vrot.slane %v1504, 3
      %v1507 = vor.u32 %v1503, %v1506
      %v1508 = vsel %vm1487, %v1498, %v1507
      %v1510 = vunpack.c.l.b16 %v1378
      %v1511 = vpack.c.b16 %v1510, %v1474
      %v1512 = vrot.slane %v1486, 3
      %v1513 = vrot.slane %v1441, 3
      %v1514 = vsel %vm1434, %v1512, %v1513
      %v1515 = vrot.slane %v1511, 3
      %v1516 = vsel %vm1434, %v1513, %v1515
      %v1517 = vld [vmem:[%s7] sm:$0xf]
      %v1518 = vld [vmem:[%s7 + $0x4] sm:$0xf]
      %v1519 = vld [vmem:[%s7 + $0x8] sm:$0xf]
      %v1520 = vld [vmem:[%s7 + $0xc] sm:$0xf]
      %v1521 = vld [vmem:[%s7 + $0x10] sm:$0xf]
      %v1522 = vld [vmem:[%s7 + $0x14] sm:$0xf]
      %v1523 = vld [vmem:[%s7 + $0x18] sm:$0xf]
      %v1524 = vld [vmem:[%s7 + $0x1c] sm:$0xf]
      %v1525 = vld [vmem:[%s7 + $0x20] sm:$0xf]
      %v1526 = vld [vmem:[%s7 + $0x24] sm:$0xf]
      %v1527 = vld [vmem:[%s7 + $0x28] sm:$0xf]
      %v1528 = vld [vmem:[%s7 + $0x2c] sm:$0xf]
      %v1529 = vld [vmem:[%s7 + $0x30] sm:$0xf]
      %v1530 = vld [vmem:[%s7 + $0x34] sm:$0xf]
      %v1531 = vld [vmem:[%s7 + $0x38] sm:$0xf]
      %v1532 = vld [vmem:[%s7 + $0x3c] sm:$0xf]
      %v1533 = vld [vmem:[%s7 + $0x40] sm:$0xf]
      %v1534 = vld [vmem:[%s7 + $0x44] sm:$0xf]
      %v1535 = vld [vmem:[%s7 + $0x48] sm:$0xf]
      %v1536 = vld [vmem:[%s7 + $0x4c] sm:$0xf]
      %v1537 = vld [vmem:[%s7 + $0x50] sm:$0xf]
      %v1538 = vld [vmem:[%s7 + $0x54] sm:$0xf]
      %v1539 = vld [vmem:[%s7 + $0x58] sm:$0xf]
      %v1540 = vld [vmem:[%s7 + $0x5c] sm:$0xf]
      %v1541 = vld [vmem:[%s7 + $0x60] sm:$0xf]
      %v1542 = vld [vmem:[%s7 + $0x64] sm:$0xf]
      %v1543 = vld [vmem:[%s7 + $0x68] sm:$0xf]
      %v1544 = vld [vmem:[%s7 + $0x6c] sm:$0xf]
      %v1545 = vld [vmem:[%s7 + $0x70] sm:$0xf]
      %v1546 = vld [vmem:[%s7 + $0x74] sm:$0xf]
      %v1547 = vld [vmem:[%s7 + $0x78] sm:$0xf]
      %v1548 = vld [vmem:[%s7 + $0x7c] sm:$0xf]
      %v1549 = vld [vmem:[%s7 + $0x80] sm:$0xf]
      %v1550 = vld [vmem:[%s7 + $0x84] sm:$0xf]
      %v1551 = vld [vmem:[%s7 + $0x88] sm:$0xf]
      %v1552 = vld [vmem:[%s7 + $0x8c] sm:$0xf]
      %v1553 = vld [vmem:[%s7 + $0x90] sm:$0xf]
      %v1554 = vld [vmem:[%s7 + $0x94] sm:$0xf]
      %v1555 = vld [vmem:[%s7 + $0x98] sm:$0xf]
      %v1556 = vld [vmem:[%s7 + $0x9c] sm:$0xf]
      %v1557 = vld [vmem:[%s7 + $0xa0] sm:$0xf]
      %v1558 = vld [vmem:[%s7 + $0xa4] sm:$0xf]
      %v1559 = vld [vmem:[%s7 + $0xa8] sm:$0xf]
      %v1560 = vld [vmem:[%s7 + $0xac] sm:$0xf]
      %v1561 = vld [vmem:[%s7 + $0xb0] sm:$0xf]
      %v1562 = vld [vmem:[%s7 + $0xb4] sm:$0xf]
      %v1563 = vld [vmem:[%s7 + $0xb8] sm:$0xf]
      %v1564 = vld [vmem:[%s7 + $0xbc] sm:$0xf]
      %v1565 = vld [vmem:[%s7 + $0xc0] sm:$0xf]
      %v1566 = vld [vmem:[%s7 + $0xc4] sm:$0xf]
      %v1567 = vld [vmem:[%s7 + $0xc8] sm:$0xf]
      %v1568 = vld [vmem:[%s7 + $0xcc] sm:$0xf]
      %v1569 = vld [vmem:[%s7 + $0xd0] sm:$0xf]
      %v1570 = vld [vmem:[%s7 + $0xd4] sm:$0xf]
      %v1571 = vld [vmem:[%s7 + $0xd8] sm:$0xf]
      %v1572 = vld [vmem:[%s7 + $0xdc] sm:$0xf]
      %v1573 = vld [vmem:[%s7 + $0xe0] sm:$0xf]
      %v1574 = vld [vmem:[%s7 + $0xe4] sm:$0xf]
      %v1575 = vld [vmem:[%s7 + $0xe8] sm:$0xf]
      %v1576 = vld [vmem:[%s7 + $0xec] sm:$0xf]
      %v1577 = vld [vmem:[%s7 + $0xf0] sm:$0xf]
      %v1578 = vld [vmem:[%s7 + $0xf4] sm:$0xf]
      %v1579 = vld [vmem:[%s7 + $0xf8] sm:$0xf]
      %v1580 = vld [vmem:[%s7 + $0xfc] sm:$0xf]
      %v1581 = vld [vmem:[%s7 + $0x100] sm:$0xf]
      %v1582 = vld [vmem:[%s7 + $0x104] sm:$0xf]
      %v1583 = vld [vmem:[%s7 + $0x108] sm:$0xf]
      %v1584 = vld [vmem:[%s7 + $0x10c] sm:$0xf]
      %v1585 = vld [vmem:[%s7 + $0x110] sm:$0xf]
      %v1586 = vld [vmem:[%s7 + $0x114] sm:$0xf]
      %v1587 = vld [vmem:[%s7 + $0x118] sm:$0xf]
      %v1588 = vld [vmem:[%s7 + $0x11c] sm:$0xf]
      %v1589 = vld [vmem:[%s7 + $0x120] sm:$0xf]
      %v1590 = vld [vmem:[%s7 + $0x124] sm:$0xf]
      %v1591 = vld [vmem:[%s7 + $0x128] sm:$0xf]
      %v1592 = vld [vmem:[%s7 + $0x12c] sm:$0xf]
      %v1593 = vld [vmem:[%s7 + $0x130] sm:$0xf]
      %v1594 = vld [vmem:[%s7 + $0x134] sm:$0xf]
      %v1595 = vld [vmem:[%s7 + $0x138] sm:$0xf]
      %v1596 = vld [vmem:[%s7 + $0x13c] sm:$0xf]
      %v1597 = vld [vmem:[%s7 + $0x140] sm:$0xf]
      %v1598 = vld [vmem:[%s7 + $0x144] sm:$0xf]
      %v1599 = vld [vmem:[%s7 + $0x148] sm:$0xf]
      %v1600 = vld [vmem:[%s7 + $0x14c] sm:$0xf]
      %v1601 = vld [vmem:[%s7 + $0x150] sm:$0xf]
      %v1602 = vld [vmem:[%s7 + $0x154] sm:$0xf]
      %v1603 = vld [vmem:[%s7 + $0x158] sm:$0xf]
      %v1604 = vld [vmem:[%s7 + $0x15c] sm:$0xf]
      %v1605 = vld [vmem:[%s7 + $0x160] sm:$0xf]
      %v1606 = vld [vmem:[%s7 + $0x164] sm:$0xf]
      %v1607 = vld [vmem:[%s7 + $0x168] sm:$0xf]
      %v1608 = vld [vmem:[%s7 + $0x16c] sm:$0xf]
      %v1609 = vld [vmem:[%s7 + $0x170] sm:$0xf]
      %v1610 = vld [vmem:[%s7 + $0x174] sm:$0xf]
      %v1611 = vld [vmem:[%s7 + $0x178] sm:$0xf]
      %v1612 = vld [vmem:[%s7 + $0x17c] sm:$0xf]
      %v1613 = vld [vmem:[%s7 + $0x180] sm:$0xf]
      %v1614 = vld [vmem:[%s7 + $0x184] sm:$0xf]
      %v1615 = vld [vmem:[%s7 + $0x188] sm:$0xf]
      %v1616 = vld [vmem:[%s7 + $0x18c] sm:$0xf]
      %v1617 = vld [vmem:[%s7 + $0x190] sm:$0xf]
      %v1618 = vld [vmem:[%s7 + $0x194] sm:$0xf]
      %v1619 = vld [vmem:[%s7 + $0x198] sm:$0xf]
      %v1620 = vld [vmem:[%s7 + $0x19c] sm:$0xf]
      %v1621 = vld [vmem:[%s7 + $0x1a0] sm:$0xf]
      %v1622 = vld [vmem:[%s7 + $0x1a4] sm:$0xf]
      %v1623 = vld [vmem:[%s7 + $0x1a8] sm:$0xf]
      %v1624 = vld [vmem:[%s7 + $0x1ac] sm:$0xf]
      %v1625 = vld [vmem:[%s7 + $0x1b0] sm:$0xf]
      %v1626 = vld [vmem:[%s7 + $0x1b4] sm:$0xf]
      %v1627 = vld [vmem:[%s7 + $0x1b8] sm:$0xf]
      %v1628 = vld [vmem:[%s7 + $0x1bc] sm:$0xf]
      %v1629 = vld [vmem:[%s7 + $0x1c0] sm:$0xf]
      %v1630 = vld [vmem:[%s7 + $0x1c4] sm:$0xf]
      %v1631 = vld [vmem:[%s7 + $0x1c8] sm:$0xf]
      %v1632 = vld [vmem:[%s7 + $0x1cc] sm:$0xf]
      %v1633 = vld [vmem:[%s7 + $0x1d0] sm:$0xf]
      %v1634 = vld [vmem:[%s7 + $0x1d4] sm:$0xf]
      %v1635 = vld [vmem:[%s7 + $0x1d8] sm:$0xf]
      %v1636 = vld [vmem:[%s7 + $0x1dc] sm:$0xf]
      %v1637 = vld [vmem:[%s7 + $0x1e0] sm:$0xf]
      %v1638 = vld [vmem:[%s7 + $0x1e4] sm:$0xf]
      %v1639 = vld [vmem:[%s7 + $0x1e8] sm:$0xf]
      %v1640 = vld [vmem:[%s7 + $0x1ec] sm:$0xf]
      %v1641 = vld [vmem:[%s7 + $0x1f0] sm:$0xf]
      %v1642 = vld [vmem:[%s7 + $0x1f4] sm:$0xf]
      %v1643 = vld [vmem:[%s7 + $0x1f8] sm:$0xf]
      %v1644 = vld [vmem:[%s7 + $0x1fc] sm:$0xf]
      %v1645 = vld [vmem:[%s7 + $0x200] sm:$0xf]
      %v1646 = vld [vmem:[%s7 + $0x204] sm:$0xf]
      %v1647 = vld [vmem:[%s7 + $0x208] sm:$0xf]
      %v1648 = vld [vmem:[%s7 + $0x20c] sm:$0xf]
      %v1649 = vld [vmem:[%s7 + $0x210] sm:$0xf]
      %v1650 = vld [vmem:[%s7 + $0x214] sm:$0xf]
      %v1651 = vld [vmem:[%s7 + $0x218] sm:$0xf]
      %v1652 = vld [vmem:[%s7 + $0x21c] sm:$0xf]
      %v1653 = vld [vmem:[%s7 + $0x220] sm:$0xf]
      %v1654 = vld [vmem:[%s7 + $0x224] sm:$0xf]
      %v1655 = vld [vmem:[%s7 + $0x228] sm:$0xf]
      %v1656 = vld [vmem:[%s7 + $0x22c] sm:$0xf]
      %v1657 = vld [vmem:[%s7 + $0x230] sm:$0xf]
      %v1658 = vld [vmem:[%s7 + $0x234] sm:$0xf]
      %v1659 = vld [vmem:[%s7 + $0x238] sm:$0xf]
      %v1660 = vld [vmem:[%s7 + $0x23c] sm:$0xf]
      %v1661 = vld [vmem:[%s8] sm:$0x1]
      %v1663 = vperm.slane %v1661, 0
      %v1666 = vshrl.u32 %v1389, 16
      %v1668 = vshll.u32 %v1389, 16
      %v1670 = vrot.slane %v1668, 1
      %v1671 = vor.u32 %v1666, %v1670
      %v1672 = vsel %vm1395, %v1671, %v1406
      %v1674 = vshrl.u32 %v1407, 16
      %v1676 = vshll.u32 %v1407, 16
      %v1678 = vrot.slane %v1676, 1
      %v1679 = vor.u32 %v1674, %v1678
      %v1681 = vshll.u32 %v1415, 16
      %v1683 = vrot.slane %v1681, 1
      %v1684 = vsel %vm1395, %v1679, %v1683
      %v1686 = vshrl.u32 %v1425, 16
      %v1688 = vshll.u32 %v1425, 16
      %v1690 = vrot.slane %v1688, 1
      %v1691 = vor.u32 %v1686, %v1690
      %v1693 = vshll.u32 %v1427, 16
      %v1695 = vrot.slane %v1693, 1
      %v1696 = vsel %vm1395, %v1691, %v1695
      %v1698 = vshrl.u32 %v1437, 16
      %v1700 = vshll.u32 %v1437, 16
      %v1702 = vrot.slane %v1700, 1
      %v1703 = vor.u32 %v1698, %v1702
      %v1705 = vshll.u32 %v1439, 16
      %v1707 = vrot.slane %v1705, 1
      %v1708 = vsel %vm1395, %v1703, %v1707
      %v1710 = vshrl.u32 %v1450, 16
      %v1712 = vshll.u32 %v1450, 16
      %v1714 = vrot.slane %v1712, 1
      %v1715 = vor.u32 %v1710, %v1714
      %v1717 = vshll.u32 %v1458, 16
      %v1719 = vrot.slane %v1717, 1
      %v1720 = vsel %vm1395, %v1715, %v1719
      %v1721 = vrot.slane %v1448, 1
      %v1722 = vor.u32 %v1445, %v1721
      %v1723 = vrot.slane %v1455, 1
      %v1724 = vsel %vm1395, %v1722, %v1723
      %v1726 = vshrl.u32 %v1481, 16
      %v1728 = vshll.u32 %v1481, 16
      %v1730 = vrot.slane %v1728, 1
      %v1731 = vor.u32 %v1726, %v1730
      %v1733 = vshll.u32 %v1483, 16
      %v1735 = vrot.slane %v1733, 1
      %v1736 = vsel %vm1395, %v1731, %v1735
      %v1738 = vshrl.u32 %v1499, 16
      %v1740 = vshll.u32 %v1499, 16
      %v1742 = vrot.slane %v1740, 1
      %v1743 = vor.u32 %v1738, %v1742
      %v1745 = vshll.u32 %v1508, 16
      %v1747 = vrot.slane %v1745, 1
      %v1748 = vsel %vm1395, %v1743, %v1747
      %v1750 = vshrl.u32 %v1514, 16
      %v1752 = vshll.u32 %v1514, 16
      %v1754 = vrot.slane %v1752, 1
      %v1755 = vor.u32 %v1750, %v1754
      %v1757 = vshll.u32 %v1516, 16
      %v1759 = vrot.slane %v1757, 1
      %v1760 = vsel %vm1395, %v1755, %v1759
      %v1761 = vshrl.u32 %v1415, 16
      %v1763 = vor.u32 %v1761, %v1683
      %v1765 = vshll.u32 %v1418, 16
      %v1767 = vrot.slane %v1765, 1
      %v1768 = vsel %vm1395, %v1763, %v1767
      %v1769 = vshrl.u32 %v1427, 16
      %v1771 = vor.u32 %v1769, %v1695
      %v1773 = vshll.u32 %v1426, 16
      %v1775 = vrot.slane %v1773, 1
      %v1776 = vsel %vm1395, %v1771, %v1775
      %v1777 = vshrl.u32 %v1439, 16
      %v1779 = vor.u32 %v1777, %v1707
      %v1781 = vshll.u32 %v1438, 16
      %v1783 = vrot.slane %v1781, 1
      %v1784 = vsel %vm1395, %v1779, %v1783
      %v1785 = vshrl.u32 %v1458, 16
      %v1787 = vor.u32 %v1785, %v1719
      %v1789 = vshll.u32 %v1466, 16
      %v1791 = vrot.slane %v1789, 1
      %v1792 = vsel %vm1395, %v1787, %v1791
      %v1793 = vor.u32 %v1452, %v1723
      %v1795 = vshll.u32 %v1469, 16
      %v1797 = vrot.slane %v1795, 1
      %v1798 = vsel %vm1395, %v1793, %v1797
      %v1799 = vshrl.u32 %v1483, 16
      %v1801 = vor.u32 %v1799, %v1735
      %v1803 = vshll.u32 %v1482, 16
      %v1805 = vrot.slane %v1803, 1
      %v1806 = vsel %vm1395, %v1801, %v1805
      %v1807 = vshrl.u32 %v1508, 16
      %v1809 = vor.u32 %v1807, %v1747
      %v1811 = vshll.u32 %v1507, 16
      %v1813 = vrot.slane %v1811, 1
      %v1814 = vsel %vm1395, %v1809, %v1813
      %v1815 = vshrl.u32 %v1516, 16
      %v1817 = vor.u32 %v1815, %v1759
      %v1819 = vshll.u32 %v1515, 16
      %v1821 = vrot.slane %v1819, 1
      %v1822 = vsel %vm1395, %v1817, %v1821
      %v1823 = vshrl.u32 %v1418, 16
      %v1825 = vor.u32 %v1823, %v1767
      %v1826 = vshrl.u32 %v1426, 16
      %v1828 = vor.u32 %v1826, %v1775
      %v1829 = vshrl.u32 %v1438, 16
      %v1831 = vor.u32 %v1829, %v1783
      %v1832 = vshrl.u32 %v1466, 16
      %v1834 = vor.u32 %v1832, %v1791
      %v1835 = vshrl.u32 %v1469, 16
      %v1837 = vor.u32 %v1835, %v1797
      %v1838 = vshrl.u32 %v1482, 16
      %v1840 = vor.u32 %v1838, %v1805
      %v1841 = vshrl.u32 %v1507, 16
      %v1843 = vor.u32 %v1841, %v1813
      %v1844 = vshrl.u32 %v1515, 16
      %v1846 = vor.u32 %v1844, %v1821
      %v2018 = vunpack.c.l.b16 %v1517
      %v2019 = vunpack.c.l.b16 %v1518
      %v2020 = vunpack.c.l.b16 %v1519
      %v2021 = vunpack.c.l.b16 %v1520
      %v2022 = vunpack.c.l.b16 %v1521
      %v2023 = vunpack.c.l.b16 %v1522
      %v2024 = vunpack.c.l.b16 %v1523
      %v2025 = vunpack.c.l.b16 %v1524
      %v2026 = vunpack.c.l.b16 %v1525
      %v2027 = vunpack.c.l.b16 %v1526
      %v2028 = vunpack.c.l.b16 %v1527
      %v2029 = vunpack.c.l.b16 %v1528
      %v2030 = vunpack.c.l.b16 %v1529
      %v2031 = vunpack.c.l.b16 %v1530
      %v2032 = vunpack.c.l.b16 %v1531
      %v2033 = vunpack.c.l.b16 %v1532
      %v2034 = vunpack.c.l.b16 %v1533
      %v2035 = vunpack.c.l.b16 %v1534
      %v2036 = vunpack.c.l.b16 %v1535
      %v2037 = vunpack.c.l.b16 %v1536
      %v2038 = vunpack.c.l.b16 %v1537
      %v2039 = vunpack.c.l.b16 %v1538
      %v2040 = vunpack.c.l.b16 %v1539
      %v2041 = vunpack.c.l.b16 %v1540
      %v2042 = vunpack.c.l.b16 %v1541
      %v2043 = vunpack.c.l.b16 %v1542
      %v2044 = vunpack.c.l.b16 %v1543
      %v2045 = vunpack.c.l.b16 %v1544
      %v2046 = vunpack.c.l.b16 %v1545
      %v2047 = vunpack.c.l.b16 %v1546
      %v2048 = vunpack.c.l.b16 %v1547
      %v2049 = vunpack.c.l.b16 %v1548
      %v2050 = vunpack.c.l.b16 %v1549
      %v2051 = vunpack.c.l.b16 %v1550
      %v2052 = vunpack.c.l.b16 %v1551
      %v2053 = vunpack.c.l.b16 %v1552
      %v2054 = vunpack.c.l.b16 %v1553
      %v2055 = vunpack.c.l.b16 %v1554
      %v2056 = vunpack.c.l.b16 %v1555
      %v2057 = vunpack.c.l.b16 %v1556
      %v2058 = vunpack.c.l.b16 %v1557
      %v2059 = vunpack.c.l.b16 %v1558
      %v2060 = vunpack.c.l.b16 %v1559
      %v2061 = vunpack.c.l.b16 %v1560
      %v2062 = vunpack.c.l.b16 %v1561
      %v2063 = vunpack.c.l.b16 %v1562
      %v2064 = vunpack.c.l.b16 %v1563
      %v2065 = vunpack.c.l.b16 %v1564
      %v2066 = vunpack.c.l.b16 %v1565
      %v2067 = vunpack.c.l.b16 %v1566
      %v2068 = vunpack.c.l.b16 %v1567
      %v2069 = vunpack.c.l.b16 %v1568
      %v2070 = vunpack.c.l.b16 %v1569
      %v2071 = vunpack.c.l.b16 %v1570
      %v2072 = vunpack.c.l.b16 %v1571
      %v2073 = vunpack.c.l.b16 %v1572
      %v2074 = vunpack.c.l.b16 %v1573
      %v2075 = vunpack.c.l.b16 %v1574
      %v2076 = vunpack.c.l.b16 %v1575
      %v2077 = vunpack.c.l.b16 %v1576
      %v2078 = vunpack.c.l.b16 %v1577
      %v2079 = vunpack.c.l.b16 %v1578
      %v2080 = vunpack.c.l.b16 %v1579
      %v2081 = vunpack.c.l.b16 %v1580
      %v2082 = vunpack.c.l.b16 %v1581
      %v2083 = vunpack.c.l.b16 %v1582
      %v2084 = vunpack.c.l.b16 %v1583
      %v2085 = vunpack.c.l.b16 %v1584
      %v2086 = vunpack.c.l.b16 %v1585
      %v2087 = vunpack.c.l.b16 %v1586
      %v2088 = vunpack.c.l.b16 %v1587
      %v2089 = vunpack.c.l.b16 %v1588
      %v2090 = vunpack.c.l.b16 %v1589
      %v2091 = vunpack.c.l.b16 %v1590
      %v2092 = vunpack.c.l.b16 %v1591
      %v2093 = vunpack.c.l.b16 %v1592
      %v2094 = vunpack.c.l.b16 %v1593
      %v2095 = vunpack.c.l.b16 %v1594
      %v2096 = vunpack.c.l.b16 %v1595
      %v2097 = vunpack.c.l.b16 %v1596
      %v2098 = vunpack.c.l.b16 %v1597
      %v2099 = vunpack.c.l.b16 %v1598
      %v2100 = vunpack.c.l.b16 %v1599
      %v2101 = vunpack.c.l.b16 %v1600
      %v2102 = vunpack.c.l.b16 %v1601
      %v2103 = vunpack.c.l.b16 %v1602
      %v2104 = vunpack.c.l.b16 %v1603
      %v2105 = vunpack.c.l.b16 %v1604
      %v2106 = vunpack.c.l.b16 %v1605
      %v2107 = vunpack.c.l.b16 %v1606
      %v2108 = vunpack.c.l.b16 %v1607
      %v2109 = vunpack.c.l.b16 %v1608
      %v2110 = vunpack.c.l.b16 %v1609
      %v2111 = vunpack.c.l.b16 %v1610
      %v2112 = vunpack.c.l.b16 %v1611
      %v2113 = vunpack.c.l.b16 %v1612
      %v2114 = vunpack.c.l.b16 %v1613
      %v2115 = vunpack.c.l.b16 %v1614
      %v2116 = vunpack.c.l.b16 %v1615
      %v2117 = vunpack.c.l.b16 %v1616
      %v2118 = vunpack.c.l.b16 %v1617
      %v2119 = vunpack.c.l.b16 %v1618
      %v2120 = vunpack.c.l.b16 %v1619
      %v2121 = vunpack.c.l.b16 %v1620
      %v2122 = vunpack.c.l.b16 %v1621
      %v2123 = vunpack.c.l.b16 %v1622
      %v2124 = vunpack.c.l.b16 %v1623
      %v2125 = vunpack.c.l.b16 %v1624
      %v2126 = vunpack.c.l.b16 %v1625
      %v2127 = vunpack.c.l.b16 %v1626
      %v2128 = vunpack.c.l.b16 %v1627
      %v2129 = vunpack.c.l.b16 %v1628
      %v2130 = vunpack.c.l.b16 %v1629
      %v2131 = vunpack.c.l.b16 %v1630
      %v2132 = vunpack.c.l.b16 %v1631
      %v2133 = vunpack.c.l.b16 %v1632
      %v2134 = vunpack.c.l.b16 %v1633
      %v2135 = vunpack.c.l.b16 %v1634
      %v2136 = vunpack.c.l.b16 %v1635
      %v2137 = vunpack.c.l.b16 %v1636
      %v2138 = vunpack.c.l.b16 %v1637
      %v2139 = vunpack.c.l.b16 %v1638
      %v2140 = vunpack.c.l.b16 %v1639
      %v2141 = vunpack.c.l.b16 %v1640
      %v2142 = vunpack.c.l.b16 %v1641
      %v2143 = vunpack.c.l.b16 %v1642
      %v2144 = vunpack.c.l.b16 %v1643
      %v2145 = vunpack.c.l.b16 %v1644
      %v2146 = vunpack.c.l.b16 %v1645
      %v2147 = vunpack.c.l.b16 %v1646
      %v2148 = vunpack.c.l.b16 %v1647
      %v2149 = vunpack.c.l.b16 %v1648
      %v2150 = vunpack.c.l.b16 %v1649
      %v2151 = vunpack.c.l.b16 %v1650
      %v2152 = vunpack.c.l.b16 %v1651
      %v2153 = vunpack.c.l.b16 %v1652
      %v2154 = vunpack.c.l.b16 %v1653
      %v2155 = vunpack.c.l.b16 %v1654
      %v2156 = vunpack.c.l.b16 %v1655
      %v2157 = vunpack.c.l.b16 %v1656
      %v2158 = vunpack.c.l.b16 %v1657
      %v2159 = vunpack.c.l.b16 %v1658
      %v2160 = vunpack.c.l.b16 %v1659
      %v2161 = vunpack.c.l.b16 %v1660
      %v2162 = vpack.c.b16 %v2019, %v2018
      %v2163 = vpack.c.b16 %v2021, %v2020
      %v2164 = vpack.c.b16 %v2023, %v2022
      %v2165 = vpack.c.b16 %v2025, %v2024
      %v2166 = vpack.c.b16 %v2027, %v2026
      %v2167 = vpack.c.b16 %v2029, %v2028
      %v2168 = vpack.c.b16 %v2031, %v2030
      %v2169 = vpack.c.b16 %v2033, %v2032
      %v2170 = vpack.c.b16 %v2035, %v2034
      %v2171 = vpack.c.b16 %v2037, %v2036
      %v2172 = vpack.c.b16 %v2039, %v2038
      %v2173 = vpack.c.b16 %v2041, %v2040
      %v2174 = vpack.c.b16 %v2043, %v2042
      %v2175 = vpack.c.b16 %v2045, %v2044
      %v2176 = vpack.c.b16 %v2047, %v2046
      %v2177 = vpack.c.b16 %v2049, %v2048
      %v2178 = vpack.c.b16 %v2051, %v2050
      %v2179 = vpack.c.b16 %v2053, %v2052
      %v2180 = vpack.c.b16 %v2055, %v2054
      %v2181 = vpack.c.b16 %v2057, %v2056
      %v2182 = vpack.c.b16 %v2059, %v2058
      %v2183 = vpack.c.b16 %v2061, %v2060
      %v2184 = vpack.c.b16 %v2063, %v2062
      %v2185 = vpack.c.b16 %v2065, %v2064
      %v2186 = vpack.c.b16 %v2067, %v2066
      %v2187 = vpack.c.b16 %v2069, %v2068
      %v2188 = vpack.c.b16 %v2071, %v2070
      %v2189 = vpack.c.b16 %v2073, %v2072
      %v2190 = vpack.c.b16 %v2075, %v2074
      %v2191 = vpack.c.b16 %v2077, %v2076
      %v2192 = vpack.c.b16 %v2079, %v2078
      %v2193 = vpack.c.b16 %v2081, %v2080
      %v2194 = vpack.c.b16 %v2083, %v2082
      %v2195 = vpack.c.b16 %v2085, %v2084
      %v2196 = vpack.c.b16 %v2087, %v2086
      %v2197 = vpack.c.b16 %v2089, %v2088
      %v2198 = vpack.c.b16 %v2091, %v2090
      %v2199 = vpack.c.b16 %v2093, %v2092
      %v2200 = vpack.c.b16 %v2095, %v2094
      %v2201 = vpack.c.b16 %v2097, %v2096
      %v2202 = vpack.c.b16 %v2099, %v2098
      %v2203 = vpack.c.b16 %v2101, %v2100
      %v2204 = vpack.c.b16 %v2103, %v2102
      %v2205 = vpack.c.b16 %v2105, %v2104
      %v2206 = vpack.c.b16 %v2107, %v2106
      %v2207 = vpack.c.b16 %v2109, %v2108
      %v2208 = vpack.c.b16 %v2111, %v2110
      %v2209 = vpack.c.b16 %v2113, %v2112
      %v2210 = vpack.c.b16 %v2115, %v2114
      %v2211 = vpack.c.b16 %v2117, %v2116
      %v2212 = vpack.c.b16 %v2119, %v2118
      %v2213 = vpack.c.b16 %v2121, %v2120
      %v2214 = vpack.c.b16 %v2123, %v2122
      %v2215 = vpack.c.b16 %v2125, %v2124
      %v2216 = vpack.c.b16 %v2127, %v2126
      %v2217 = vpack.c.b16 %v2129, %v2128
      %v2218 = vpack.c.b16 %v2131, %v2130
      %v2219 = vpack.c.b16 %v2133, %v2132
      %v2220 = vpack.c.b16 %v2135, %v2134
      %v2221 = vpack.c.b16 %v2137, %v2136
      %v2222 = vpack.c.b16 %v2139, %v2138
      %v2223 = vpack.c.b16 %v2141, %v2140
      %v2224 = vpack.c.b16 %v2143, %v2142
      %v2225 = vpack.c.b16 %v2145, %v2144
      %v2226 = vpack.c.b16 %v2147, %v2146
      %v2227 = vpack.c.b16 %v2149, %v2148
      %v2228 = vpack.c.b16 %v2151, %v2150
      %v2229 = vpack.c.b16 %v2153, %v2152
      %v2230 = vpack.c.b16 %v2155, %v2154
      %v2231 = vpack.c.b16 %v2157, %v2156
      %v2232 = vpack.c.b16 %v2159, %v2158
      %v2233 = vpack.c.b16 %v2161, %v2160
      %2306 = vmatpush.bf16.msra.mxu0 %v2169
      %2307 = vmatpush.bf16.msra.mxu0 %v2168
      %2308 = vmatpush.bf16.msra.mxu0 %v2167
      %2309 = vmatpush.bf16.msra.mxu0 %v2166
      %2310 = vmatpush.bf16.msra.mxu0 %v2165
      %2311 = vmatpush.bf16.msra.mxu0 %v2164
      %2312 = vmatpush.bf16.msra.mxu0 %v2163
      %2313 = vmatpush.bf16.msra.mxu0 %v2162
      %2314 = vmatmul.bf16.gmra.mxu0 %v1672
      %v2315 = vpop.f32.mrf.mxu0
      %v2316 = vadd.f32 %v1663, %v2315
      %v2317 = vpop.f32.mrf.mxu0
      %v2318 = vadd.f32 %v1663, %v2317
      %2319 = vmatmul.bf16.gmra.mxu0 %v1415
      %v2320 = vpop.f32.mrf.mxu0
      %v2321 = vadd.f32 %v1663, %v2320
      %v2322 = vpop.f32.mrf.mxu0
      %v2323 = vadd.f32 %v1663, %v2322
      %2324 = vmatmul.bf16.gmra.mxu0 %v1418
      %v2325 = vpop.f32.mrf.mxu0
      %v2326 = vadd.f32 %v1663, %v2325
      %v2327 = vpop.f32.mrf.mxu0
      %2328 = vdwg.mxu0
      %2329 = vmatpush.bf16.msra.mxu0 %v2177
      %2330 = vmatpush.bf16.msra.mxu0 %v2176
      %2331 = vmatpush.bf16.msra.mxu0 %v2175
      %2332 = vmatpush.bf16.msra.mxu0 %v2174
      %2333 = vmatpush.bf16.msra.mxu0 %v2173
      %2334 = vmatpush.bf16.msra.mxu0 %v2172
      %2335 = vmatpush.bf16.msra.mxu0 %v2171
      %2336 = vmatpush.bf16.msra.mxu0 %v2170
      %2337 = vmatmul.bf16.gmra.mxu0 %v1684
      %v2338 = vpop.f32.mrf.mxu0
      %v2339 = vadd.f32 %v2316, %v2338
      %v2340 = vpop.f32.mrf.mxu0
      %v2341 = vadd.f32 %v2318, %v2340
      %2342 = vmatmul.bf16.gmra.mxu0 %v1768
      %v2343 = vpop.f32.mrf.mxu0
      %v2344 = vadd.f32 %v2321, %v2343
      %v2345 = vpop.f32.mrf.mxu0
      %v2346 = vadd.f32 %v2323, %v2345
      %2347 = vmatmul.bf16.gmra.mxu0 %v1825
      %v2348 = vpop.f32.mrf.mxu0
      %v2349 = vadd.f32 %v2326, %v2348
      %v2350 = vpop.f32.mrf.mxu0
      %2351 = vdwg.mxu0
      %2352 = vmatpush.bf16.msra.mxu0 %v2185
      %2353 = vmatpush.bf16.msra.mxu0 %v2184
      %2354 = vmatpush.bf16.msra.mxu0 %v2183
      %2355 = vmatpush.bf16.msra.mxu0 %v2182
      %2356 = vmatpush.bf16.msra.mxu0 %v2181
      %2357 = vmatpush.bf16.msra.mxu0 %v2180
      %2358 = vmatpush.bf16.msra.mxu0 %v2179
      %2359 = vmatpush.bf16.msra.mxu0 %v2178
      %2360 = vmatmul.bf16.gmra.mxu0 %v1696
      %v2361 = vpop.f32.mrf.mxu0
      %v2362 = vadd.f32 %v2339, %v2361
      %v2363 = vpop.f32.mrf.mxu0
      %v2364 = vadd.f32 %v2341, %v2363
      %2365 = vmatmul.bf16.gmra.mxu0 %v1776
      %v2366 = vpop.f32.mrf.mxu0
      %v2367 = vadd.f32 %v2344, %v2366
      %v2368 = vpop.f32.mrf.mxu0
      %v2369 = vadd.f32 %v2346, %v2368
      %2370 = vmatmul.bf16.gmra.mxu0 %v1828
      %v2371 = vpop.f32.mrf.mxu0
      %v2372 = vadd.f32 %v2349, %v2371
      %v2373 = vpop.f32.mrf.mxu0
      %2374 = vdwg.mxu0
      %2375 = vmatpush.bf16.msra.mxu0 %v2193
      %2376 = vmatpush.bf16.msra.mxu0 %v2192
      %2377 = vmatpush.bf16.msra.mxu0 %v2191
      %2378 = vmatpush.bf16.msra.mxu0 %v2190
      %2379 = vmatpush.bf16.msra.mxu0 %v2189
      %2380 = vmatpush.bf16.msra.mxu0 %v2188
      %2381 = vmatpush.bf16.msra.mxu0 %v2187
      %2382 = vmatpush.bf16.msra.mxu0 %v2186
      %2383 = vmatmul.bf16.gmra.mxu0 %v1708
      %v2384 = vpop.f32.mrf.mxu0
      %v2385 = vadd.f32 %v2362, %v2384
      %v2386 = vpop.f32.mrf.mxu0
      %v2387 = vadd.f32 %v2364, %v2386
      %2388 = vmatmul.bf16.gmra.mxu0 %v1784
      %v2389 = vpop.f32.mrf.mxu0
      %v2390 = vadd.f32 %v2367, %v2389
      %v2391 = vpop.f32.mrf.mxu0
      %v2392 = vadd.f32 %v2369, %v2391
      %2393 = vmatmul.bf16.gmra.mxu0 %v1831
      %v2394 = vpop.f32.mrf.mxu0
      %v2395 = vadd.f32 %v2372, %v2394
      %v2396 = vpop.f32.mrf.mxu0
      %2397 = vdwg.mxu0
      %2398 = vmatpush.bf16.msra.mxu0 %v2201
      %2399 = vmatpush.bf16.msra.mxu0 %v2200
      %2400 = vmatpush.bf16.msra.mxu0 %v2199
      %2401 = vmatpush.bf16.msra.mxu0 %v2198
      %2402 = vmatpush.bf16.msra.mxu0 %v2197
      %2403 = vmatpush.bf16.msra.mxu0 %v2196
      %2404 = vmatpush.bf16.msra.mxu0 %v2195
      %2405 = vmatpush.bf16.msra.mxu0 %v2194
      %2406 = vmatmul.bf16.gmra.mxu0 %v1720
      %v2407 = vpop.f32.mrf.mxu0
      %v2408 = vadd.f32 %v2385, %v2407
      %v2409 = vpop.f32.mrf.mxu0
      %v2410 = vadd.f32 %v2387, %v2409
      %2411 = vmatmul.bf16.gmra.mxu0 %v1792
      %v2412 = vpop.f32.mrf.mxu0
      %v2413 = vadd.f32 %v2390, %v2412
      %v2414 = vpop.f32.mrf.mxu0
      %v2415 = vadd.f32 %v2392, %v2414
      %2416 = vmatmul.bf16.gmra.mxu0 %v1834
      %v2417 = vpop.f32.mrf.mxu0
      %v2418 = vadd.f32 %v2395, %v2417
      %v2419 = vpop.f32.mrf.mxu0
      %2420 = vdwg.mxu0
      %2421 = vmatpush.bf16.msra.mxu0 %v2209
      %2422 = vmatpush.bf16.msra.mxu0 %v2208
      %2423 = vmatpush.bf16.msra.mxu0 %v2207
      %2424 = vmatpush.bf16.msra.mxu0 %v2206
      %2425 = vmatpush.bf16.msra.mxu0 %v2205
      %2426 = vmatpush.bf16.msra.mxu0 %v2204
      %2427 = vmatpush.bf16.msra.mxu0 %v2203
      %2428 = vmatpush.bf16.msra.mxu0 %v2202
      %2429 = vmatmul.bf16.gmra.mxu0 %v1724
      %v2430 = vpop.f32.mrf.mxu0
      %v2431 = vadd.f32 %v2408, %v2430
      %v2432 = vpop.f32.mrf.mxu0
      %v2433 = vadd.f32 %v2410, %v2432
      %2434 = vmatmul.bf16.gmra.mxu0 %v1798
      %v2435 = vpop.f32.mrf.mxu0
      %v2436 = vadd.f32 %v2413, %v2435
      %v2437 = vpop.f32.mrf.mxu0
      %v2438 = vadd.f32 %v2415, %v2437
      %2439 = vmatmul.bf16.gmra.mxu0 %v1837
      %v2440 = vpop.f32.mrf.mxu0
      %v2441 = vadd.f32 %v2418, %v2440
      %v2442 = vpop.f32.mrf.mxu0
      %2443 = vdwg.mxu0
      %2444 = vmatpush.bf16.msra.mxu0 %v2217
      %2445 = vmatpush.bf16.msra.mxu0 %v2216
      %2446 = vmatpush.bf16.msra.mxu0 %v2215
      %2447 = vmatpush.bf16.msra.mxu0 %v2214
      %2448 = vmatpush.bf16.msra.mxu0 %v2213
      %2449 = vmatpush.bf16.msra.mxu0 %v2212
      %2450 = vmatpush.bf16.msra.mxu0 %v2211
      %2451 = vmatpush.bf16.msra.mxu0 %v2210
      %2452 = vmatmul.bf16.gmra.mxu0 %v1736
      %v2453 = vpop.f32.mrf.mxu0
      %v2454 = vadd.f32 %v2431, %v2453
      %v2455 = vpop.f32.mrf.mxu0
      %v2456 = vadd.f32 %v2433, %v2455
      %2457 = vmatmul.bf16.gmra.mxu0 %v1806
      %v2458 = vpop.f32.mrf.mxu0
      %v2459 = vadd.f32 %v2436, %v2458
      %v2460 = vpop.f32.mrf.mxu0
      %v2461 = vadd.f32 %v2438, %v2460
      %2462 = vmatmul.bf16.gmra.mxu0 %v1840
      %v2463 = vpop.f32.mrf.mxu0
      %v2464 = vadd.f32 %v2441, %v2463
      %v2465 = vpop.f32.mrf.mxu0
      %2466 = vdwg.mxu0
      %2467 = vmatpush.bf16.msra.mxu0 %v2225
      %2468 = vmatpush.bf16.msra.mxu0 %v2224
      %2469 = vmatpush.bf16.msra.mxu0 %v2223
      %2470 = vmatpush.bf16.msra.mxu0 %v2222
      %2471 = vmatpush.bf16.msra.mxu0 %v2221
      %2472 = vmatpush.bf16.msra.mxu0 %v2220
      %2473 = vmatpush.bf16.msra.mxu0 %v2219
      %2474 = vmatpush.bf16.msra.mxu0 %v2218
      %2475 = vmatmul.bf16.gmra.mxu0 %v1748
      %v2476 = vpop.f32.mrf.mxu0
      %v2477 = vadd.f32 %v2454, %v2476
      %v2478 = vpop.f32.mrf.mxu0
      %v2479 = vadd.f32 %v2456, %v2478
      %2480 = vmatmul.bf16.gmra.mxu0 %v1814
      %v2481 = vpop.f32.mrf.mxu0
      %v2482 = vadd.f32 %v2459, %v2481
      %v2483 = vpop.f32.mrf.mxu0
      %v2484 = vadd.f32 %v2461, %v2483
      %2485 = vmatmul.bf16.gmra.mxu0 %v1843
      %v2486 = vpop.f32.mrf.mxu0
      %v2487 = vadd.f32 %v2464, %v2486
      %v2488 = vpop.f32.mrf.mxu0
      %2489 = vdwg.mxu0
      %2490 = vmatpush.bf16.msra.mxu0 %v2233
      %2491 = vmatpush.bf16.msra.mxu0 %v2232
      %2492 = vmatpush.bf16.msra.mxu0 %v2231
      %2493 = vmatpush.bf16.msra.mxu0 %v2230
      %2494 = vmatpush.bf16.msra.mxu0 %v2229
      %2495 = vmatpush.bf16.msra.mxu0 %v2228
      %2496 = vmatpush.bf16.msra.mxu0 %v2227
      %2497 = vmatpush.bf16.msra.mxu0 %v2226
      %2498 = vmatmul.bf16.gmra.mxu0 %v1760
      %v2499 = vpop.f32.mrf.mxu0
      %v2500 = vadd.f32 %v2477, %v2499
      %v2501 = vpop.f32.mrf.mxu0
      %v2502 = vadd.f32 %v2479, %v2501
      %2503 = vmatmul.bf16.gmra.mxu0 %v1822
      %v2504 = vpop.f32.mrf.mxu0
      %v2505 = vadd.f32 %v2482, %v2504
      %v2506 = vpop.f32.mrf.mxu0
      %v2507 = vadd.f32 %v2484, %v2506
      %2508 = vmatmul.bf16.gmra.mxu0 %v1846
      %v2509 = vpop.f32.mrf.mxu0
      %v2510 = vadd.f32 %v2487, %v2509
      %v2511 = vpop.f32.mrf.mxu0
      %2512 = vdwg.mxu0
      %v2513 = vmax.f32 %v2500, 0.0
      %v2514 = vmax.f32 %v2502, 0.0
      %v2515 = vmax.f32 %v2505, 0.0
      %v2516 = vmax.f32 %v2507, 0.0
      %v2517 = vmax.f32 %v2510, 0.0
      %v2518 = vsel %vm1359, 1, 0
      %v2519 = vsel %vm1360, 1, 0
      %v2520 = vsel %vm1361, 1, 0
      %v2521 = vsel %vm1362, 1, 0
      %v2522 = vsel %vm1363, 1, 0
      %2523 = vset.pattern.permute.xlu0 0
      %2524 = vperm.xlu0 %2523, %v2518
      %v2525 = vpop.permute.xlu0 %2524
      %2526 = vset.pattern.permute.xlu0 0
      %2527 = vperm.xlu0 %2526, %v2519
      %v2528 = vpop.permute.xlu0 %2527
      %2529 = vset.pattern.permute.xlu0 0
      %2530 = vperm.xlu0 %2529, %v2520
      %v2531 = vpop.permute.xlu0 %2530
      %2532 = vset.pattern.permute.xlu0 0
      %2533 = vperm.xlu0 %2532, %v2521
      %v2534 = vpop.permute.xlu0 %2533
      %2535 = vset.pattern.permute.xlu0 0
      %2536 = vperm.xlu0 %2535, %v2522
      %v2537 = vpop.permute.xlu0 %2536
      %vm2538 = vcmp.eq.s32.totalorder %v2525, 1
      %vm2539 = vcmp.eq.s32.totalorder %v2528, 1
      %vm2540 = vcmp.eq.s32.totalorder %v2531, 1
      %vm2541 = vcmp.eq.s32.totalorder %v2534, 1
      %vm2542 = vcmp.eq.s32.totalorder %v2537, 1
      %v2543 = vsel %vm2538, %v2513, 0.0
      %v2544 = vsel %vm2539, %v2514, 0.0
      %v2545 = vsel %vm2540, %v2515, 0.0
      %v2546 = vsel %vm2541, %v2516, 0.0
      %v2547 = vsel %vm2542, %v2517, 0.0
      %v2548 = vpack.c.bf16 %v2543, %v2543
      %v2549 = vpack.c.bf16 %v2544, %v2544
      %v2550 = vpack.c.bf16 %v2545, %v2545
      %v2551 = vpack.c.bf16 %v2546, %v2546
      %v2552 = vpack.c.bf16 %v2547, %v2547
      %2553 = vst [vmem:[#allocation2 + $0x8] sm:$0xf] %v2548
      %2554 = vst [vmem:[#allocation2 + $0xc] sm:$0xf] %v2549
      %2555 = vst [vmem:[#allocation2 + $0x10] sm:$0xf] %v2550
      %2556 = vst [vmem:[#allocation2 + $0x14] sm:$0xf] %v2551
      %2557 = vst [vmem:[#allocation2 + $0x18] sm:$0x3] %v2552
      %v2558 = vld [vmem:[#allocation2 + $0x4] sm:$0xf]
      %v2559 = vld [vmem:[#allocation2 + $0x8] sm:$0xf]
      %v2560 = vld [vmem:[#allocation2 + $0xc] sm:$0xf]
      %v2561 = vld [vmem:[#allocation2 + $0x10] sm:$0xf]
      %v2562 = vld [vmem:[#allocation2 + $0x14] sm:$0x7]
      %v2563 = vld [vmem:[#allocation2 + $0x4] sm:$0xe]
      %v2564 = vld [vmem:[#allocation2 + $0x14] sm:$0xf]
      %v2565 = vld [vmem:[#allocation2 + $0x4] sm:$0x8]
      %v2566 = vld [vmem:[#allocation2 + $0x18] sm:$0x3]
      %v2567 = vld [vmem:[#allocation2 + $0x18] sm:$0x7]
      %v2568 = vld [vmem:[#allocation2 + $0x8] sm:$0xc]
      %v2569 = vld [vmem:[#allocation2 + $0x18] sm:$0xf]
      %v2570 = vld [vmem:[#allocation2 + $0x1c] sm:$0x1]
      %v2571 = vld [vmem:[#allocation2 + $0x8] sm:$0x8]
      %v2572 = vld [vmem:[#allocation2 + $0x1c] sm:$0x3]
      %v2578 = vunpack.c.l.b16 %v2558
      %v2579 = vunpack.c.l.b16 %v2559
      %v2580 = vunpack.c.l.b16 %v2560
      %v2581 = vunpack.c.l.b16 %v2561
      %v2582 = vunpack.c.l.b16 %v2562
      %v2583 = vpack.c.b16 %v2579, %v2578
      %v2584 = vpack.c.b16 %v2581, %v2580
      %v2585 = vpack.c.b16 %v2582, %v2582
      %v2587 = vunpack.c.l.b16 %v2563
      %v2588 = vpack.c.b16 %v2579, %v2587
      %v2590 = vshrl.u32 %v2588, 16
      %v2592 = vshll.u32 %v2588, 16
      %v2594 = vrot.slane %v2592, 1
      %v2595 = vor.u32 %v2590, %v2594
      %v2597 = vshll.u32 %v2584, 16
      %v2599 = vrot.slane %v2597, 1
      %v2600 = vsel %vm1395, %v2595, %v2599
      %v2601 = vshrl.u32 %v2584, 16
      %v2603 = vor.u32 %v2601, %v2599
      %v2605 = vshll.u32 %v2585, 16
      %v2607 = vrot.slane %v2605, 1
      %v2608 = vsel %vm1395, %v2603, %v2607
      %v2609 = vshrl.u32 %v2585, 16
      %v2611 = vor.u32 %v2609, %v2607
      %v2613 = vunpack.c.l.b16 %v2564
      %v2614 = vpack.c.b16 %v2613, %v2613
      %v2615 = vrot.slane %v2588, 1
      %v2616 = vrot.slane %v2584, 1
      %v2617 = vsel %vm1422, %v2615, %v2616
      %v2618 = vrot.slane %v2614, 1
      %v2619 = vsel %vm1422, %v2616, %v2618
      %v2622 = vunpack.c.l.b16 %v2565
      %v2623 = vunpack.c.l.b16 %v2566
      %v2624 = vpack.c.b16 %v2579, %v2622
      %v2625 = vpack.c.b16 %v2623, %v2613
      %v2626 = vrot.slane %v2624, 3
      %v2627 = vrot.slane %v2584, 3
      %v2628 = vsel %vm1434, %v2626, %v2627
      %v2629 = vrot.slane %v2625, 3
      %v2630 = vsel %vm1434, %v2627, %v2629
      %v2631 = vpack.c.b16 %v2580, %v2579
      %v2632 = vpack.c.b16 %v2613, %v2581
      %v2633 = vpack.c.b16 %v2623, %v2623
      %v2635 = vshrl.u32 %v2631, 16
      %v2637 = vrot.slane %v2635, 7
      %v2638 = vshll.u32 %v2631, 16
      %v2640 = vor.u32 %v2637, %v2638
      %v2642 = vshrl.u32 %v2632, 16
      %v2644 = vrot.slane %v2642, 7
      %v2645 = vshll.u32 %v2632, 16
      %v2647 = vor.u32 %v2644, %v2645
      %v2648 = vsel %vm1443, %v2637, %v2647
      %v2650 = vshrl.u32 %v2633, 16
      %v2652 = vrot.slane %v2650, 7
      %v2653 = vshll.u32 %v2633, 16
      %v2655 = vor.u32 %v2652, %v2653
      %v2656 = vsel %vm1443, %v2644, %v2655
      %v2658 = vunpack.c.l.b16 %v2567
      %v2659 = vpack.c.b16 %v2658, %v2658
      %v2663 = vunpack.c.l.b16 %v2568
      %v2664 = vunpack.c.l.b16 %v2569
      %v2665 = vunpack.c.l.b16 %v2570
      %v2666 = vpack.c.b16 %v2580, %v2663
      %v2667 = vpack.c.b16 %v2665, %v2664
      %v2668 = vrot.slane %v2666, 2
      %v2669 = vrot.slane %v2632, 2
      %v2670 = vsel %vm1478, %v2668, %v2669
      %v2671 = vrot.slane %v2667, 2
      %v2672 = vsel %vm1478, %v2669, %v2671
      %v2674 = vunpack.c.l.b16 %v2571
      %v2675 = vpack.c.b16 %v2580, %v2674
      %v2677 = vshrl.u32 %v2675, 16
      %v2679 = vrot.slane %v2677, 2
      %v2680 = vshll.u32 %v2675, 16
      %v2682 = vrot.slane %v2680, 3
      %v2683 = vor.u32 %v2679, %v2682
      %v2684 = vrot.slane %v2642, 2
      %v2685 = vrot.slane %v2645, 3
      %v2686 = vor.u32 %v2684, %v2685
      %v2687 = vsel %vm1487, %v2683, %v2686
      %v2689 = vshrl.u32 %v2667, 16
      %v2691 = vrot.slane %v2689, 2
      %v2692 = vshll.u32 %v2667, 16
      %v2694 = vrot.slane %v2692, 3
      %v2695 = vor.u32 %v2691, %v2694
      %v2696 = vsel %vm1487, %v2686, %v2695
      %v2698 = vunpack.c.l.b16 %v2572
      %v2699 = vpack.c.b16 %v2698, %v2664
      %v2700 = vrot.slane %v2675, 3
      %v2701 = vrot.slane %v2632, 3
      %v2702 = vsel %vm1434, %v2700, %v2701
      %v2703 = vrot.slane %v2699, 3
      %v2704 = vsel %vm1434, %v2701, %v2703
      %v2705 = vld [vmem:[%s9] sm:$0xf]
      %v2706 = vld [vmem:[%s9 + $0x4] sm:$0xf]
      %v2707 = vld [vmem:[%s9 + $0x8] sm:$0xf]
      %v2708 = vld [vmem:[%s9 + $0xc] sm:$0xf]
      %v2709 = vld [vmem:[%s9 + $0x10] sm:$0xf]
      %v2710 = vld [vmem:[%s9 + $0x14] sm:$0xf]
      %v2711 = vld [vmem:[%s9 + $0x18] sm:$0xf]
      %v2712 = vld [vmem:[%s9 + $0x1c] sm:$0xf]
      %v2713 = vld [vmem:[%s9 + $0x20] sm:$0xf]
      %v2714 = vld [vmem:[%s9 + $0x24] sm:$0xf]
      %v2715 = vld [vmem:[%s9 + $0x28] sm:$0xf]
      %v2716 = vld [vmem:[%s9 + $0x2c] sm:$0xf]
      %v2717 = vld [vmem:[%s9 + $0x30] sm:$0xf]
      %v2718 = vld [vmem:[%s9 + $0x34] sm:$0xf]
      %v2719 = vld [vmem:[%s9 + $0x38] sm:$0xf]
      %v2720 = vld [vmem:[%s9 + $0x3c] sm:$0xf]
      %v2721 = vld [vmem:[%s9 + $0x40] sm:$0xf]
      %v2722 = vld [vmem:[%s9 + $0x44] sm:$0xf]
      %v2723 = vld [vmem:[%s9 + $0x48] sm:$0xf]
      %v2724 = vld [vmem:[%s9 + $0x4c] sm:$0xf]
      %v2725 = vld [vmem:[%s9 + $0x50] sm:$0xf]
      %v2726 = vld [vmem:[%s9 + $0x54] sm:$0xf]
      %v2727 = vld [vmem:[%s9 + $0x58] sm:$0xf]
      %v2728 = vld [vmem:[%s9 + $0x5c] sm:$0xf]
      %v2729 = vld [vmem:[%s9 + $0x60] sm:$0xf]
      %v2730 = vld [vmem:[%s9 + $0x64] sm:$0xf]
      %v2731 = vld [vmem:[%s9 + $0x68] sm:$0xf]
      %v2732 = vld [vmem:[%s9 + $0x6c] sm:$0xf]
      %v2733 = vld [vmem:[%s9 + $0x70] sm:$0xf]
      %v2734 = vld [vmem:[%s9 + $0x74] sm:$0xf]
      %v2735 = vld [vmem:[%s9 + $0x78] sm:$0xf]
      %v2736 = vld [vmem:[%s9 + $0x7c] sm:$0xf]
      %v2737 = vld [vmem:[%s9 + $0x80] sm:$0xf]
      %v2738 = vld [vmem:[%s9 + $0x84] sm:$0xf]
      %v2739 = vld [vmem:[%s9 + $0x88] sm:$0xf]
      %v2740 = vld [vmem:[%s9 + $0x8c] sm:$0xf]
      %v2741 = vld [vmem:[%s9 + $0x90] sm:$0xf]
      %v2742 = vld [vmem:[%s9 + $0x94] sm:$0xf]
      %v2743 = vld [vmem:[%s9 + $0x98] sm:$0xf]
      %v2744 = vld [vmem:[%s9 + $0x9c] sm:$0xf]
      %v2745 = vld [vmem:[%s9 + $0xa0] sm:$0xf]
      %v2746 = vld [vmem:[%s9 + $0xa4] sm:$0xf]
      %v2747 = vld [vmem:[%s9 + $0xa8] sm:$0xf]
      %v2748 = vld [vmem:[%s9 + $0xac] sm:$0xf]
      %v2749 = vld [vmem:[%s9 + $0xb0] sm:$0xf]
      %v2750 = vld [vmem:[%s9 + $0xb4] sm:$0xf]
      %v2751 = vld [vmem:[%s9 + $0xb8] sm:$0xf]
      %v2752 = vld [vmem:[%s9 + $0xbc] sm:$0xf]
      %v2753 = vld [vmem:[%s9 + $0xc0] sm:$0xf]
      %v2754 = vld [vmem:[%s9 + $0xc4] sm:$0xf]
      %v2755 = vld [vmem:[%s9 + $0xc8] sm:$0xf]
      %v2756 = vld [vmem:[%s9 + $0xcc] sm:$0xf]
      %v2757 = vld [vmem:[%s9 + $0xd0] sm:$0xf]
      %v2758 = vld [vmem:[%s9 + $0xd4] sm:$0xf]
      %v2759 = vld [vmem:[%s9 + $0xd8] sm:$0xf]
      %v2760 = vld [vmem:[%s9 + $0xdc] sm:$0xf]
      %v2761 = vld [vmem:[%s9 + $0xe0] sm:$0xf]
      %v2762 = vld [vmem:[%s9 + $0xe4] sm:$0xf]
      %v2763 = vld [vmem:[%s9 + $0xe8] sm:$0xf]
      %v2764 = vld [vmem:[%s9 + $0xec] sm:$0xf]
      %v2765 = vld [vmem:[%s9 + $0xf0] sm:$0xf]
      %v2766 = vld [vmem:[%s9 + $0xf4] sm:$0xf]
      %v2767 = vld [vmem:[%s9 + $0xf8] sm:$0xf]
      %v2768 = vld [vmem:[%s9 + $0xfc] sm:$0xf]
      %v2769 = vld [vmem:[%s9 + $0x100] sm:$0xf]
      %v2770 = vld [vmem:[%s9 + $0x104] sm:$0xf]
      %v2771 = vld [vmem:[%s9 + $0x108] sm:$0xf]
      %v2772 = vld [vmem:[%s9 + $0x10c] sm:$0xf]
      %v2773 = vld [vmem:[%s9 + $0x110] sm:$0xf]
      %v2774 = vld [vmem:[%s9 + $0x114] sm:$0xf]
      %v2775 = vld [vmem:[%s9 + $0x118] sm:$0xf]
      %v2776 = vld [vmem:[%s9 + $0x11c] sm:$0xf]
      %v2777 = vld [vmem:[%s9 + $0x120] sm:$0xf]
      %v2778 = vld [vmem:[%s9 + $0x124] sm:$0xf]
      %v2779 = vld [vmem:[%s9 + $0x128] sm:$0xf]
      %v2780 = vld [vmem:[%s9 + $0x12c] sm:$0xf]
      %v2781 = vld [vmem:[%s9 + $0x130] sm:$0xf]
      %v2782 = vld [vmem:[%s9 + $0x134] sm:$0xf]
      %v2783 = vld [vmem:[%s9 + $0x138] sm:$0xf]
      %v2784 = vld [vmem:[%s9 + $0x13c] sm:$0xf]
      %v2785 = vld [vmem:[%s9 + $0x140] sm:$0xf]
      %v2786 = vld [vmem:[%s9 + $0x144] sm:$0xf]
      %v2787 = vld [vmem:[%s9 + $0x148] sm:$0xf]
      %v2788 = vld [vmem:[%s9 + $0x14c] sm:$0xf]
      %v2789 = vld [vmem:[%s9 + $0x150] sm:$0xf]
      %v2790 = vld [vmem:[%s9 + $0x154] sm:$0xf]
      %v2791 = vld [vmem:[%s9 + $0x158] sm:$0xf]
      %v2792 = vld [vmem:[%s9 + $0x15c] sm:$0xf]
      %v2793 = vld [vmem:[%s9 + $0x160] sm:$0xf]
      %v2794 = vld [vmem:[%s9 + $0x164] sm:$0xf]
      %v2795 = vld [vmem:[%s9 + $0x168] sm:$0xf]
      %v2796 = vld [vmem:[%s9 + $0x16c] sm:$0xf]
      %v2797 = vld [vmem:[%s9 + $0x170] sm:$0xf]
      %v2798 = vld [vmem:[%s9 + $0x174] sm:$0xf]
      %v2799 = vld [vmem:[%s9 + $0x178] sm:$0xf]
      %v2800 = vld [vmem:[%s9 + $0x17c] sm:$0xf]
      %v2801 = vld [vmem:[%s9 + $0x180] sm:$0xf]
      %v2802 = vld [vmem:[%s9 + $0x184] sm:$0xf]
      %v2803 = vld [vmem:[%s9 + $0x188] sm:$0xf]
      %v2804 = vld [vmem:[%s9 + $0x18c] sm:$0xf]
      %v2805 = vld [vmem:[%s9 + $0x190] sm:$0xf]
      %v2806 = vld [vmem:[%s9 + $0x194] sm:$0xf]
      %v2807 = vld [vmem:[%s9 + $0x198] sm:$0xf]
      %v2808 = vld [vmem:[%s9 + $0x19c] sm:$0xf]
      %v2809 = vld [vmem:[%s9 + $0x1a0] sm:$0xf]
      %v2810 = vld [vmem:[%s9 + $0x1a4] sm:$0xf]
      %v2811 = vld [vmem:[%s9 + $0x1a8] sm:$0xf]
      %v2812 = vld [vmem:[%s9 + $0x1ac] sm:$0xf]
      %v2813 = vld [vmem:[%s9 + $0x1b0] sm:$0xf]
      %v2814 = vld [vmem:[%s9 + $0x1b4] sm:$0xf]
      %v2815 = vld [vmem:[%s9 + $0x1b8] sm:$0xf]
      %v2816 = vld [vmem:[%s9 + $0x1bc] sm:$0xf]
      %v2817 = vld [vmem:[%s9 + $0x1c0] sm:$0xf]
      %v2818 = vld [vmem:[%s9 + $0x1c4] sm:$0xf]
      %v2819 = vld [vmem:[%s9 + $0x1c8] sm:$0xf]
      %v2820 = vld [vmem:[%s9 + $0x1cc] sm:$0xf]
      %v2821 = vld [vmem:[%s9 + $0x1d0] sm:$0xf]
      %v2822 = vld [vmem:[%s9 + $0x1d4] sm:$0xf]
      %v2823 = vld [vmem:[%s9 + $0x1d8] sm:$0xf]
      %v2824 = vld [vmem:[%s9 + $0x1dc] sm:$0xf]
      %v2825 = vld [vmem:[%s9 + $0x1e0] sm:$0xf]
      %v2826 = vld [vmem:[%s9 + $0x1e4] sm:$0xf]
      %v2827 = vld [vmem:[%s9 + $0x1e8] sm:$0xf]
      %v2828 = vld [vmem:[%s9 + $0x1ec] sm:$0xf]
      %v2829 = vld [vmem:[%s9 + $0x1f0] sm:$0xf]
      %v2830 = vld [vmem:[%s9 + $0x1f4] sm:$0xf]
      %v2831 = vld [vmem:[%s9 + $0x1f8] sm:$0xf]
      %v2832 = vld [vmem:[%s9 + $0x1fc] sm:$0xf]
      %v2833 = vld [vmem:[%s9 + $0x200] sm:$0xf]
      %v2834 = vld [vmem:[%s9 + $0x204] sm:$0xf]
      %v2835 = vld [vmem:[%s9 + $0x208] sm:$0xf]
      %v2836 = vld [vmem:[%s9 + $0x20c] sm:$0xf]
      %v2837 = vld [vmem:[%s9 + $0x210] sm:$0xf]
      %v2838 = vld [vmem:[%s9 + $0x214] sm:$0xf]
      %v2839 = vld [vmem:[%s9 + $0x218] sm:$0xf]
      %v2840 = vld [vmem:[%s9 + $0x21c] sm:$0xf]
      %v2841 = vld [vmem:[%s9 + $0x220] sm:$0xf]
      %v2842 = vld [vmem:[%s9 + $0x224] sm:$0xf]
      %v2843 = vld [vmem:[%s9 + $0x228] sm:$0xf]
      %v2844 = vld [vmem:[%s9 + $0x22c] sm:$0xf]
      %v2845 = vld [vmem:[%s9 + $0x230] sm:$0xf]
      %v2846 = vld [vmem:[%s9 + $0x234] sm:$0xf]
      %v2847 = vld [vmem:[%s9 + $0x238] sm:$0xf]
      %v2848 = vld [vmem:[%s9 + $0x23c] sm:$0xf]
      %v2849 = vld [vmem:[%s10] sm:$0x1]
      %v2851 = vperm.slane %v2849, 0
      %v2854 = vshrl.u32 %v2583, 16
      %v2856 = vshll.u32 %v2583, 16
      %v2858 = vrot.slane %v2856, 1
      %v2859 = vor.u32 %v2854, %v2858
      %v2860 = vsel %vm1395, %v2859, %v2599
      %v2862 = vshrl.u32 %v2600, 16
      %v2864 = vshll.u32 %v2600, 16
      %v2866 = vrot.slane %v2864, 1
      %v2867 = vor.u32 %v2862, %v2866
      %v2869 = vshll.u32 %v2608, 16
      %v2871 = vrot.slane %v2869, 1
      %v2872 = vsel %vm1395, %v2867, %v2871
      %v2874 = vshrl.u32 %v2617, 16
      %v2876 = vshll.u32 %v2617, 16
      %v2878 = vrot.slane %v2876, 1
      %v2879 = vor.u32 %v2874, %v2878
      %v2881 = vshll.u32 %v2619, 16
      %v2883 = vrot.slane %v2881, 1
      %v2884 = vsel %vm1395, %v2879, %v2883
      %v2886 = vshrl.u32 %v2628, 16
      %v2888 = vshll.u32 %v2628, 16
      %v2890 = vrot.slane %v2888, 1
      %v2891 = vor.u32 %v2886, %v2890
      %v2893 = vshll.u32 %v2630, 16
      %v2895 = vrot.slane %v2893, 1
      %v2896 = vsel %vm1395, %v2891, %v2895
      %v2898 = vshrl.u32 %v2640, 16
      %v2900 = vshll.u32 %v2640, 16
      %v2902 = vrot.slane %v2900, 1
      %v2903 = vor.u32 %v2898, %v2902
      %v2905 = vshll.u32 %v2648, 16
      %v2907 = vrot.slane %v2905, 1
      %v2908 = vsel %vm1395, %v2903, %v2907
      %v2909 = vrot.slane %v2638, 1
      %v2910 = vor.u32 %v2635, %v2909
      %v2911 = vrot.slane %v2645, 1
      %v2912 = vsel %vm1395, %v2910, %v2911
      %v2914 = vshrl.u32 %v2670, 16
      %v2916 = vshll.u32 %v2670, 16
      %v2918 = vrot.slane %v2916, 1
      %v2919 = vor.u32 %v2914, %v2918
      %v2921 = vshll.u32 %v2672, 16
      %v2923 = vrot.slane %v2921, 1
      %v2924 = vsel %vm1395, %v2919, %v2923
      %v2926 = vshrl.u32 %v2687, 16
      %v2928 = vshll.u32 %v2687, 16
      %v2930 = vrot.slane %v2928, 1
      %v2931 = vor.u32 %v2926, %v2930
      %v2933 = vshll.u32 %v2696, 16
      %v2935 = vrot.slane %v2933, 1
      %v2936 = vsel %vm1395, %v2931, %v2935
      %v2938 = vshrl.u32 %v2702, 16
      %v2940 = vshll.u32 %v2702, 16
      %v2942 = vrot.slane %v2940, 1
      %v2943 = vor.u32 %v2938, %v2942
      %v2945 = vshll.u32 %v2704, 16
      %v2947 = vrot.slane %v2945, 1
      %v2948 = vsel %vm1395, %v2943, %v2947
      %v2949 = vshrl.u32 %v2608, 16
      %v2951 = vor.u32 %v2949, %v2871
      %v2953 = vshll.u32 %v2611, 16
      %v2955 = vrot.slane %v2953, 1
      %v2956 = vsel %vm1395, %v2951, %v2955
      %v2957 = vshrl.u32 %v2619, 16
      %v2959 = vor.u32 %v2957, %v2883
      %v2961 = vshll.u32 %v2618, 16
      %v2963 = vrot.slane %v2961, 1
      %v2964 = vsel %vm1395, %v2959, %v2963
      %v2965 = vshrl.u32 %v2630, 16
      %v2967 = vor.u32 %v2965, %v2895
      %v2969 = vshll.u32 %v2629, 16
      %v2971 = vrot.slane %v2969, 1
      %v2972 = vsel %vm1395, %v2967, %v2971
      %v2973 = vshrl.u32 %v2648, 16
      %v2975 = vor.u32 %v2973, %v2907
      %v2977 = vshll.u32 %v2656, 16
      %v2979 = vrot.slane %v2977, 1
      %v2980 = vsel %vm1395, %v2975, %v2979
      %v2981 = vor.u32 %v2642, %v2911
      %v2983 = vshll.u32 %v2659, 16
      %v2985 = vrot.slane %v2983, 1
      %v2986 = vsel %vm1395, %v2981, %v2985
      %v2987 = vshrl.u32 %v2672, 16
      %v2989 = vor.u32 %v2987, %v2923
      %v2991 = vshll.u32 %v2671, 16
      %v2993 = vrot.slane %v2991, 1
      %v2994 = vsel %vm1395, %v2989, %v2993
      %v2995 = vshrl.u32 %v2696, 16
      %v2997 = vor.u32 %v2995, %v2935
      %v2999 = vshll.u32 %v2695, 16
      %v3001 = vrot.slane %v2999, 1
      %v3002 = vsel %vm1395, %v2997, %v3001
      %v3003 = vshrl.u32 %v2704, 16
      %v3005 = vor.u32 %v3003, %v2947
      %v3007 = vshll.u32 %v2703, 16
      %v3009 = vrot.slane %v3007, 1
      %v3010 = vsel %vm1395, %v3005, %v3009
      %v3011 = vshrl.u32 %v2611, 16
      %v3013 = vor.u32 %v3011, %v2955
      %v3014 = vshrl.u32 %v2618, 16
      %v3016 = vor.u32 %v3014, %v2963
      %v3017 = vshrl.u32 %v2629, 16
      %v3019 = vor.u32 %v3017, %v2971
      %v3020 = vshrl.u32 %v2656, 16
      %v3022 = vor.u32 %v3020, %v2979
      %v3023 = vshrl.u32 %v2659, 16
      %v3025 = vor.u32 %v3023, %v2985
      %v3026 = vshrl.u32 %v2671, 16
      %v3028 = vor.u32 %v3026, %v2993
      %v3029 = vshrl.u32 %v2695, 16
      %v3031 = vor.u32 %v3029, %v3001
      %v3032 = vshrl.u32 %v2703, 16
      %v3034 = vor.u32 %v3032, %v3009
      %v3206 = vunpack.c.l.b16 %v2705
      %v3207 = vunpack.c.l.b16 %v2706
      %v3208 = vunpack.c.l.b16 %v2707
      %v3209 = vunpack.c.l.b16 %v2708
      %v3210 = vunpack.c.l.b16 %v2709
      %v3211 = vunpack.c.l.b16 %v2710
      %v3212 = vunpack.c.l.b16 %v2711
      %v3213 = vunpack.c.l.b16 %v2712
      %v3214 = vunpack.c.l.b16 %v2713
      %v3215 = vunpack.c.l.b16 %v2714
      %v3216 = vunpack.c.l.b16 %v2715
      %v3217 = vunpack.c.l.b16 %v2716
      %v3218 = vunpack.c.l.b16 %v2717
      %v3219 = vunpack.c.l.b16 %v2718
      %v3220 = vunpack.c.l.b16 %v2719
      %v3221 = vunpack.c.l.b16 %v2720
      %v3222 = vunpack.c.l.b16 %v2721
      %v3223 = vunpack.c.l.b16 %v2722
      %v3224 = vunpack.c.l.b16 %v2723
      %v3225 = vunpack.c.l.b16 %v2724
      %v3226 = vunpack.c.l.b16 %v2725
      %v3227 = vunpack.c.l.b16 %v2726
      %v3228 = vunpack.c.l.b16 %v2727
      %v3229 = vunpack.c.l.b16 %v2728
      %v3230 = vunpack.c.l.b16 %v2729
      %v3231 = vunpack.c.l.b16 %v2730
      %v3232 = vunpack.c.l.b16 %v2731
      %v3233 = vunpack.c.l.b16 %v2732
      %v3234 = vunpack.c.l.b16 %v2733
      %v3235 = vunpack.c.l.b16 %v2734
      %v3236 = vunpack.c.l.b16 %v2735
      %v3237 = vunpack.c.l.b16 %v2736
      %v3238 = vunpack.c.l.b16 %v2737
      %v3239 = vunpack.c.l.b16 %v2738
      %v3240 = vunpack.c.l.b16 %v2739
      %v3241 = vunpack.c.l.b16 %v2740
      %v3242 = vunpack.c.l.b16 %v2741
      %v3243 = vunpack.c.l.b16 %v2742
      %v3244 = vunpack.c.l.b16 %v2743
      %v3245 = vunpack.c.l.b16 %v2744
      %v3246 = vunpack.c.l.b16 %v2745
      %v3247 = vunpack.c.l.b16 %v2746
      %v3248 = vunpack.c.l.b16 %v2747
      %v3249 = vunpack.c.l.b16 %v2748
      %v3250 = vunpack.c.l.b16 %v2749
      %v3251 = vunpack.c.l.b16 %v2750
      %v3252 = vunpack.c.l.b16 %v2751
      %v3253 = vunpack.c.l.b16 %v2752
      %v3254 = vunpack.c.l.b16 %v2753
      %v3255 = vunpack.c.l.b16 %v2754
      %v3256 = vunpack.c.l.b16 %v2755
      %v3257 = vunpack.c.l.b16 %v2756
      %v3258 = vunpack.c.l.b16 %v2757
      %v3259 = vunpack.c.l.b16 %v2758
      %v3260 = vunpack.c.l.b16 %v2759
      %v3261 = vunpack.c.l.b16 %v2760
      %v3262 = vunpack.c.l.b16 %v2761
      %v3263 = vunpack.c.l.b16 %v2762
      %v3264 = vunpack.c.l.b16 %v2763
      %v3265 = vunpack.c.l.b16 %v2764
      %v3266 = vunpack.c.l.b16 %v2765
      %v3267 = vunpack.c.l.b16 %v2766
      %v3268 = vunpack.c.l.b16 %v2767
      %v3269 = vunpack.c.l.b16 %v2768
      %v3270 = vunpack.c.l.b16 %v2769
      %v3271 = vunpack.c.l.b16 %v2770
      %v3272 = vunpack.c.l.b16 %v2771
      %v3273 = vunpack.c.l.b16 %v2772
      %v3274 = vunpack.c.l.b16 %v2773
      %v3275 = vunpack.c.l.b16 %v2774
      %v3276 = vunpack.c.l.b16 %v2775
      %v3277 = vunpack.c.l.b16 %v2776
      %v3278 = vunpack.c.l.b16 %v2777
      %v3279 = vunpack.c.l.b16 %v2778
      %v3280 = vunpack.c.l.b16 %v2779
      %v3281 = vunpack.c.l.b16 %v2780
      %v3282 = vunpack.c.l.b16 %v2781
      %v3283 = vunpack.c.l.b16 %v2782
      %v3284 = vunpack.c.l.b16 %v2783
      %v3285 = vunpack.c.l.b16 %v2784
      %v3286 = vunpack.c.l.b16 %v2785
      %v3287 = vunpack.c.l.b16 %v2786
      %v3288 = vunpack.c.l.b16 %v2787
      %v3289 = vunpack.c.l.b16 %v2788
      %v3290 = vunpack.c.l.b16 %v2789
      %v3291 = vunpack.c.l.b16 %v2790
      %v3292 = vunpack.c.l.b16 %v2791
      %v3293 = vunpack.c.l.b16 %v2792
      %v3294 = vunpack.c.l.b16 %v2793
      %v3295 = vunpack.c.l.b16 %v2794
      %v3296 = vunpack.c.l.b16 %v2795
      %v3297 = vunpack.c.l.b16 %v2796
      %v3298 = vunpack.c.l.b16 %v2797
      %v3299 = vunpack.c.l.b16 %v2798
      %v3300 = vunpack.c.l.b16 %v2799
      %v3301 = vunpack.c.l.b16 %v2800
      %v3302 = vunpack.c.l.b16 %v2801
      %v3303 = vunpack.c.l.b16 %v2802
      %v3304 = vunpack.c.l.b16 %v2803
      %v3305 = vunpack.c.l.b16 %v2804
      %v3306 = vunpack.c.l.b16 %v2805
      %v3307 = vunpack.c.l.b16 %v2806
      %v3308 = vunpack.c.l.b16 %v2807
      %v3309 = vunpack.c.l.b16 %v2808
      %v3310 = vunpack.c.l.b16 %v2809
      %v3311 = vunpack.c.l.b16 %v2810
      %v3312 = vunpack.c.l.b16 %v2811
      %v3313 = vunpack.c.l.b16 %v2812
      %v3314 = vunpack.c.l.b16 %v2813
      %v3315 = vunpack.c.l.b16 %v2814
      %v3316 = vunpack.c.l.b16 %v2815
      %v3317 = vunpack.c.l.b16 %v2816
      %v3318 = vunpack.c.l.b16 %v2817
      %v3319 = vunpack.c.l.b16 %v2818
      %v3320 = vunpack.c.l.b16 %v2819
      %v3321 = vunpack.c.l.b16 %v2820
      %v3322 = vunpack.c.l.b16 %v2821
      %v3323 = vunpack.c.l.b16 %v2822
      %v3324 = vunpack.c.l.b16 %v2823
      %v3325 = vunpack.c.l.b16 %v2824
      %v3326 = vunpack.c.l.b16 %v2825
      %v3327 = vunpack.c.l.b16 %v2826
      %v3328 = vunpack.c.l.b16 %v2827
      %v3329 = vunpack.c.l.b16 %v2828
      %v3330 = vunpack.c.l.b16 %v2829
      %v3331 = vunpack.c.l.b16 %v2830
      %v3332 = vunpack.c.l.b16 %v2831
      %v3333 = vunpack.c.l.b16 %v2832
      %v3334 = vunpack.c.l.b16 %v2833
      %v3335 = vunpack.c.l.b16 %v2834
      %v3336 = vunpack.c.l.b16 %v2835
      %v3337 = vunpack.c.l.b16 %v2836
      %v3338 = vunpack.c.l.b16 %v2837
      %v3339 = vunpack.c.l.b16 %v2838
      %v3340 = vunpack.c.l.b16 %v2839
      %v3341 = vunpack.c.l.b16 %v2840
      %v3342 = vunpack.c.l.b16 %v2841
      %v3343 = vunpack.c.l.b16 %v2842
      %v3344 = vunpack.c.l.b16 %v2843
      %v3345 = vunpack.c.l.b16 %v2844
      %v3346 = vunpack.c.l.b16 %v2845
      %v3347 = vunpack.c.l.b16 %v2846
      %v3348 = vunpack.c.l.b16 %v2847
      %v3349 = vunpack.c.l.b16 %v2848
      %v3350 = vpack.c.b16 %v3207, %v3206
      %v3351 = vpack.c.b16 %v3209, %v3208
      %v3352 = vpack.c.b16 %v3211, %v3210
      %v3353 = vpack.c.b16 %v3213, %v3212
      %v3354 = vpack.c.b16 %v3215, %v3214
      %v3355 = vpack.c.b16 %v3217, %v3216
      %v3356 = vpack.c.b16 %v3219, %v3218
      %v3357 = vpack.c.b16 %v3221, %v3220
      %v3358 = vpack.c.b16 %v3223, %v3222
      %v3359 = vpack.c.b16 %v3225, %v3224
      %v3360 = vpack.c.b16 %v3227, %v3226
      %v3361 = vpack.c.b16 %v3229, %v3228
      %v3362 = vpack.c.b16 %v3231, %v3230
      %v3363 = vpack.c.b16 %v3233, %v3232
      %v3364 = vpack.c.b16 %v3235, %v3234
      %v3365 = vpack.c.b16 %v3237, %v3236
      %v3366 = vpack.c.b16 %v3239, %v3238
      %v3367 = vpack.c.b16 %v3241, %v3240
      %v3368 = vpack.c.b16 %v3243, %v3242
      %v3369 = vpack.c.b16 %v3245, %v3244
      %v3370 = vpack.c.b16 %v3247, %v3246
      %v3371 = vpack.c.b16 %v3249, %v3248
      %v3372 = vpack.c.b16 %v3251, %v3250
      %v3373 = vpack.c.b16 %v3253, %v3252
      %v3374 = vpack.c.b16 %v3255, %v3254
      %v3375 = vpack.c.b16 %v3257, %v3256
      %v3376 = vpack.c.b16 %v3259, %v3258
      %v3377 = vpack.c.b16 %v3261, %v3260
      %v3378 = vpack.c.b16 %v3263, %v3262
      %v3379 = vpack.c.b16 %v3265, %v3264
      %v3380 = vpack.c.b16 %v3267, %v3266
      %v3381 = vpack.c.b16 %v3269, %v3268
      %v3382 = vpack.c.b16 %v3271, %v3270
      %v3383 = vpack.c.b16 %v3273, %v3272
      %v3384 = vpack.c.b16 %v3275, %v3274
      %v3385 = vpack.c.b16 %v3277, %v3276
      %v3386 = vpack.c.b16 %v3279, %v3278
      %v3387 = vpack.c.b16 %v3281, %v3280
      %v3388 = vpack.c.b16 %v3283, %v3282
      %v3389 = vpack.c.b16 %v3285, %v3284
      %v3390 = vpack.c.b16 %v3287, %v3286
      %v3391 = vpack.c.b16 %v3289, %v3288
      %v3392 = vpack.c.b16 %v3291, %v3290
      %v3393 = vpack.c.b16 %v3293, %v3292
      %v3394 = vpack.c.b16 %v3295, %v3294
      %v3395 = vpack.c.b16 %v3297, %v3296
      %v3396 = vpack.c.b16 %v3299, %v3298
      %v3397 = vpack.c.b16 %v3301, %v3300
      %v3398 = vpack.c.b16 %v3303, %v3302
      %v3399 = vpack.c.b16 %v3305, %v3304
      %v3400 = vpack.c.b16 %v3307, %v3306
      %v3401 = vpack.c.b16 %v3309, %v3308
      %v3402 = vpack.c.b16 %v3311, %v3310
      %v3403 = vpack.c.b16 %v3313, %v3312
      %v3404 = vpack.c.b16 %v3315, %v3314
      %v3405 = vpack.c.b16 %v3317, %v3316
      %v3406 = vpack.c.b16 %v3319, %v3318
      %v3407 = vpack.c.b16 %v3321, %v3320
      %v3408 = vpack.c.b16 %v3323, %v3322
      %v3409 = vpack.c.b16 %v3325, %v3324
      %v3410 = vpack.c.b16 %v3327, %v3326
      %v3411 = vpack.c.b16 %v3329, %v3328
      %v3412 = vpack.c.b16 %v3331, %v3330
      %v3413 = vpack.c.b16 %v3333, %v3332
      %v3414 = vpack.c.b16 %v3335, %v3334
      %v3415 = vpack.c.b16 %v3337, %v3336
      %v3416 = vpack.c.b16 %v3339, %v3338
      %v3417 = vpack.c.b16 %v3341, %v3340
      %v3418 = vpack.c.b16 %v3343, %v3342
      %v3419 = vpack.c.b16 %v3345, %v3344
      %v3420 = vpack.c.b16 %v3347, %v3346
      %v3421 = vpack.c.b16 %v3349, %v3348
      %3494 = vmatpush.bf16.msra.mxu0 %v3357
      %3495 = vmatpush.bf16.msra.mxu0 %v3356
      %3496 = vmatpush.bf16.msra.mxu0 %v3355
      %3497 = vmatpush.bf16.msra.mxu0 %v3354
      %3498 = vmatpush.bf16.msra.mxu0 %v3353
      %3499 = vmatpush.bf16.msra.mxu0 %v3352
      %3500 = vmatpush.bf16.msra.mxu0 %v3351
      %3501 = vmatpush.bf16.msra.mxu0 %v3350
      %3502 = vmatmul.bf16.gmra.mxu0 %v2860
      %v3503 = vpop.f32.mrf.mxu0
      %v3504 = vadd.f32 %v2851, %v3503
      %v3505 = vpop.f32.mrf.mxu0
      %v3506 = vadd.f32 %v2851, %v3505
      %3507 = vmatmul.bf16.gmra.mxu0 %v2608
      %v3508 = vpop.f32.mrf.mxu0
      %v3509 = vadd.f32 %v2851, %v3508
      %v3510 = vpop.f32.mrf.mxu0
      %v3511 = vadd.f32 %v2851, %v3510
      %3512 = vmatmul.bf16.gmra.mxu0 %v2611
      %v3513 = vpop.f32.mrf.mxu0
      %v3514 = vadd.f32 %v2851, %v3513
      %v3515 = vpop.f32.mrf.mxu0
      %3516 = vdwg.mxu0
      %3517 = vmatpush.bf16.msra.mxu0 %v3365
      %3518 = vmatpush.bf16.msra.mxu0 %v3364
      %3519 = vmatpush.bf16.msra.mxu0 %v3363
      %3520 = vmatpush.bf16.msra.mxu0 %v3362
      %3521 = vmatpush.bf16.msra.mxu0 %v3361
      %3522 = vmatpush.bf16.msra.mxu0 %v3360
      %3523 = vmatpush.bf16.msra.mxu0 %v3359
      %3524 = vmatpush.bf16.msra.mxu0 %v3358
      %3525 = vmatmul.bf16.gmra.mxu0 %v2872
      %v3526 = vpop.f32.mrf.mxu0
      %v3527 = vadd.f32 %v3504, %v3526
      %v3528 = vpop.f32.mrf.mxu0
      %v3529 = vadd.f32 %v3506, %v3528
      %3530 = vmatmul.bf16.gmra.mxu0 %v2956
      %v3531 = vpop.f32.mrf.mxu0
      %v3532 = vadd.f32 %v3509, %v3531
      %v3533 = vpop.f32.mrf.mxu0
      %v3534 = vadd.f32 %v3511, %v3533
      %3535 = vmatmul.bf16.gmra.mxu0 %v3013
      %v3536 = vpop.f32.mrf.mxu0
      %v3537 = vadd.f32 %v3514, %v3536
      %v3538 = vpop.f32.mrf.mxu0
      %3539 = vdwg.mxu0
      %3540 = vmatpush.bf16.msra.mxu0 %v3373
      %3541 = vmatpush.bf16.msra.mxu0 %v3372
      %3542 = vmatpush.bf16.msra.mxu0 %v3371
      %3543 = vmatpush.bf16.msra.mxu0 %v3370
      %3544 = vmatpush.bf16.msra.mxu0 %v3369
      %3545 = vmatpush.bf16.msra.mxu0 %v3368
      %3546 = vmatpush.bf16.msra.mxu0 %v3367
      %3547 = vmatpush.bf16.msra.mxu0 %v3366
      %3548 = vmatmul.bf16.gmra.mxu0 %v2884
      %v3549 = vpop.f32.mrf.mxu0
      %v3550 = vadd.f32 %v3527, %v3549
      %v3551 = vpop.f32.mrf.mxu0
      %v3552 = vadd.f32 %v3529, %v3551
      %3553 = vmatmul.bf16.gmra.mxu0 %v2964
      %v3554 = vpop.f32.mrf.mxu0
      %v3555 = vadd.f32 %v3532, %v3554
      %v3556 = vpop.f32.mrf.mxu0
      %v3557 = vadd.f32 %v3534, %v3556
      %3558 = vmatmul.bf16.gmra.mxu0 %v3016
      %v3559 = vpop.f32.mrf.mxu0
      %v3560 = vadd.f32 %v3537, %v3559
      %v3561 = vpop.f32.mrf.mxu0
      %3562 = vdwg.mxu0
      %3563 = vmatpush.bf16.msra.mxu0 %v3381
      %3564 = vmatpush.bf16.msra.mxu0 %v3380
      %3565 = vmatpush.bf16.msra.mxu0 %v3379
      %3566 = vmatpush.bf16.msra.mxu0 %v3378
      %3567 = vmatpush.bf16.msra.mxu0 %v3377
      %3568 = vmatpush.bf16.msra.mxu0 %v3376
      %3569 = vmatpush.bf16.msra.mxu0 %v3375
      %3570 = vmatpush.bf16.msra.mxu0 %v3374
      %3571 = vmatmul.bf16.gmra.mxu0 %v2896
      %v3572 = vpop.f32.mrf.mxu0
      %v3573 = vadd.f32 %v3550, %v3572
      %v3574 = vpop.f32.mrf.mxu0
      %v3575 = vadd.f32 %v3552, %v3574
      %3576 = vmatmul.bf16.gmra.mxu0 %v2972
      %v3577 = vpop.f32.mrf.mxu0
      %v3578 = vadd.f32 %v3555, %v3577
      %v3579 = vpop.f32.mrf.mxu0
      %v3580 = vadd.f32 %v3557, %v3579
      %3581 = vmatmul.bf16.gmra.mxu0 %v3019
      %v3582 = vpop.f32.mrf.mxu0
      %v3583 = vadd.f32 %v3560, %v3582
      %v3584 = vpop.f32.mrf.mxu0
      %3585 = vdwg.mxu0
      %3586 = vmatpush.bf16.msra.mxu0 %v3389
      %3587 = vmatpush.bf16.msra.mxu0 %v3388
      %3588 = vmatpush.bf16.msra.mxu0 %v3387
      %3589 = vmatpush.bf16.msra.mxu0 %v3386
      %3590 = vmatpush.bf16.msra.mxu0 %v3385
      %3591 = vmatpush.bf16.msra.mxu0 %v3384
      %3592 = vmatpush.bf16.msra.mxu0 %v3383
      %3593 = vmatpush.bf16.msra.mxu0 %v3382
      %3594 = vmatmul.bf16.gmra.mxu0 %v2908
      %v3595 = vpop.f32.mrf.mxu0
      %v3596 = vadd.f32 %v3573, %v3595
      %v3597 = vpop.f32.mrf.mxu0
      %v3598 = vadd.f32 %v3575, %v3597
      %3599 = vmatmul.bf16.gmra.mxu0 %v2980
      %v3600 = vpop.f32.mrf.mxu0
      %v3601 = vadd.f32 %v3578, %v3600
      %v3602 = vpop.f32.mrf.mxu0
      %v3603 = vadd.f32 %v3580, %v3602
      %3604 = vmatmul.bf16.gmra.mxu0 %v3022
      %v3605 = vpop.f32.mrf.mxu0
      %v3606 = vadd.f32 %v3583, %v3605
      %v3607 = vpop.f32.mrf.mxu0
      %3608 = vdwg.mxu0
      %3609 = vmatpush.bf16.msra.mxu0 %v3397
      %3610 = vmatpush.bf16.msra.mxu0 %v3396
      %3611 = vmatpush.bf16.msra.mxu0 %v3395
      %3612 = vmatpush.bf16.msra.mxu0 %v3394
      %3613 = vmatpush.bf16.msra.mxu0 %v3393
      %3614 = vmatpush.bf16.msra.mxu0 %v3392
      %3615 = vmatpush.bf16.msra.mxu0 %v3391
      %3616 = vmatpush.bf16.msra.mxu0 %v3390
      %3617 = vmatmul.bf16.gmra.mxu0 %v2912
      %v3618 = vpop.f32.mrf.mxu0
      %v3619 = vadd.f32 %v3596, %v3618
      %v3620 = vpop.f32.mrf.mxu0
      %v3621 = vadd.f32 %v3598, %v3620
      %3622 = vmatmul.bf16.gmra.mxu0 %v2986
      %v3623 = vpop.f32.mrf.mxu0
      %v3624 = vadd.f32 %v3601, %v3623
      %v3625 = vpop.f32.mrf.mxu0
      %v3626 = vadd.f32 %v3603, %v3625
      %3627 = vmatmul.bf16.gmra.mxu0 %v3025
      %v3628 = vpop.f32.mrf.mxu0
      %v3629 = vadd.f32 %v3606, %v3628
      %v3630 = vpop.f32.mrf.mxu0
      %3631 = vdwg.mxu0
      %3632 = vmatpush.bf16.msra.mxu0 %v3405
      %3633 = vmatpush.bf16.msra.mxu0 %v3404
      %3634 = vmatpush.bf16.msra.mxu0 %v3403
      %3635 = vmatpush.bf16.msra.mxu0 %v3402
      %3636 = vmatpush.bf16.msra.mxu0 %v3401
      %3637 = vmatpush.bf16.msra.mxu0 %v3400
      %3638 = vmatpush.bf16.msra.mxu0 %v3399
      %3639 = vmatpush.bf16.msra.mxu0 %v3398
      %3640 = vmatmul.bf16.gmra.mxu0 %v2924
      %v3641 = vpop.f32.mrf.mxu0
      %v3642 = vadd.f32 %v3619, %v3641
      %v3643 = vpop.f32.mrf.mxu0
      %v3644 = vadd.f32 %v3621, %v3643
      %3645 = vmatmul.bf16.gmra.mxu0 %v2994
      %v3646 = vpop.f32.mrf.mxu0
      %v3647 = vadd.f32 %v3624, %v3646
      %v3648 = vpop.f32.mrf.mxu0
      %v3649 = vadd.f32 %v3626, %v3648
      %3650 = vmatmul.bf16.gmra.mxu0 %v3028
      %v3651 = vpop.f32.mrf.mxu0
      %v3652 = vadd.f32 %v3629, %v3651
      %v3653 = vpop.f32.mrf.mxu0
      %3654 = vdwg.mxu0
      %3655 = vmatpush.bf16.msra.mxu0 %v3413
      %3656 = vmatpush.bf16.msra.mxu0 %v3412
      %3657 = vmatpush.bf16.msra.mxu0 %v3411
      %3658 = vmatpush.bf16.msra.mxu0 %v3410
      %3659 = vmatpush.bf16.msra.mxu0 %v3409
      %3660 = vmatpush.bf16.msra.mxu0 %v3408
      %3661 = vmatpush.bf16.msra.mxu0 %v3407
      %3662 = vmatpush.bf16.msra.mxu0 %v3406
      %3663 = vmatmul.bf16.gmra.mxu0 %v2936
      %v3664 = vpop.f32.mrf.mxu0
      %v3665 = vadd.f32 %v3642, %v3664
      %v3666 = vpop.f32.mrf.mxu0
      %v3667 = vadd.f32 %v3644, %v3666
      %3668 = vmatmul.bf16.gmra.mxu0 %v3002
      %v3669 = vpop.f32.mrf.mxu0
      %v3670 = vadd.f32 %v3647, %v3669
      %v3671 = vpop.f32.mrf.mxu0
      %v3672 = vadd.f32 %v3649, %v3671
      %3673 = vmatmul.bf16.gmra.mxu0 %v3031
      %v3674 = vpop.f32.mrf.mxu0
      %v3675 = vadd.f32 %v3652, %v3674
      %v3676 = vpop.f32.mrf.mxu0
      %3677 = vdwg.mxu0
      %3678 = vmatpush.bf16.msra.mxu0 %v3421
      %3679 = vmatpush.bf16.msra.mxu0 %v3420
      %3680 = vmatpush.bf16.msra.mxu0 %v3419
      %3681 = vmatpush.bf16.msra.mxu0 %v3418
      %3682 = vmatpush.bf16.msra.mxu0 %v3417
      %3683 = vmatpush.bf16.msra.mxu0 %v3416
      %3684 = vmatpush.bf16.msra.mxu0 %v3415
      %3685 = vmatpush.bf16.msra.mxu0 %v3414
      %3686 = vmatmul.bf16.gmra.mxu0 %v2948
      %v3687 = vpop.f32.mrf.mxu0
      %v3688 = vadd.f32 %v3665, %v3687
      %v3689 = vpop.f32.mrf.mxu0
      %v3690 = vadd.f32 %v3667, %v3689
      %3691 = vmatmul.bf16.gmra.mxu0 %v3010
      %v3692 = vpop.f32.mrf.mxu0
      %v3693 = vadd.f32 %v3670, %v3692
      %v3694 = vpop.f32.mrf.mxu0
      %v3695 = vadd.f32 %v3672, %v3694
      %3696 = vmatmul.bf16.gmra.mxu0 %v3034
      %v3697 = vpop.f32.mrf.mxu0
      %v3698 = vadd.f32 %v3675, %v3697
      %v3699 = vpop.f32.mrf.mxu0
      %3700 = vdwg.mxu0
      %v3701 = vadd.f32 %v3688, %v1330
      %v3702 = vadd.f32 %v3690, %v1333
      %v3703 = vadd.f32 %v3693, %v1336
      %v3704 = vadd.f32 %v3695, %v1339
      %v3705 = vadd.f32 %v3698, %v1342
      %v3706 = vmax.f32 %v3701, 0.0
      %v3707 = vmax.f32 %v3702, 0.0
      %v3708 = vmax.f32 %v3703, 0.0
      %v3709 = vmax.f32 %v3704, 0.0
      %v3710 = vmax.f32 %v3705, 0.0
      %v3711 = vsel %vm2538, %v3706, 0.0
      %v3712 = vsel %vm2539, %v3707, 0.0
      %v3713 = vsel %vm2540, %v3708, 0.0
      %v3714 = vsel %vm2541, %v3709, 0.0
      %v3715 = vsel %vm2542, %v3710, 0.0
      %v3716 = vpack.c.bf16 %v3711, %v3711
      %v3717 = vpack.c.bf16 %v3712, %v3712
      %v3718 = vpack.c.bf16 %v3713, %v3713
      %v3719 = vpack.c.bf16 %v3714, %v3714
      %v3720 = vpack.c.bf16 %v3715, %v3715
      %3721 = vst [vmem:[#allocation2 + $0x8] sm:$0xf] %v3716
      %3722 = vst [vmem:[#allocation2 + $0xc] sm:$0xf] %v3717
      %3723 = vst [vmem:[#allocation2 + $0x10] sm:$0xf] %v3718
      %3724 = vst [vmem:[#allocation2 + $0x14] sm:$0xf] %v3719
      %3725 = vst [vmem:[#allocation2 + $0x18] sm:$0x3] %v3720
      %v3726 = vld [vmem:[#allocation2 + $0x4] sm:$0xf]
      %v3727 = vld [vmem:[#allocation2 + $0x8] sm:$0xf]
      %v3728 = vld [vmem:[#allocation2 + $0xc] sm:$0xf]
      %v3729 = vld [vmem:[#allocation2 + $0x10] sm:$0xf]
      %v3730 = vld [vmem:[#allocation2 + $0x14] sm:$0x7]
      %v3731 = vld [vmem:[#allocation2 + $0x4] sm:$0xe]
      %v3732 = vld [vmem:[#allocation2 + $0x14] sm:$0xf]
      %v3733 = vld [vmem:[#allocation2 + $0x4] sm:$0x8]
      %v3734 = vld [vmem:[#allocation2 + $0x18] sm:$0x3]
      %v3735 = vld [vmem:[#allocation2 + $0x18] sm:$0x7]
      %v3736 = vld [vmem:[#allocation2 + $0x8] sm:$0xc]
      %v3737 = vld [vmem:[#allocation2 + $0x18] sm:$0xf]
      %v3738 = vld [vmem:[#allocation2 + $0x1c] sm:$0x1]
      %v3739 = vld [vmem:[#allocation2 + $0x8] sm:$0x8]
      %v3740 = vld [vmem:[#allocation2 + $0x1c] sm:$0x3]
      %v3746 = vunpack.c.l.b16 %v3726
      %v3747 = vunpack.c.l.b16 %v3727
      %v3748 = vunpack.c.l.b16 %v3728
      %v3749 = vunpack.c.l.b16 %v3729
      %v3750 = vunpack.c.l.b16 %v3730
      %v3751 = vpack.c.b16 %v3747, %v3746
      %v3752 = vpack.c.b16 %v3749, %v3748
      %v3753 = vpack.c.b16 %v3750, %v3750
      %v3755 = vunpack.c.l.b16 %v3731
      %v3756 = vpack.c.b16 %v3747, %v3755
      %v3758 = vshrl.u32 %v3756, 16
      %v3760 = vshll.u32 %v3756, 16
      %v3762 = vrot.slane %v3760, 1
      %v3763 = vor.u32 %v3758, %v3762
      %v3765 = vshll.u32 %v3752, 16
      %v3767 = vrot.slane %v3765, 1
      %v3768 = vsel %vm1395, %v3763, %v3767
      %v3769 = vshrl.u32 %v3752, 16
      %v3771 = vor.u32 %v3769, %v3767
      %v3773 = vshll.u32 %v3753, 16
      %v3775 = vrot.slane %v3773, 1
      %v3776 = vsel %vm1395, %v3771, %v3775
      %v3777 = vshrl.u32 %v3753, 16
      %v3779 = vor.u32 %v3777, %v3775
      %v3781 = vunpack.c.l.b16 %v3732
      %v3782 = vpack.c.b16 %v3781, %v3781
      %v3783 = vrot.slane %v3756, 1
      %v3784 = vrot.slane %v3752, 1
      %v3785 = vsel %vm1422, %v3783, %v3784
      %v3786 = vrot.slane %v3782, 1
      %v3787 = vsel %vm1422, %v3784, %v3786
      %v3790 = vunpack.c.l.b16 %v3733
      %v3791 = vunpack.c.l.b16 %v3734
      %v3792 = vpack.c.b16 %v3747, %v3790
      %v3793 = vpack.c.b16 %v3791, %v3781
      %v3794 = vrot.slane %v3792, 3
      %v3795 = vrot.slane %v3752, 3
      %v3796 = vsel %vm1434, %v3794, %v3795
      %v3797 = vrot.slane %v3793, 3
      %v3798 = vsel %vm1434, %v3795, %v3797
      %v3799 = vpack.c.b16 %v3748, %v3747
      %v3800 = vpack.c.b16 %v3781, %v3749
      %v3801 = vpack.c.b16 %v3791, %v3791
      %v3803 = vshrl.u32 %v3799, 16
      %v3805 = vrot.slane %v3803, 7
      %v3806 = vshll.u32 %v3799, 16
      %v3808 = vor.u32 %v3805, %v3806
      %v3810 = vshrl.u32 %v3800, 16
      %v3812 = vrot.slane %v3810, 7
      %v3813 = vshll.u32 %v3800, 16
      %v3815 = vor.u32 %v3812, %v3813
      %v3816 = vsel %vm1443, %v3805, %v3815
      %v3818 = vshrl.u32 %v3801, 16
      %v3820 = vrot.slane %v3818, 7
      %v3821 = vshll.u32 %v3801, 16
      %v3823 = vor.u32 %v3820, %v3821
      %v3824 = vsel %vm1443, %v3812, %v3823
      %v3826 = vunpack.c.l.b16 %v3735
      %v3827 = vpack.c.b16 %v3826, %v3826
      %v3831 = vunpack.c.l.b16 %v3736
      %v3832 = vunpack.c.l.b16 %v3737
      %v3833 = vunpack.c.l.b16 %v3738
      %v3834 = vpack.c.b16 %v3748, %v3831
      %v3835 = vpack.c.b16 %v3833, %v3832
      %v3836 = vrot.slane %v3834, 2
      %v3837 = vrot.slane %v3800, 2
      %v3838 = vsel %vm1478, %v3836, %v3837
      %v3839 = vrot.slane %v3835, 2
      %v3840 = vsel %vm1478, %v3837, %v3839
      %v3842 = vunpack.c.l.b16 %v3739
      %v3843 = vpack.c.b16 %v3748, %v3842
      %v3845 = vshrl.u32 %v3843, 16
      %v3847 = vrot.slane %v3845, 2
      %v3848 = vshll.u32 %v3843, 16
      %v3850 = vrot.slane %v3848, 3
      %v3851 = vor.u32 %v3847, %v3850
      %v3852 = vrot.slane %v3810, 2
      %v3853 = vrot.slane %v3813, 3
      %v3854 = vor.u32 %v3852, %v3853
      %v3855 = vsel %vm1487, %v3851, %v3854
      %v3857 = vshrl.u32 %v3835, 16
      %v3859 = vrot.slane %v3857, 2
      %v3860 = vshll.u32 %v3835, 16
      %v3862 = vrot.slane %v3860, 3
      %v3863 = vor.u32 %v3859, %v3862
      %v3864 = vsel %vm1487, %v3854, %v3863
      %v3866 = vunpack.c.l.b16 %v3740
      %v3867 = vpack.c.b16 %v3866, %v3832
      %v3868 = vrot.slane %v3843, 3
      %v3869 = vrot.slane %v3800, 3
      %v3870 = vsel %vm1434, %v3868, %v3869
      %v3871 = vrot.slane %v3867, 3
      %v3872 = vsel %vm1434, %v3869, %v3871
      %v3873 = vld [vmem:[%s11] sm:$0xf]
      %v3874 = vld [vmem:[%s11 + $0x4] sm:$0xf]
      %v3875 = vld [vmem:[%s11 + $0x8] sm:$0xf]
      %v3876 = vld [vmem:[%s11 + $0xc] sm:$0xf]
      %v3877 = vld [vmem:[%s11 + $0x10] sm:$0xf]
      %v3878 = vld [vmem:[%s11 + $0x14] sm:$0xf]
      %v3879 = vld [vmem:[%s11 + $0x18] sm:$0xf]
      %v3880 = vld [vmem:[%s11 + $0x1c] sm:$0xf]
      %v3881 = vld [vmem:[%s11 + $0x20] sm:$0xf]
      %v3882 = vld [vmem:[%s11 + $0x24] sm:$0xf]
      %v3883 = vld [vmem:[%s11 + $0x28] sm:$0xf]
      %v3884 = vld [vmem:[%s11 + $0x2c] sm:$0xf]
      %v3885 = vld [vmem:[%s11 + $0x30] sm:$0xf]
      %v3886 = vld [vmem:[%s11 + $0x34] sm:$0xf]
      %v3887 = vld [vmem:[%s11 + $0x38] sm:$0xf]
      %v3888 = vld [vmem:[%s11 + $0x3c] sm:$0xf]
      %v3889 = vld [vmem:[%s11 + $0x40] sm:$0xf]
      %v3890 = vld [vmem:[%s11 + $0x44] sm:$0xf]
      %v3891 = vld [vmem:[%s11 + $0x48] sm:$0xf]
      %v3892 = vld [vmem:[%s11 + $0x4c] sm:$0xf]
      %v3893 = vld [vmem:[%s11 + $0x50] sm:$0xf]
      %v3894 = vld [vmem:[%s11 + $0x54] sm:$0xf]
      %v3895 = vld [vmem:[%s11 + $0x58] sm:$0xf]
      %v3896 = vld [vmem:[%s11 + $0x5c] sm:$0xf]
      %v3897 = vld [vmem:[%s11 + $0x60] sm:$0xf]
      %v3898 = vld [vmem:[%s11 + $0x64] sm:$0xf]
      %v3899 = vld [vmem:[%s11 + $0x68] sm:$0xf]
      %v3900 = vld [vmem:[%s11 + $0x6c] sm:$0xf]
      %v3901 = vld [vmem:[%s11 + $0x70] sm:$0xf]
      %v3902 = vld [vmem:[%s11 + $0x74] sm:$0xf]
      %v3903 = vld [vmem:[%s11 + $0x78] sm:$0xf]
      %v3904 = vld [vmem:[%s11 + $0x7c] sm:$0xf]
      %v3905 = vld [vmem:[%s11 + $0x80] sm:$0xf]
      %v3906 = vld [vmem:[%s11 + $0x84] sm:$0xf]
      %v3907 = vld [vmem:[%s11 + $0x88] sm:$0xf]
      %v3908 = vld [vmem:[%s11 + $0x8c] sm:$0xf]
      %v3909 = vld [vmem:[%s11 + $0x90] sm:$0xf]
      %v3910 = vld [vmem:[%s11 + $0x94] sm:$0xf]
      %v3911 = vld [vmem:[%s11 + $0x98] sm:$0xf]
      %v3912 = vld [vmem:[%s11 + $0x9c] sm:$0xf]
      %v3913 = vld [vmem:[%s11 + $0xa0] sm:$0xf]
      %v3914 = vld [vmem:[%s11 + $0xa4] sm:$0xf]
      %v3915 = vld [vmem:[%s11 + $0xa8] sm:$0xf]
      %v3916 = vld [vmem:[%s11 + $0xac] sm:$0xf]
      %v3917 = vld [vmem:[%s11 + $0xb0] sm:$0xf]
      %v3918 = vld [vmem:[%s11 + $0xb4] sm:$0xf]
      %v3919 = vld [vmem:[%s11 + $0xb8] sm:$0xf]
      %v3920 = vld [vmem:[%s11 + $0xbc] sm:$0xf]
      %v3921 = vld [vmem:[%s11 + $0xc0] sm:$0xf]
      %v3922 = vld [vmem:[%s11 + $0xc4] sm:$0xf]
      %v3923 = vld [vmem:[%s11 + $0xc8] sm:$0xf]
      %v3924 = vld [vmem:[%s11 + $0xcc] sm:$0xf]
      %v3925 = vld [vmem:[%s11 + $0xd0] sm:$0xf]
      %v3926 = vld [vmem:[%s11 + $0xd4] sm:$0xf]
      %v3927 = vld [vmem:[%s11 + $0xd8] sm:$0xf]
      %v3928 = vld [vmem:[%s11 + $0xdc] sm:$0xf]
      %v3929 = vld [vmem:[%s11 + $0xe0] sm:$0xf]
      %v3930 = vld [vmem:[%s11 + $0xe4] sm:$0xf]
      %v3931 = vld [vmem:[%s11 + $0xe8] sm:$0xf]
      %v3932 = vld [vmem:[%s11 + $0xec] sm:$0xf]
      %v3933 = vld [vmem:[%s11 + $0xf0] sm:$0xf]
      %v3934 = vld [vmem:[%s11 + $0xf4] sm:$0xf]
      %v3935 = vld [vmem:[%s11 + $0xf8] sm:$0xf]
      %v3936 = vld [vmem:[%s11 + $0xfc] sm:$0xf]
      %v3937 = vld [vmem:[%s11 + $0x100] sm:$0xf]
      %v3938 = vld [vmem:[%s11 + $0x104] sm:$0xf]
      %v3939 = vld [vmem:[%s11 + $0x108] sm:$0xf]
      %v3940 = vld [vmem:[%s11 + $0x10c] sm:$0xf]
      %v3941 = vld [vmem:[%s11 + $0x110] sm:$0xf]
      %v3942 = vld [vmem:[%s11 + $0x114] sm:$0xf]
      %v3943 = vld [vmem:[%s11 + $0x118] sm:$0xf]
      %v3944 = vld [vmem:[%s11 + $0x11c] sm:$0xf]
      %v3945 = vld [vmem:[%s11 + $0x120] sm:$0xf]
      %v3946 = vld [vmem:[%s11 + $0x124] sm:$0xf]
      %v3947 = vld [vmem:[%s11 + $0x128] sm:$0xf]
      %v3948 = vld [vmem:[%s11 + $0x12c] sm:$0xf]
      %v3949 = vld [vmem:[%s11 + $0x130] sm:$0xf]
      %v3950 = vld [vmem:[%s11 + $0x134] sm:$0xf]
      %v3951 = vld [vmem:[%s11 + $0x138] sm:$0xf]
      %v3952 = vld [vmem:[%s11 + $0x13c] sm:$0xf]
      %v3953 = vld [vmem:[%s11 + $0x140] sm:$0xf]
      %v3954 = vld [vmem:[%s11 + $0x144] sm:$0xf]
      %v3955 = vld [vmem:[%s11 + $0x148] sm:$0xf]
      %v3956 = vld [vmem:[%s11 + $0x14c] sm:$0xf]
      %v3957 = vld [vmem:[%s11 + $0x150] sm:$0xf]
      %v3958 = vld [vmem:[%s11 + $0x154] sm:$0xf]
      %v3959 = vld [vmem:[%s11 + $0x158] sm:$0xf]
      %v3960 = vld [vmem:[%s11 + $0x15c] sm:$0xf]
      %v3961 = vld [vmem:[%s11 + $0x160] sm:$0xf]
      %v3962 = vld [vmem:[%s11 + $0x164] sm:$0xf]
      %v3963 = vld [vmem:[%s11 + $0x168] sm:$0xf]
      %v3964 = vld [vmem:[%s11 + $0x16c] sm:$0xf]
      %v3965 = vld [vmem:[%s11 + $0x170] sm:$0xf]
      %v3966 = vld [vmem:[%s11 + $0x174] sm:$0xf]
      %v3967 = vld [vmem:[%s11 + $0x178] sm:$0xf]
      %v3968 = vld [vmem:[%s11 + $0x17c] sm:$0xf]
      %v3969 = vld [vmem:[%s11 + $0x180] sm:$0xf]
      %v3970 = vld [vmem:[%s11 + $0x184] sm:$0xf]
      %v3971 = vld [vmem:[%s11 + $0x188] sm:$0xf]
      %v3972 = vld [vmem:[%s11 + $0x18c] sm:$0xf]
      %v3973 = vld [vmem:[%s11 + $0x190] sm:$0xf]
      %v3974 = vld [vmem:[%s11 + $0x194] sm:$0xf]
      %v3975 = vld [vmem:[%s11 + $0x198] sm:$0xf]
      %v3976 = vld [vmem:[%s11 + $0x19c] sm:$0xf]
      %v3977 = vld [vmem:[%s11 + $0x1a0] sm:$0xf]
      %v3978 = vld [vmem:[%s11 + $0x1a4] sm:$0xf]
      %v3979 = vld [vmem:[%s11 + $0x1a8] sm:$0xf]
      %v3980 = vld [vmem:[%s11 + $0x1ac] sm:$0xf]
      %v3981 = vld [vmem:[%s11 + $0x1b0] sm:$0xf]
      %v3982 = vld [vmem:[%s11 + $0x1b4] sm:$0xf]
      %v3983 = vld [vmem:[%s11 + $0x1b8] sm:$0xf]
      %v3984 = vld [vmem:[%s11 + $0x1bc] sm:$0xf]
      %v3985 = vld [vmem:[%s11 + $0x1c0] sm:$0xf]
      %v3986 = vld [vmem:[%s11 + $0x1c4] sm:$0xf]
      %v3987 = vld [vmem:[%s11 + $0x1c8] sm:$0xf]
      %v3988 = vld [vmem:[%s11 + $0x1cc] sm:$0xf]
      %v3989 = vld [vmem:[%s11 + $0x1d0] sm:$0xf]
      %v3990 = vld [vmem:[%s11 + $0x1d4] sm:$0xf]
      %v3991 = vld [vmem:[%s11 + $0x1d8] sm:$0xf]
      %v3992 = vld [vmem:[%s11 + $0x1dc] sm:$0xf]
      %v3993 = vld [vmem:[%s11 + $0x1e0] sm:$0xf]
      %v3994 = vld [vmem:[%s11 + $0x1e4] sm:$0xf]
      %v3995 = vld [vmem:[%s11 + $0x1e8] sm:$0xf]
      %v3996 = vld [vmem:[%s11 + $0x1ec] sm:$0xf]
      %v3997 = vld [vmem:[%s11 + $0x1f0] sm:$0xf]
      %v3998 = vld [vmem:[%s11 + $0x1f4] sm:$0xf]
      %v3999 = vld [vmem:[%s11 + $0x1f8] sm:$0xf]
      %v4000 = vld [vmem:[%s11 + $0x1fc] sm:$0xf]
      %v4001 = vld [vmem:[%s11 + $0x200] sm:$0xf]
      %v4002 = vld [vmem:[%s11 + $0x204] sm:$0xf]
      %v4003 = vld [vmem:[%s11 + $0x208] sm:$0xf]
      %v4004 = vld [vmem:[%s11 + $0x20c] sm:$0xf]
      %v4005 = vld [vmem:[%s11 + $0x210] sm:$0xf]
      %v4006 = vld [vmem:[%s11 + $0x214] sm:$0xf]
      %v4007 = vld [vmem:[%s11 + $0x218] sm:$0xf]
      %v4008 = vld [vmem:[%s11 + $0x21c] sm:$0xf]
      %v4009 = vld [vmem:[%s11 + $0x220] sm:$0xf]
      %v4010 = vld [vmem:[%s11 + $0x224] sm:$0xf]
      %v4011 = vld [vmem:[%s11 + $0x228] sm:$0xf]
      %v4012 = vld [vmem:[%s11 + $0x22c] sm:$0xf]
      %v4013 = vld [vmem:[%s11 + $0x230] sm:$0xf]
      %v4014 = vld [vmem:[%s11 + $0x234] sm:$0xf]
      %v4015 = vld [vmem:[%s11 + $0x238] sm:$0xf]
      %v4016 = vld [vmem:[%s11 + $0x23c] sm:$0xf]
      %v4017 = vld [vmem:[%s12] sm:$0x1]
      %v4019 = vperm.slane %v4017, 0
      %v4022 = vshrl.u32 %v3751, 16
      %v4024 = vshll.u32 %v3751, 16
      %v4026 = vrot.slane %v4024, 1
      %v4027 = vor.u32 %v4022, %v4026
      %v4028 = vsel %vm1395, %v4027, %v3767
      %v4030 = vshrl.u32 %v3768, 16
      %v4032 = vshll.u32 %v3768, 16
      %v4034 = vrot.slane %v4032, 1
      %v4035 = vor.u32 %v4030, %v4034
      %v4037 = vshll.u32 %v3776, 16
      %v4039 = vrot.slane %v4037, 1
      %v4040 = vsel %vm1395, %v4035, %v4039
      %v4042 = vshrl.u32 %v3785, 16
      %v4044 = vshll.u32 %v3785, 16
      %v4046 = vrot.slane %v4044, 1
      %v4047 = vor.u32 %v4042, %v4046
      %v4049 = vshll.u32 %v3787, 16
      %v4051 = vrot.slane %v4049, 1
      %v4052 = vsel %vm1395, %v4047, %v4051
      %v4054 = vshrl.u32 %v3796, 16
      %v4056 = vshll.u32 %v3796, 16
      %v4058 = vrot.slane %v4056, 1
      %v4059 = vor.u32 %v4054, %v4058
      %v4061 = vshll.u32 %v3798, 16
      %v4063 = vrot.slane %v4061, 1
      %v4064 = vsel %vm1395, %v4059, %v4063
      %v4066 = vshrl.u32 %v3808, 16
      %v4068 = vshll.u32 %v3808, 16
      %v4070 = vrot.slane %v4068, 1
      %v4071 = vor.u32 %v4066, %v4070
      %v4073 = vshll.u32 %v3816, 16
      %v4075 = vrot.slane %v4073, 1
      %v4076 = vsel %vm1395, %v4071, %v4075
      %v4077 = vrot.slane %v3806, 1
      %v4078 = vor.u32 %v3803, %v4077
      %v4079 = vrot.slane %v3813, 1
      %v4080 = vsel %vm1395, %v4078, %v4079
      %v4082 = vshrl.u32 %v3838, 16
      %v4084 = vshll.u32 %v3838, 16
      %v4086 = vrot.slane %v4084, 1
      %v4087 = vor.u32 %v4082, %v4086
      %v4089 = vshll.u32 %v3840, 16
      %v4091 = vrot.slane %v4089, 1
      %v4092 = vsel %vm1395, %v4087, %v4091
      %v4094 = vshrl.u32 %v3855, 16
      %v4096 = vshll.u32 %v3855, 16
      %v4098 = vrot.slane %v4096, 1
      %v4099 = vor.u32 %v4094, %v4098
      %v4101 = vshll.u32 %v3864, 16
      %v4103 = vrot.slane %v4101, 1
      %v4104 = vsel %vm1395, %v4099, %v4103
      %v4106 = vshrl.u32 %v3870, 16
      %v4108 = vshll.u32 %v3870, 16
      %v4110 = vrot.slane %v4108, 1
      %v4111 = vor.u32 %v4106, %v4110
      %v4113 = vshll.u32 %v3872, 16
      %v4115 = vrot.slane %v4113, 1
      %v4116 = vsel %vm1395, %v4111, %v4115
      %v4117 = vshrl.u32 %v3776, 16
      %v4119 = vor.u32 %v4117, %v4039
      %v4121 = vshll.u32 %v3779, 16
      %v4123 = vrot.slane %v4121, 1
      %v4124 = vsel %vm1395, %v4119, %v4123
      %v4125 = vshrl.u32 %v3787, 16
      %v4127 = vor.u32 %v4125, %v4051
      %v4129 = vshll.u32 %v3786, 16
      %v4131 = vrot.slane %v4129, 1
      %v4132 = vsel %vm1395, %v4127, %v4131
      %v4133 = vshrl.u32 %v3798, 16
      %v4135 = vor.u32 %v4133, %v4063
      %v4137 = vshll.u32 %v3797, 16
      %v4139 = vrot.slane %v4137, 1
      %v4140 = vsel %vm1395, %v4135, %v4139
      %v4141 = vshrl.u32 %v3816, 16
      %v4143 = vor.u32 %v4141, %v4075
      %v4145 = vshll.u32 %v3824, 16
      %v4147 = vrot.slane %v4145, 1
      %v4148 = vsel %vm1395, %v4143, %v4147
      %v4149 = vor.u32 %v3810, %v4079
      %v4151 = vshll.u32 %v3827, 16
      %v4153 = vrot.slane %v4151, 1
      %v4154 = vsel %vm1395, %v4149, %v4153
      %v4155 = vshrl.u32 %v3840, 16
      %v4157 = vor.u32 %v4155, %v4091
      %v4159 = vshll.u32 %v3839, 16
      %v4161 = vrot.slane %v4159, 1
      %v4162 = vsel %vm1395, %v4157, %v4161
      %v4163 = vshrl.u32 %v3864, 16
      %v4165 = vor.u32 %v4163, %v4103
      %v4167 = vshll.u32 %v3863, 16
      %v4169 = vrot.slane %v4167, 1
      %v4170 = vsel %vm1395, %v4165, %v4169
      %v4171 = vshrl.u32 %v3872, 16
      %v4173 = vor.u32 %v4171, %v4115
      %v4175 = vshll.u32 %v3871, 16
      %v4177 = vrot.slane %v4175, 1
      %v4178 = vsel %vm1395, %v4173, %v4177
      %v4179 = vshrl.u32 %v3779, 16
      %v4181 = vor.u32 %v4179, %v4123
      %v4182 = vshrl.u32 %v3786, 16
      %v4184 = vor.u32 %v4182, %v4131
      %v4185 = vshrl.u32 %v3797, 16
      %v4187 = vor.u32 %v4185, %v4139
      %v4188 = vshrl.u32 %v3824, 16
      %v4190 = vor.u32 %v4188, %v4147
      %v4191 = vshrl.u32 %v3827, 16
      %v4193 = vor.u32 %v4191, %v4153
      %v4194 = vshrl.u32 %v3839, 16
      %v4196 = vor.u32 %v4194, %v4161
      %v4197 = vshrl.u32 %v3863, 16
      %v4199 = vor.u32 %v4197, %v4169
      %v4200 = vshrl.u32 %v3871, 16
      %v4202 = vor.u32 %v4200, %v4177
      %v4374 = vunpack.c.l.b16 %v3873
      %v4375 = vunpack.c.l.b16 %v3874
      %v4376 = vunpack.c.l.b16 %v3875
      %v4377 = vunpack.c.l.b16 %v3876
      %v4378 = vunpack.c.l.b16 %v3877
      %v4379 = vunpack.c.l.b16 %v3878
      %v4380 = vunpack.c.l.b16 %v3879
      %v4381 = vunpack.c.l.b16 %v3880
      %v4382 = vunpack.c.l.b16 %v3881
      %v4383 = vunpack.c.l.b16 %v3882
      %v4384 = vunpack.c.l.b16 %v3883
      %v4385 = vunpack.c.l.b16 %v3884
      %v4386 = vunpack.c.l.b16 %v3885
      %v4387 = vunpack.c.l.b16 %v3886
      %v4388 = vunpack.c.l.b16 %v3887
      %v4389 = vunpack.c.l.b16 %v3888
      %v4390 = vunpack.c.l.b16 %v3889
      %v4391 = vunpack.c.l.b16 %v3890
      %v4392 = vunpack.c.l.b16 %v3891
      %v4393 = vunpack.c.l.b16 %v3892
      %v4394 = vunpack.c.l.b16 %v3893
      %v4395 = vunpack.c.l.b16 %v3894
      %v4396 = vunpack.c.l.b16 %v3895
      %v4397 = vunpack.c.l.b16 %v3896
      %v4398 = vunpack.c.l.b16 %v3897
      %v4399 = vunpack.c.l.b16 %v3898
      %v4400 = vunpack.c.l.b16 %v3899
      %v4401 = vunpack.c.l.b16 %v3900
      %v4402 = vunpack.c.l.b16 %v3901
      %v4403 = vunpack.c.l.b16 %v3902
      %v4404 = vunpack.c.l.b16 %v3903
      %v4405 = vunpack.c.l.b16 %v3904
      %v4406 = vunpack.c.l.b16 %v3905
      %v4407 = vunpack.c.l.b16 %v3906
      %v4408 = vunpack.c.l.b16 %v3907
      %v4409 = vunpack.c.l.b16 %v3908
      %v4410 = vunpack.c.l.b16 %v3909
      %v4411 = vunpack.c.l.b16 %v3910
      %v4412 = vunpack.c.l.b16 %v3911
      %v4413 = vunpack.c.l.b16 %v3912
      %v4414 = vunpack.c.l.b16 %v3913
      %v4415 = vunpack.c.l.b16 %v3914
      %v4416 = vunpack.c.l.b16 %v3915
      %v4417 = vunpack.c.l.b16 %v3916
      %v4418 = vunpack.c.l.b16 %v3917
      %v4419 = vunpack.c.l.b16 %v3918
      %v4420 = vunpack.c.l.b16 %v3919
      %v4421 = vunpack.c.l.b16 %v3920
      %v4422 = vunpack.c.l.b16 %v3921
      %v4423 = vunpack.c.l.b16 %v3922
      %v4424 = vunpack.c.l.b16 %v3923
      %v4425 = vunpack.c.l.b16 %v3924
      %v4426 = vunpack.c.l.b16 %v3925
      %v4427 = vunpack.c.l.b16 %v3926
      %v4428 = vunpack.c.l.b16 %v3927
      %v4429 = vunpack.c.l.b16 %v3928
      %v4430 = vunpack.c.l.b16 %v3929
      %v4431 = vunpack.c.l.b16 %v3930
      %v4432 = vunpack.c.l.b16 %v3931
      %v4433 = vunpack.c.l.b16 %v3932
      %v4434 = vunpack.c.l.b16 %v3933
      %v4435 = vunpack.c.l.b16 %v3934
      %v4436 = vunpack.c.l.b16 %v3935
      %v4437 = vunpack.c.l.b16 %v3936
      %v4438 = vunpack.c.l.b16 %v3937
      %v4439 = vunpack.c.l.b16 %v3938
      %v4440 = vunpack.c.l.b16 %v3939
      %v4441 = vunpack.c.l.b16 %v3940
      %v4442 = vunpack.c.l.b16 %v3941
      %v4443 = vunpack.c.l.b16 %v3942
      %v4444 = vunpack.c.l.b16 %v3943
      %v4445 = vunpack.c.l.b16 %v3944
      %v4446 = vunpack.c.l.b16 %v3945
      %v4447 = vunpack.c.l.b16 %v3946
      %v4448 = vunpack.c.l.b16 %v3947
      %v4449 = vunpack.c.l.b16 %v3948
      %v4450 = vunpack.c.l.b16 %v3949
      %v4451 = vunpack.c.l.b16 %v3950
      %v4452 = vunpack.c.l.b16 %v3951
      %v4453 = vunpack.c.l.b16 %v3952
      %v4454 = vunpack.c.l.b16 %v3953
      %v4455 = vunpack.c.l.b16 %v3954
      %v4456 = vunpack.c.l.b16 %v3955
      %v4457 = vunpack.c.l.b16 %v3956
      %v4458 = vunpack.c.l.b16 %v3957
      %v4459 = vunpack.c.l.b16 %v3958
      %v4460 = vunpack.c.l.b16 %v3959
      %v4461 = vunpack.c.l.b16 %v3960
      %v4462 = vunpack.c.l.b16 %v3961
      %v4463 = vunpack.c.l.b16 %v3962
      %v4464 = vunpack.c.l.b16 %v3963
      %v4465 = vunpack.c.l.b16 %v3964
      %v4466 = vunpack.c.l.b16 %v3965
      %v4467 = vunpack.c.l.b16 %v3966
      %v4468 = vunpack.c.l.b16 %v3967
      %v4469 = vunpack.c.l.b16 %v3968
      %v4470 = vunpack.c.l.b16 %v3969
      %v4471 = vunpack.c.l.b16 %v3970
      %v4472 = vunpack.c.l.b16 %v3971
      %v4473 = vunpack.c.l.b16 %v3972
      %v4474 = vunpack.c.l.b16 %v3973
      %v4475 = vunpack.c.l.b16 %v3974
      %v4476 = vunpack.c.l.b16 %v3975
      %v4477 = vunpack.c.l.b16 %v3976
      %v4478 = vunpack.c.l.b16 %v3977
      %v4479 = vunpack.c.l.b16 %v3978
      %v4480 = vunpack.c.l.b16 %v3979
      %v4481 = vunpack.c.l.b16 %v3980
      %v4482 = vunpack.c.l.b16 %v3981
      %v4483 = vunpack.c.l.b16 %v3982
      %v4484 = vunpack.c.l.b16 %v3983
      %v4485 = vunpack.c.l.b16 %v3984
      %v4486 = vunpack.c.l.b16 %v3985
      %v4487 = vunpack.c.l.b16 %v3986
      %v4488 = vunpack.c.l.b16 %v3987
      %v4489 = vunpack.c.l.b16 %v3988
      %v4490 = vunpack.c.l.b16 %v3989
      %v4491 = vunpack.c.l.b16 %v3990
      %v4492 = vunpack.c.l.b16 %v3991
      %v4493 = vunpack.c.l.b16 %v3992
      %v4494 = vunpack.c.l.b16 %v3993
      %v4495 = vunpack.c.l.b16 %v3994
      %v4496 = vunpack.c.l.b16 %v3995
      %v4497 = vunpack.c.l.b16 %v3996
      %v4498 = vunpack.c.l.b16 %v3997
      %v4499 = vunpack.c.l.b16 %v3998
      %v4500 = vunpack.c.l.b16 %v3999
      %v4501 = vunpack.c.l.b16 %v4000
      %v4502 = vunpack.c.l.b16 %v4001
      %v4503 = vunpack.c.l.b16 %v4002
      %v4504 = vunpack.c.l.b16 %v4003
      %v4505 = vunpack.c.l.b16 %v4004
      %v4506 = vunpack.c.l.b16 %v4005
      %v4507 = vunpack.c.l.b16 %v4006
      %v4508 = vunpack.c.l.b16 %v4007
      %v4509 = vunpack.c.l.b16 %v4008
      %v4510 = vunpack.c.l.b16 %v4009
      %v4511 = vunpack.c.l.b16 %v4010
      %v4512 = vunpack.c.l.b16 %v4011
      %v4513 = vunpack.c.l.b16 %v4012
      %v4514 = vunpack.c.l.b16 %v4013
      %v4515 = vunpack.c.l.b16 %v4014
      %v4516 = vunpack.c.l.b16 %v4015
      %v4517 = vunpack.c.l.b16 %v4016
      %v4518 = vpack.c.b16 %v4375, %v4374
      %v4519 = vpack.c.b16 %v4377, %v4376
      %v4520 = vpack.c.b16 %v4379, %v4378
      %v4521 = vpack.c.b16 %v4381, %v4380
      %v4522 = vpack.c.b16 %v4383, %v4382
      %v4523 = vpack.c.b16 %v4385, %v4384
      %v4524 = vpack.c.b16 %v4387, %v4386
      %v4525 = vpack.c.b16 %v4389, %v4388
      %v4526 = vpack.c.b16 %v4391, %v4390
      %v4527 = vpack.c.b16 %v4393, %v4392
      %v4528 = vpack.c.b16 %v4395, %v4394
      %v4529 = vpack.c.b16 %v4397, %v4396
      %v4530 = vpack.c.b16 %v4399, %v4398
      %v4531 = vpack.c.b16 %v4401, %v4400
      %v4532 = vpack.c.b16 %v4403, %v4402
      %v4533 = vpack.c.b16 %v4405, %v4404
      %v4534 = vpack.c.b16 %v4407, %v4406
      %v4535 = vpack.c.b16 %v4409, %v4408
      %v4536 = vpack.c.b16 %v4411, %v4410
      %v4537 = vpack.c.b16 %v4413, %v4412
      %v4538 = vpack.c.b16 %v4415, %v4414
      %v4539 = vpack.c.b16 %v4417, %v4416
      %v4540 = vpack.c.b16 %v4419, %v4418
      %v4541 = vpack.c.b16 %v4421, %v4420
      %v4542 = vpack.c.b16 %v4423, %v4422
      %v4543 = vpack.c.b16 %v4425, %v4424
      %v4544 = vpack.c.b16 %v4427, %v4426
      %v4545 = vpack.c.b16 %v4429, %v4428
      %v4546 = vpack.c.b16 %v4431, %v4430
      %v4547 = vpack.c.b16 %v4433, %v4432
      %v4548 = vpack.c.b16 %v4435, %v4434
      %v4549 = vpack.c.b16 %v4437, %v4436
      %v4550 = vpack.c.b16 %v4439, %v4438
      %v4551 = vpack.c.b16 %v4441, %v4440
      %v4552 = vpack.c.b16 %v4443, %v4442
      %v4553 = vpack.c.b16 %v4445, %v4444
      %v4554 = vpack.c.b16 %v4447, %v4446
      %v4555 = vpack.c.b16 %v4449, %v4448
      %v4556 = vpack.c.b16 %v4451, %v4450
      %v4557 = vpack.c.b16 %v4453, %v4452
      %v4558 = vpack.c.b16 %v4455, %v4454
      %v4559 = vpack.c.b16 %v4457, %v4456
      %v4560 = vpack.c.b16 %v4459, %v4458
      %v4561 = vpack.c.b16 %v4461, %v4460
      %v4562 = vpack.c.b16 %v4463, %v4462
      %v4563 = vpack.c.b16 %v4465, %v4464
      %v4564 = vpack.c.b16 %v4467, %v4466
      %v4565 = vpack.c.b16 %v4469, %v4468
      %v4566 = vpack.c.b16 %v4471, %v4470
      %v4567 = vpack.c.b16 %v4473, %v4472
      %v4568 = vpack.c.b16 %v4475, %v4474
      %v4569 = vpack.c.b16 %v4477, %v4476
      %v4570 = vpack.c.b16 %v4479, %v4478
      %v4571 = vpack.c.b16 %v4481, %v4480
      %v4572 = vpack.c.b16 %v4483, %v4482
      %v4573 = vpack.c.b16 %v4485, %v4484
      %v4574 = vpack.c.b16 %v4487, %v4486
      %v4575 = vpack.c.b16 %v4489, %v4488
      %v4576 = vpack.c.b16 %v4491, %v4490
      %v4577 = vpack.c.b16 %v4493, %v4492
      %v4578 = vpack.c.b16 %v4495, %v4494
      %v4579 = vpack.c.b16 %v4497, %v4496
      %v4580 = vpack.c.b16 %v4499, %v4498
      %v4581 = vpack.c.b16 %v4501, %v4500
      %v4582 = vpack.c.b16 %v4503, %v4502
      %v4583 = vpack.c.b16 %v4505, %v4504
      %v4584 = vpack.c.b16 %v4507, %v4506
      %v4585 = vpack.c.b16 %v4509, %v4508
      %v4586 = vpack.c.b16 %v4511, %v4510
      %v4587 = vpack.c.b16 %v4513, %v4512
      %v4588 = vpack.c.b16 %v4515, %v4514
      %v4589 = vpack.c.b16 %v4517, %v4516
      %4662 = vmatpush.bf16.msra.mxu0 %v4525
      %4663 = vmatpush.bf16.msra.mxu0 %v4524
      %4664 = vmatpush.bf16.msra.mxu0 %v4523
      %4665 = vmatpush.bf16.msra.mxu0 %v4522
      %4666 = vmatpush.bf16.msra.mxu0 %v4521
      %4667 = vmatpush.bf16.msra.mxu0 %v4520
      %4668 = vmatpush.bf16.msra.mxu0 %v4519
      %4669 = vmatpush.bf16.msra.mxu0 %v4518
      %4670 = vmatmul.bf16.gmra.mxu0 %v4028
      %v4671 = vpop.f32.mrf.mxu0
      %v4672 = vadd.f32 %v4019, %v4671
      %v4673 = vpop.f32.mrf.mxu0
      %v4674 = vadd.f32 %v4019, %v4673
      %4675 = vmatmul.bf16.gmra.mxu0 %v3776
      %v4676 = vpop.f32.mrf.mxu0
      %v4677 = vadd.f32 %v4019, %v4676
      %v4678 = vpop.f32.mrf.mxu0
      %v4679 = vadd.f32 %v4019, %v4678
      %4680 = vmatmul.bf16.gmra.mxu0 %v3779
      %v4681 = vpop.f32.mrf.mxu0
      %v4682 = vadd.f32 %v4019, %v4681
      %v4683 = vpop.f32.mrf.mxu0
      %4684 = vdwg.mxu0
      %4685 = vmatpush.bf16.msra.mxu0 %v4533
      %4686 = vmatpush.bf16.msra.mxu0 %v4532
      %4687 = vmatpush.bf16.msra.mxu0 %v4531
      %4688 = vmatpush.bf16.msra.mxu0 %v4530
      %4689 = vmatpush.bf16.msra.mxu0 %v4529
      %4690 = vmatpush.bf16.msra.mxu0 %v4528
      %4691 = vmatpush.bf16.msra.mxu0 %v4527
      %4692 = vmatpush.bf16.msra.mxu0 %v4526
      %4693 = vmatmul.bf16.gmra.mxu0 %v4040
      %v4694 = vpop.f32.mrf.mxu0
      %v4695 = vadd.f32 %v4672, %v4694
      %v4696 = vpop.f32.mrf.mxu0
      %v4697 = vadd.f32 %v4674, %v4696
      %4698 = vmatmul.bf16.gmra.mxu0 %v4124
      %v4699 = vpop.f32.mrf.mxu0
      %v4700 = vadd.f32 %v4677, %v4699
      %v4701 = vpop.f32.mrf.mxu0
      %v4702 = vadd.f32 %v4679, %v4701
      %4703 = vmatmul.bf16.gmra.mxu0 %v4181
      %v4704 = vpop.f32.mrf.mxu0
      %v4705 = vadd.f32 %v4682, %v4704
      %v4706 = vpop.f32.mrf.mxu0
      %4707 = vdwg.mxu0
      %4708 = vmatpush.bf16.msra.mxu0 %v4541
      %4709 = vmatpush.bf16.msra.mxu0 %v4540
      %4710 = vmatpush.bf16.msra.mxu0 %v4539
      %4711 = vmatpush.bf16.msra.mxu0 %v4538
      %4712 = vmatpush.bf16.msra.mxu0 %v4537
      %4713 = vmatpush.bf16.msra.mxu0 %v4536
      %4714 = vmatpush.bf16.msra.mxu0 %v4535
      %4715 = vmatpush.bf16.msra.mxu0 %v4534
      %4716 = vmatmul.bf16.gmra.mxu0 %v4052
      %v4717 = vpop.f32.mrf.mxu0
      %v4718 = vadd.f32 %v4695, %v4717
      %v4719 = vpop.f32.mrf.mxu0
      %v4720 = vadd.f32 %v4697, %v4719
      %4721 = vmatmul.bf16.gmra.mxu0 %v4132
      %v4722 = vpop.f32.mrf.mxu0
      %v4723 = vadd.f32 %v4700, %v4722
      %v4724 = vpop.f32.mrf.mxu0
      %v4725 = vadd.f32 %v4702, %v4724
      %4726 = vmatmul.bf16.gmra.mxu0 %v4184
      %v4727 = vpop.f32.mrf.mxu0
      %v4728 = vadd.f32 %v4705, %v4727
      %v4729 = vpop.f32.mrf.mxu0
      %4730 = vdwg.mxu0
      %4731 = vmatpush.bf16.msra.mxu0 %v4549
      %4732 = vmatpush.bf16.msra.mxu0 %v4548
      %4733 = vmatpush.bf16.msra.mxu0 %v4547
      %4734 = vmatpush.bf16.msra.mxu0 %v4546
      %4735 = vmatpush.bf16.msra.mxu0 %v4545
      %4736 = vmatpush.bf16.msra.mxu0 %v4544
      %4737 = vmatpush.bf16.msra.mxu0 %v4543
      %4738 = vmatpush.bf16.msra.mxu0 %v4542
      %4739 = vmatmul.bf16.gmra.mxu0 %v4064
      %v4740 = vpop.f32.mrf.mxu0
      %v4741 = vadd.f32 %v4718, %v4740
      %v4742 = vpop.f32.mrf.mxu0
      %v4743 = vadd.f32 %v4720, %v4742
      %4744 = vmatmul.bf16.gmra.mxu0 %v4140
      %v4745 = vpop.f32.mrf.mxu0
      %v4746 = vadd.f32 %v4723, %v4745
      %v4747 = vpop.f32.mrf.mxu0
      %v4748 = vadd.f32 %v4725, %v4747
      %4749 = vmatmul.bf16.gmra.mxu0 %v4187
      %v4750 = vpop.f32.mrf.mxu0
      %v4751 = vadd.f32 %v4728, %v4750
      %v4752 = vpop.f32.mrf.mxu0
      %4753 = vdwg.mxu0
      %4754 = vmatpush.bf16.msra.mxu0 %v4557
      %4755 = vmatpush.bf16.msra.mxu0 %v4556
      %4756 = vmatpush.bf16.msra.mxu0 %v4555
      %4757 = vmatpush.bf16.msra.mxu0 %v4554
      %4758 = vmatpush.bf16.msra.mxu0 %v4553
      %4759 = vmatpush.bf16.msra.mxu0 %v4552
      %4760 = vmatpush.bf16.msra.mxu0 %v4551
      %4761 = vmatpush.bf16.msra.mxu0 %v4550
      %4762 = vmatmul.bf16.gmra.mxu0 %v4076
      %v4763 = vpop.f32.mrf.mxu0
      %v4764 = vadd.f32 %v4741, %v4763
      %v4765 = vpop.f32.mrf.mxu0
      %v4766 = vadd.f32 %v4743, %v4765
      %4767 = vmatmul.bf16.gmra.mxu0 %v4148
      %v4768 = vpop.f32.mrf.mxu0
      %v4769 = vadd.f32 %v4746, %v4768
      %v4770 = vpop.f32.mrf.mxu0
      %v4771 = vadd.f32 %v4748, %v4770
      %4772 = vmatmul.bf16.gmra.mxu0 %v4190
      %v4773 = vpop.f32.mrf.mxu0
      %v4774 = vadd.f32 %v4751, %v4773
      %v4775 = vpop.f32.mrf.mxu0
      %4776 = vdwg.mxu0
      %4777 = vmatpush.bf16.msra.mxu0 %v4565
      %4778 = vmatpush.bf16.msra.mxu0 %v4564
      %4779 = vmatpush.bf16.msra.mxu0 %v4563
      %4780 = vmatpush.bf16.msra.mxu0 %v4562
      %4781 = vmatpush.bf16.msra.mxu0 %v4561
      %4782 = vmatpush.bf16.msra.mxu0 %v4560
      %4783 = vmatpush.bf16.msra.mxu0 %v4559
      %4784 = vmatpush.bf16.msra.mxu0 %v4558
      %4785 = vmatmul.bf16.gmra.mxu0 %v4080
      %v4786 = vpop.f32.mrf.mxu0
      %v4787 = vadd.f32 %v4764, %v4786
      %v4788 = vpop.f32.mrf.mxu0
      %v4789 = vadd.f32 %v4766, %v4788
      %4790 = vmatmul.bf16.gmra.mxu0 %v4154
      %v4791 = vpop.f32.mrf.mxu0
      %v4792 = vadd.f32 %v4769, %v4791
      %v4793 = vpop.f32.mrf.mxu0
      %v4794 = vadd.f32 %v4771, %v4793
      %4795 = vmatmul.bf16.gmra.mxu0 %v4193
      %v4796 = vpop.f32.mrf.mxu0
      %v4797 = vadd.f32 %v4774, %v4796
      %v4798 = vpop.f32.mrf.mxu0
      %4799 = vdwg.mxu0
      %4800 = vmatpush.bf16.msra.mxu0 %v4573
      %4801 = vmatpush.bf16.msra.mxu0 %v4572
      %4802 = vmatpush.bf16.msra.mxu0 %v4571
      %4803 = vmatpush.bf16.msra.mxu0 %v4570
      %4804 = vmatpush.bf16.msra.mxu0 %v4569
      %4805 = vmatpush.bf16.msra.mxu0 %v4568
      %4806 = vmatpush.bf16.msra.mxu0 %v4567
      %4807 = vmatpush.bf16.msra.mxu0 %v4566
      %4808 = vmatmul.bf16.gmra.mxu0 %v4092
      %v4809 = vpop.f32.mrf.mxu0
      %v4810 = vadd.f32 %v4787, %v4809
      %v4811 = vpop.f32.mrf.mxu0
      %v4812 = vadd.f32 %v4789, %v4811
      %4813 = vmatmul.bf16.gmra.mxu0 %v4162
      %v4814 = vpop.f32.mrf.mxu0
      %v4815 = vadd.f32 %v4792, %v4814
      %v4816 = vpop.f32.mrf.mxu0
      %v4817 = vadd.f32 %v4794, %v4816
      %4818 = vmatmul.bf16.gmra.mxu0 %v4196
      %v4819 = vpop.f32.mrf.mxu0
      %v4820 = vadd.f32 %v4797, %v4819
      %v4821 = vpop.f32.mrf.mxu0
      %4822 = vdwg.mxu0
      %4823 = vmatpush.bf16.msra.mxu0 %v4581
      %4824 = vmatpush.bf16.msra.mxu0 %v4580
      %4825 = vmatpush.bf16.msra.mxu0 %v4579
      %4826 = vmatpush.bf16.msra.mxu0 %v4578
      %4827 = vmatpush.bf16.msra.mxu0 %v4577
      %4828 = vmatpush.bf16.msra.mxu0 %v4576
      %4829 = vmatpush.bf16.msra.mxu0 %v4575
      %4830 = vmatpush.bf16.msra.mxu0 %v4574
      %4831 = vmatmul.bf16.gmra.mxu0 %v4104
      %v4832 = vpop.f32.mrf.mxu0
      %v4833 = vadd.f32 %v4810, %v4832
      %v4834 = vpop.f32.mrf.mxu0
      %v4835 = vadd.f32 %v4812, %v4834
      %4836 = vmatmul.bf16.gmra.mxu0 %v4170
      %v4837 = vpop.f32.mrf.mxu0
      %v4838 = vadd.f32 %v4815, %v4837
      %v4839 = vpop.f32.mrf.mxu0
      %v4840 = vadd.f32 %v4817, %v4839
      %4841 = vmatmul.bf16.gmra.mxu0 %v4199
      %v4842 = vpop.f32.mrf.mxu0
      %v4843 = vadd.f32 %v4820, %v4842
      %v4844 = vpop.f32.mrf.mxu0
      %4845 = vdwg.mxu0
      %4846 = vmatpush.bf16.msra.mxu0 %v4589
      %4847 = vmatpush.bf16.msra.mxu0 %v4588
      %4848 = vmatpush.bf16.msra.mxu0 %v4587
      %4849 = vmatpush.bf16.msra.mxu0 %v4586
      %4850 = vmatpush.bf16.msra.mxu0 %v4585
      %4851 = vmatpush.bf16.msra.mxu0 %v4584
      %4852 = vmatpush.bf16.msra.mxu0 %v4583
      %4853 = vmatpush.bf16.msra.mxu0 %v4582
      %4854 = vmatmul.bf16.gmra.mxu0 %v4116
      %v4855 = vpop.f32.mrf.mxu0
      %v4856 = vadd.f32 %v4833, %v4855
      %v4857 = vpop.f32.mrf.mxu0
      %v4858 = vadd.f32 %v4835, %v4857
      %4859 = vmatmul.bf16.gmra.mxu0 %v4178
      %v4860 = vpop.f32.mrf.mxu0
      %v4861 = vadd.f32 %v4838, %v4860
      %v4862 = vpop.f32.mrf.mxu0
      %v4863 = vadd.f32 %v4840, %v4862
      %4864 = vmatmul.bf16.gmra.mxu0 %v4202
      %v4865 = vpop.f32.mrf.mxu0
      %v4866 = vadd.f32 %v4843, %v4865
      %v4867 = vpop.f32.mrf.mxu0
      %4868 = vdwg.mxu0
      %v4869 = vmax.f32 %v4856, 0.0
      %v4870 = vmax.f32 %v4858, 0.0
      %v4871 = vmax.f32 %v4861, 0.0
      %v4872 = vmax.f32 %v4863, 0.0
      %v4873 = vmax.f32 %v4866, 0.0
      %v4874 = vsel %vm2538, %v4869, 0.0
      %v4875 = vsel %vm2539, %v4870, 0.0
      %v4876 = vsel %vm2540, %v4871, 0.0
      %v4877 = vsel %vm2541, %v4872, 0.0
      %v4878 = vsel %vm2542, %v4873, 0.0
      %v4879 = vpack.c.bf16 %v4874, %v4874
      %v4880 = vpack.c.bf16 %v4875, %v4875
      %v4881 = vpack.c.bf16 %v4876, %v4876
      %v4882 = vpack.c.bf16 %v4877, %v4877
      %v4883 = vpack.c.bf16 %v4878, %v4878
      %4884 = vst [vmem:[#allocation2 + $0x8] sm:$0xf] %v4879
      %4885 = vst [vmem:[#allocation2 + $0xc] sm:$0xf] %v4880
      %4886 = vst [vmem:[#allocation2 + $0x10] sm:$0xf] %v4881
      %4887 = vst [vmem:[#allocation2 + $0x14] sm:$0xf] %v4882
      %4888 = vst [vmem:[#allocation2 + $0x18] sm:$0x3] %v4883
      %v4889 = vld [vmem:[#allocation2 + $0x4] sm:$0xf]
      %v4890 = vld [vmem:[#allocation2 + $0x8] sm:$0xf]
      %v4891 = vld [vmem:[#allocation2 + $0xc] sm:$0xf]
      %v4892 = vld [vmem:[#allocation2 + $0x10] sm:$0xf]
      %v4893 = vld [vmem:[#allocation2 + $0x14] sm:$0x7]
      %v4894 = vld [vmem:[#allocation2 + $0x4] sm:$0xe]
      %v4895 = vld [vmem:[#allocation2 + $0x14] sm:$0xf]
      %v4896 = vld [vmem:[#allocation2 + $0x4] sm:$0x8]
      %v4897 = vld [vmem:[#allocation2 + $0x18] sm:$0x3]
      %v4898 = vld [vmem:[#allocation2 + $0x18] sm:$0x7]
      %v4899 = vld [vmem:[#allocation2 + $0x8] sm:$0xc]
      %v4900 = vld [vmem:[#allocation2 + $0x18] sm:$0xf]
      %v4901 = vld [vmem:[#allocation2 + $0x1c] sm:$0x1]
      %v4902 = vld [vmem:[#allocation2 + $0x8] sm:$0x8]
      %v4903 = vld [vmem:[#allocation2 + $0x1c] sm:$0x3]
      %v4909 = vunpack.c.l.b16 %v4889
      %v4910 = vunpack.c.l.b16 %v4890
      %v4911 = vunpack.c.l.b16 %v4891
      %v4912 = vunpack.c.l.b16 %v4892
      %v4913 = vunpack.c.l.b16 %v4893
      %v4914 = vpack.c.b16 %v4910, %v4909
      %v4915 = vpack.c.b16 %v4912, %v4911
      %v4916 = vpack.c.b16 %v4913, %v4913
      %v4918 = vunpack.c.l.b16 %v4894
      %v4919 = vpack.c.b16 %v4910, %v4918
      %v4921 = vshrl.u32 %v4919, 16
      %v4923 = vshll.u32 %v4919, 16
      %v4925 = vrot.slane %v4923, 1
      %v4926 = vor.u32 %v4921, %v4925
      %v4928 = vshll.u32 %v4915, 16
      %v4930 = vrot.slane %v4928, 1
      %v4931 = vsel %vm1395, %v4926, %v4930
      %v4932 = vshrl.u32 %v4915, 16
      %v4934 = vor.u32 %v4932, %v4930
      %v4936 = vshll.u32 %v4916, 16
      %v4938 = vrot.slane %v4936, 1
      %v4939 = vsel %vm1395, %v4934, %v4938
      %v4940 = vshrl.u32 %v4916, 16
      %v4942 = vor.u32 %v4940, %v4938
      %v4944 = vunpack.c.l.b16 %v4895
      %v4945 = vpack.c.b16 %v4944, %v4944
      %v4946 = vrot.slane %v4919, 1
      %v4947 = vrot.slane %v4915, 1
      %v4948 = vsel %vm1422, %v4946, %v4947
      %v4949 = vrot.slane %v4945, 1
      %v4950 = vsel %vm1422, %v4947, %v4949
      %v4953 = vunpack.c.l.b16 %v4896
      %v4954 = vunpack.c.l.b16 %v4897
      %v4955 = vpack.c.b16 %v4910, %v4953
      %v4956 = vpack.c.b16 %v4954, %v4944
      %v4957 = vrot.slane %v4955, 3
      %v4958 = vrot.slane %v4915, 3
      %v4959 = vsel %vm1434, %v4957, %v4958
      %v4960 = vrot.slane %v4956, 3
      %v4961 = vsel %vm1434, %v4958, %v4960
      %v4962 = vpack.c.b16 %v4911, %v4910
      %v4963 = vpack.c.b16 %v4944, %v4912
      %v4964 = vpack.c.b16 %v4954, %v4954
      %v4966 = vshrl.u32 %v4962, 16
      %v4968 = vrot.slane %v4966, 7
      %v4969 = vshll.u32 %v4962, 16
      %v4971 = vor.u32 %v4968, %v4969
      %v4973 = vshrl.u32 %v4963, 16
      %v4975 = vrot.slane %v4973, 7
      %v4976 = vshll.u32 %v4963, 16
      %v4978 = vor.u32 %v4975, %v4976
      %v4979 = vsel %vm1443, %v4968, %v4978
      %v4981 = vshrl.u32 %v4964, 16
      %v4983 = vrot.slane %v4981, 7
      %v4984 = vshll.u32 %v4964, 16
      %v4986 = vor.u32 %v4983, %v4984
      %v4987 = vsel %vm1443, %v4975, %v4986
      %v4989 = vunpack.c.l.b16 %v4898
      %v4990 = vpack.c.b16 %v4989, %v4989
      %v4994 = vunpack.c.l.b16 %v4899
      %v4995 = vunpack.c.l.b16 %v4900
      %v4996 = vunpack.c.l.b16 %v4901
      %v4997 = vpack.c.b16 %v4911, %v4994
      %v4998 = vpack.c.b16 %v4996, %v4995
      %v4999 = vrot.slane %v4997, 2
      %v5000 = vrot.slane %v4963, 2
      %v5001 = vsel %vm1478, %v4999, %v5000
      %v5002 = vrot.slane %v4998, 2
      %v5003 = vsel %vm1478, %v5000, %v5002
      %v5005 = vunpack.c.l.b16 %v4902
      %v5006 = vpack.c.b16 %v4911, %v5005
      %v5008 = vshrl.u32 %v5006, 16
      %v5010 = vrot.slane %v5008, 2
      %v5011 = vshll.u32 %v5006, 16
      %v5013 = vrot.slane %v5011, 3
      %v5014 = vor.u32 %v5010, %v5013
      %v5015 = vrot.slane %v4973, 2
      %v5016 = vrot.slane %v4976, 3
      %v5017 = vor.u32 %v5015, %v5016
      %v5018 = vsel %vm1487, %v5014, %v5017
      %v5020 = vshrl.u32 %v4998, 16
      %v5022 = vrot.slane %v5020, 2
      %v5023 = vshll.u32 %v4998, 16
      %v5025 = vrot.slane %v5023, 3
      %v5026 = vor.u32 %v5022, %v5025
      %v5027 = vsel %vm1487, %v5017, %v5026
      %v5029 = vunpack.c.l.b16 %v4903
      %v5030 = vpack.c.b16 %v5029, %v4995
      %v5031 = vrot.slane %v5006, 3
      %v5032 = vrot.slane %v4963, 3
      %v5033 = vsel %vm1434, %v5031, %v5032
      %v5034 = vrot.slane %v5030, 3
      %v5035 = vsel %vm1434, %v5032, %v5034
      %v5036 = vld [vmem:[%s13] sm:$0xf]
      %v5037 = vld [vmem:[%s13 + $0x4] sm:$0xf]
      %v5038 = vld [vmem:[%s13 + $0x8] sm:$0xf]
      %v5039 = vld [vmem:[%s13 + $0xc] sm:$0xf]
      %v5040 = vld [vmem:[%s13 + $0x10] sm:$0xf]
      %v5041 = vld [vmem:[%s13 + $0x14] sm:$0xf]
      %v5042 = vld [vmem:[%s13 + $0x18] sm:$0xf]
      %v5043 = vld [vmem:[%s13 + $0x1c] sm:$0xf]
      %v5044 = vld [vmem:[%s13 + $0x20] sm:$0xf]
      %v5045 = vld [vmem:[%s13 + $0x24] sm:$0xf]
      %v5046 = vld [vmem:[%s13 + $0x28] sm:$0xf]
      %v5047 = vld [vmem:[%s13 + $0x2c] sm:$0xf]
      %v5048 = vld [vmem:[%s13 + $0x30] sm:$0xf]
      %v5049 = vld [vmem:[%s13 + $0x34] sm:$0xf]
      %v5050 = vld [vmem:[%s13 + $0x38] sm:$0xf]
      %v5051 = vld [vmem:[%s13 + $0x3c] sm:$0xf]
      %v5052 = vld [vmem:[%s13 + $0x40] sm:$0xf]
      %v5053 = vld [vmem:[%s13 + $0x44] sm:$0xf]
      %v5054 = vld [vmem:[%s13 + $0x48] sm:$0xf]
      %v5055 = vld [vmem:[%s13 + $0x4c] sm:$0xf]
      %v5056 = vld [vmem:[%s13 + $0x50] sm:$0xf]
      %v5057 = vld [vmem:[%s13 + $0x54] sm:$0xf]
      %v5058 = vld [vmem:[%s13 + $0x58] sm:$0xf]
      %v5059 = vld [vmem:[%s13 + $0x5c] sm:$0xf]
      %v5060 = vld [vmem:[%s13 + $0x60] sm:$0xf]
      %v5061 = vld [vmem:[%s13 + $0x64] sm:$0xf]
      %v5062 = vld [vmem:[%s13 + $0x68] sm:$0xf]
      %v5063 = vld [vmem:[%s13 + $0x6c] sm:$0xf]
      %v5064 = vld [vmem:[%s13 + $0x70] sm:$0xf]
      %v5065 = vld [vmem:[%s13 + $0x74] sm:$0xf]
      %v5066 = vld [vmem:[%s13 + $0x78] sm:$0xf]
      %v5067 = vld [vmem:[%s13 + $0x7c] sm:$0xf]
      %v5068 = vld [vmem:[%s13 + $0x80] sm:$0xf]
      %v5069 = vld [vmem:[%s13 + $0x84] sm:$0xf]
      %v5070 = vld [vmem:[%s13 + $0x88] sm:$0xf]
      %v5071 = vld [vmem:[%s13 + $0x8c] sm:$0xf]
      %v5072 = vld [vmem:[%s13 + $0x90] sm:$0xf]
      %v5073 = vld [vmem:[%s13 + $0x94] sm:$0xf]
      %v5074 = vld [vmem:[%s13 + $0x98] sm:$0xf]
      %v5075 = vld [vmem:[%s13 + $0x9c] sm:$0xf]
      %v5076 = vld [vmem:[%s13 + $0xa0] sm:$0xf]
      %v5077 = vld [vmem:[%s13 + $0xa4] sm:$0xf]
      %v5078 = vld [vmem:[%s13 + $0xa8] sm:$0xf]
      %v5079 = vld [vmem:[%s13 + $0xac] sm:$0xf]
      %v5080 = vld [vmem:[%s13 + $0xb0] sm:$0xf]
      %v5081 = vld [vmem:[%s13 + $0xb4] sm:$0xf]
      %v5082 = vld [vmem:[%s13 + $0xb8] sm:$0xf]
      %v5083 = vld [vmem:[%s13 + $0xbc] sm:$0xf]
      %v5084 = vld [vmem:[%s13 + $0xc0] sm:$0xf]
      %v5085 = vld [vmem:[%s13 + $0xc4] sm:$0xf]
      %v5086 = vld [vmem:[%s13 + $0xc8] sm:$0xf]
      %v5087 = vld [vmem:[%s13 + $0xcc] sm:$0xf]
      %v5088 = vld [vmem:[%s13 + $0xd0] sm:$0xf]
      %v5089 = vld [vmem:[%s13 + $0xd4] sm:$0xf]
      %v5090 = vld [vmem:[%s13 + $0xd8] sm:$0xf]
      %v5091 = vld [vmem:[%s13 + $0xdc] sm:$0xf]
      %v5092 = vld [vmem:[%s13 + $0xe0] sm:$0xf]
      %v5093 = vld [vmem:[%s13 + $0xe4] sm:$0xf]
      %v5094 = vld [vmem:[%s13 + $0xe8] sm:$0xf]
      %v5095 = vld [vmem:[%s13 + $0xec] sm:$0xf]
      %v5096 = vld [vmem:[%s13 + $0xf0] sm:$0xf]
      %v5097 = vld [vmem:[%s13 + $0xf4] sm:$0xf]
      %v5098 = vld [vmem:[%s13 + $0xf8] sm:$0xf]
      %v5099 = vld [vmem:[%s13 + $0xfc] sm:$0xf]
      %v5100 = vld [vmem:[%s13 + $0x100] sm:$0xf]
      %v5101 = vld [vmem:[%s13 + $0x104] sm:$0xf]
      %v5102 = vld [vmem:[%s13 + $0x108] sm:$0xf]
      %v5103 = vld [vmem:[%s13 + $0x10c] sm:$0xf]
      %v5104 = vld [vmem:[%s13 + $0x110] sm:$0xf]
      %v5105 = vld [vmem:[%s13 + $0x114] sm:$0xf]
      %v5106 = vld [vmem:[%s13 + $0x118] sm:$0xf]
      %v5107 = vld [vmem:[%s13 + $0x11c] sm:$0xf]
      %v5108 = vld [vmem:[%s13 + $0x120] sm:$0xf]
      %v5109 = vld [vmem:[%s13 + $0x124] sm:$0xf]
      %v5110 = vld [vmem:[%s13 + $0x128] sm:$0xf]
      %v5111 = vld [vmem:[%s13 + $0x12c] sm:$0xf]
      %v5112 = vld [vmem:[%s13 + $0x130] sm:$0xf]
      %v5113 = vld [vmem:[%s13 + $0x134] sm:$0xf]
      %v5114 = vld [vmem:[%s13 + $0x138] sm:$0xf]
      %v5115 = vld [vmem:[%s13 + $0x13c] sm:$0xf]
      %v5116 = vld [vmem:[%s13 + $0x140] sm:$0xf]
      %v5117 = vld [vmem:[%s13 + $0x144] sm:$0xf]
      %v5118 = vld [vmem:[%s13 + $0x148] sm:$0xf]
      %v5119 = vld [vmem:[%s13 + $0x14c] sm:$0xf]
      %v5120 = vld [vmem:[%s13 + $0x150] sm:$0xf]
      %v5121 = vld [vmem:[%s13 + $0x154] sm:$0xf]
      %v5122 = vld [vmem:[%s13 + $0x158] sm:$0xf]
      %v5123 = vld [vmem:[%s13 + $0x15c] sm:$0xf]
      %v5124 = vld [vmem:[%s13 + $0x160] sm:$0xf]
      %v5125 = vld [vmem:[%s13 + $0x164] sm:$0xf]
      %v5126 = vld [vmem:[%s13 + $0x168] sm:$0xf]
      %v5127 = vld [vmem:[%s13 + $0x16c] sm:$0xf]
      %v5128 = vld [vmem:[%s13 + $0x170] sm:$0xf]
      %v5129 = vld [vmem:[%s13 + $0x174] sm:$0xf]
      %v5130 = vld [vmem:[%s13 + $0x178] sm:$0xf]
      %v5131 = vld [vmem:[%s13 + $0x17c] sm:$0xf]
      %v5132 = vld [vmem:[%s13 + $0x180] sm:$0xf]
      %v5133 = vld [vmem:[%s13 + $0x184] sm:$0xf]
      %v5134 = vld [vmem:[%s13 + $0x188] sm:$0xf]
      %v5135 = vld [vmem:[%s13 + $0x18c] sm:$0xf]
      %v5136 = vld [vmem:[%s13 + $0x190] sm:$0xf]
      %v5137 = vld [vmem:[%s13 + $0x194] sm:$0xf]
      %v5138 = vld [vmem:[%s13 + $0x198] sm:$0xf]
      %v5139 = vld [vmem:[%s13 + $0x19c] sm:$0xf]
      %v5140 = vld [vmem:[%s13 + $0x1a0] sm:$0xf]
      %v5141 = vld [vmem:[%s13 + $0x1a4] sm:$0xf]
      %v5142 = vld [vmem:[%s13 + $0x1a8] sm:$0xf]
      %v5143 = vld [vmem:[%s13 + $0x1ac] sm:$0xf]
      %v5144 = vld [vmem:[%s13 + $0x1b0] sm:$0xf]
      %v5145 = vld [vmem:[%s13 + $0x1b4] sm:$0xf]
      %v5146 = vld [vmem:[%s13 + $0x1b8] sm:$0xf]
      %v5147 = vld [vmem:[%s13 + $0x1bc] sm:$0xf]
      %v5148 = vld [vmem:[%s13 + $0x1c0] sm:$0xf]
      %v5149 = vld [vmem:[%s13 + $0x1c4] sm:$0xf]
      %v5150 = vld [vmem:[%s13 + $0x1c8] sm:$0xf]
      %v5151 = vld [vmem:[%s13 + $0x1cc] sm:$0xf]
      %v5152 = vld [vmem:[%s13 + $0x1d0] sm:$0xf]
      %v5153 = vld [vmem:[%s13 + $0x1d4] sm:$0xf]
      %v5154 = vld [vmem:[%s13 + $0x1d8] sm:$0xf]
      %v5155 = vld [vmem:[%s13 + $0x1dc] sm:$0xf]
      %v5156 = vld [vmem:[%s13 + $0x1e0] sm:$0xf]
      %v5157 = vld [vmem:[%s13 + $0x1e4] sm:$0xf]
      %v5158 = vld [vmem:[%s13 + $0x1e8] sm:$0xf]
      %v5159 = vld [vmem:[%s13 + $0x1ec] sm:$0xf]
      %v5160 = vld [vmem:[%s13 + $0x1f0] sm:$0xf]
      %v5161 = vld [vmem:[%s13 + $0x1f4] sm:$0xf]
      %v5162 = vld [vmem:[%s13 + $0x1f8] sm:$0xf]
      %v5163 = vld [vmem:[%s13 + $0x1fc] sm:$0xf]
      %v5164 = vld [vmem:[%s13 + $0x200] sm:$0xf]
      %v5165 = vld [vmem:[%s13 + $0x204] sm:$0xf]
      %v5166 = vld [vmem:[%s13 + $0x208] sm:$0xf]
      %v5167 = vld [vmem:[%s13 + $0x20c] sm:$0xf]
      %v5168 = vld [vmem:[%s13 + $0x210] sm:$0xf]
      %v5169 = vld [vmem:[%s13 + $0x214] sm:$0xf]
      %v5170 = vld [vmem:[%s13 + $0x218] sm:$0xf]
      %v5171 = vld [vmem:[%s13 + $0x21c] sm:$0xf]
      %v5172 = vld [vmem:[%s13 + $0x220] sm:$0xf]
      %v5173 = vld [vmem:[%s13 + $0x224] sm:$0xf]
      %v5174 = vld [vmem:[%s13 + $0x228] sm:$0xf]
      %v5175 = vld [vmem:[%s13 + $0x22c] sm:$0xf]
      %v5176 = vld [vmem:[%s13 + $0x230] sm:$0xf]
      %v5177 = vld [vmem:[%s13 + $0x234] sm:$0xf]
      %v5178 = vld [vmem:[%s13 + $0x238] sm:$0xf]
      %v5179 = vld [vmem:[%s13 + $0x23c] sm:$0xf]
      %v5180 = vld [vmem:[%s14] sm:$0x1]
      %v5182 = vperm.slane %v5180, 0
      %v5185 = vshrl.u32 %v4914, 16
      %v5187 = vshll.u32 %v4914, 16
      %v5189 = vrot.slane %v5187, 1
      %v5190 = vor.u32 %v5185, %v5189
      %v5191 = vsel %vm1395, %v5190, %v4930
      %v5193 = vshrl.u32 %v4931, 16
      %v5195 = vshll.u32 %v4931, 16
      %v5197 = vrot.slane %v5195, 1
      %v5198 = vor.u32 %v5193, %v5197
      %v5200 = vshll.u32 %v4939, 16
      %v5202 = vrot.slane %v5200, 1
      %v5203 = vsel %vm1395, %v5198, %v5202
      %v5205 = vshrl.u32 %v4948, 16
      %v5207 = vshll.u32 %v4948, 16
      %v5209 = vrot.slane %v5207, 1
      %v5210 = vor.u32 %v5205, %v5209
      %v5212 = vshll.u32 %v4950, 16
      %v5214 = vrot.slane %v5212, 1
      %v5215 = vsel %vm1395, %v5210, %v5214
      %v5217 = vshrl.u32 %v4959, 16
      %v5219 = vshll.u32 %v4959, 16
      %v5221 = vrot.slane %v5219, 1
      %v5222 = vor.u32 %v5217, %v5221
      %v5224 = vshll.u32 %v4961, 16
      %v5226 = vrot.slane %v5224, 1
      %v5227 = vsel %vm1395, %v5222, %v5226
      %v5229 = vshrl.u32 %v4971, 16
      %v5231 = vshll.u32 %v4971, 16
      %v5233 = vrot.slane %v5231, 1
      %v5234 = vor.u32 %v5229, %v5233
      %v5236 = vshll.u32 %v4979, 16
      %v5238 = vrot.slane %v5236, 1
      %v5239 = vsel %vm1395, %v5234, %v5238
      %v5240 = vrot.slane %v4969, 1
      %v5241 = vor.u32 %v4966, %v5240
      %v5242 = vrot.slane %v4976, 1
      %v5243 = vsel %vm1395, %v5241, %v5242
      %v5245 = vshrl.u32 %v5001, 16
      %v5247 = vshll.u32 %v5001, 16
      %v5249 = vrot.slane %v5247, 1
      %v5250 = vor.u32 %v5245, %v5249
      %v5252 = vshll.u32 %v5003, 16
      %v5254 = vrot.slane %v5252, 1
      %v5255 = vsel %vm1395, %v5250, %v5254
      %v5257 = vshrl.u32 %v5018, 16
      %v5259 = vshll.u32 %v5018, 16
      %v5261 = vrot.slane %v5259, 1
      %v5262 = vor.u32 %v5257, %v5261
      %v5264 = vshll.u32 %v5027, 16
      %v5266 = vrot.slane %v5264, 1
      %v5267 = vsel %vm1395, %v5262, %v5266
      %v5269 = vshrl.u32 %v5033, 16
      %v5271 = vshll.u32 %v5033, 16
      %v5273 = vrot.slane %v5271, 1
      %v5274 = vor.u32 %v5269, %v5273
      %v5276 = vshll.u32 %v5035, 16
      %v5278 = vrot.slane %v5276, 1
      %v5279 = vsel %vm1395, %v5274, %v5278
      %v5280 = vshrl.u32 %v4939, 16
      %v5282 = vor.u32 %v5280, %v5202
      %v5284 = vshll.u32 %v4942, 16
      %v5286 = vrot.slane %v5284, 1
      %v5287 = vsel %vm1395, %v5282, %v5286
      %v5288 = vshrl.u32 %v4950, 16
      %v5290 = vor.u32 %v5288, %v5214
      %v5292 = vshll.u32 %v4949, 16
      %v5294 = vrot.slane %v5292, 1
      %v5295 = vsel %vm1395, %v5290, %v5294
      %v5296 = vshrl.u32 %v4961, 16
      %v5298 = vor.u32 %v5296, %v5226
      %v5300 = vshll.u32 %v4960, 16
      %v5302 = vrot.slane %v5300, 1
      %v5303 = vsel %vm1395, %v5298, %v5302
      %v5304 = vshrl.u32 %v4979, 16
      %v5306 = vor.u32 %v5304, %v5238
      %v5308 = vshll.u32 %v4987, 16
      %v5310 = vrot.slane %v5308, 1
      %v5311 = vsel %vm1395, %v5306, %v5310
      %v5312 = vor.u32 %v4973, %v5242
      %v5314 = vshll.u32 %v4990, 16
      %v5316 = vrot.slane %v5314, 1
      %v5317 = vsel %vm1395, %v5312, %v5316
      %v5318 = vshrl.u32 %v5003, 16
      %v5320 = vor.u32 %v5318, %v5254
      %v5322 = vshll.u32 %v5002, 16
      %v5324 = vrot.slane %v5322, 1
      %v5325 = vsel %vm1395, %v5320, %v5324
      %v5326 = vshrl.u32 %v5027, 16
      %v5328 = vor.u32 %v5326, %v5266
      %v5330 = vshll.u32 %v5026, 16
      %v5332 = vrot.slane %v5330, 1
      %v5333 = vsel %vm1395, %v5328, %v5332
      %v5334 = vshrl.u32 %v5035, 16
      %v5336 = vor.u32 %v5334, %v5278
      %v5338 = vshll.u32 %v5034, 16
      %v5340 = vrot.slane %v5338, 1
      %v5341 = vsel %vm1395, %v5336, %v5340
      %v5342 = vshrl.u32 %v4942, 16
      %v5344 = vor.u32 %v5342, %v5286
      %v5345 = vshrl.u32 %v4949, 16
      %v5347 = vor.u32 %v5345, %v5294
      %v5348 = vshrl.u32 %v4960, 16
      %v5350 = vor.u32 %v5348, %v5302
      %v5351 = vshrl.u32 %v4987, 16
      %v5353 = vor.u32 %v5351, %v5310
      %v5354 = vshrl.u32 %v4990, 16
      %v5356 = vor.u32 %v5354, %v5316
      %v5357 = vshrl.u32 %v5002, 16
      %v5359 = vor.u32 %v5357, %v5324
      %v5360 = vshrl.u32 %v5026, 16
      %v5362 = vor.u32 %v5360, %v5332
      %v5363 = vshrl.u32 %v5034, 16
      %v5365 = vor.u32 %v5363, %v5340
      %v5537 = vunpack.c.l.b16 %v5036
      %v5538 = vunpack.c.l.b16 %v5037
      %v5539 = vunpack.c.l.b16 %v5038
      %v5540 = vunpack.c.l.b16 %v5039
      %v5541 = vunpack.c.l.b16 %v5040
      %v5542 = vunpack.c.l.b16 %v5041
      %v5543 = vunpack.c.l.b16 %v5042
      %v5544 = vunpack.c.l.b16 %v5043
      %v5545 = vunpack.c.l.b16 %v5044
      %v5546 = vunpack.c.l.b16 %v5045
      %v5547 = vunpack.c.l.b16 %v5046
      %v5548 = vunpack.c.l.b16 %v5047
      %v5549 = vunpack.c.l.b16 %v5048
      %v5550 = vunpack.c.l.b16 %v5049
      %v5551 = vunpack.c.l.b16 %v5050
      %v5552 = vunpack.c.l.b16 %v5051
      %v5553 = vunpack.c.l.b16 %v5052
      %v5554 = vunpack.c.l.b16 %v5053
      %v5555 = vunpack.c.l.b16 %v5054
      %v5556 = vunpack.c.l.b16 %v5055
      %v5557 = vunpack.c.l.b16 %v5056
      %v5558 = vunpack.c.l.b16 %v5057
      %v5559 = vunpack.c.l.b16 %v5058
      %v5560 = vunpack.c.l.b16 %v5059
      %v5561 = vunpack.c.l.b16 %v5060
      %v5562 = vunpack.c.l.b16 %v5061
      %v5563 = vunpack.c.l.b16 %v5062
      %v5564 = vunpack.c.l.b16 %v5063
      %v5565 = vunpack.c.l.b16 %v5064
      %v5566 = vunpack.c.l.b16 %v5065
      %v5567 = vunpack.c.l.b16 %v5066
      %v5568 = vunpack.c.l.b16 %v5067
      %v5569 = vunpack.c.l.b16 %v5068
      %v5570 = vunpack.c.l.b16 %v5069
      %v5571 = vunpack.c.l.b16 %v5070
      %v5572 = vunpack.c.l.b16 %v5071
      %v5573 = vunpack.c.l.b16 %v5072
      %v5574 = vunpack.c.l.b16 %v5073
      %v5575 = vunpack.c.l.b16 %v5074
      %v5576 = vunpack.c.l.b16 %v5075
      %v5577 = vunpack.c.l.b16 %v5076
      %v5578 = vunpack.c.l.b16 %v5077
      %v5579 = vunpack.c.l.b16 %v5078
      %v5580 = vunpack.c.l.b16 %v5079
      %v5581 = vunpack.c.l.b16 %v5080
      %v5582 = vunpack.c.l.b16 %v5081
      %v5583 = vunpack.c.l.b16 %v5082
      %v5584 = vunpack.c.l.b16 %v5083
      %v5585 = vunpack.c.l.b16 %v5084
      %v5586 = vunpack.c.l.b16 %v5085
      %v5587 = vunpack.c.l.b16 %v5086
      %v5588 = vunpack.c.l.b16 %v5087
      %v5589 = vunpack.c.l.b16 %v5088
      %v5590 = vunpack.c.l.b16 %v5089
      %v5591 = vunpack.c.l.b16 %v5090
      %v5592 = vunpack.c.l.b16 %v5091
      %v5593 = vunpack.c.l.b16 %v5092
      %v5594 = vunpack.c.l.b16 %v5093
      %v5595 = vunpack.c.l.b16 %v5094
      %v5596 = vunpack.c.l.b16 %v5095
      %v5597 = vunpack.c.l.b16 %v5096
      %v5598 = vunpack.c.l.b16 %v5097
      %v5599 = vunpack.c.l.b16 %v5098
      %v5600 = vunpack.c.l.b16 %v5099
      %v5601 = vunpack.c.l.b16 %v5100
      %v5602 = vunpack.c.l.b16 %v5101
      %v5603 = vunpack.c.l.b16 %v5102
      %v5604 = vunpack.c.l.b16 %v5103
      %v5605 = vunpack.c.l.b16 %v5104
      %v5606 = vunpack.c.l.b16 %v5105
      %v5607 = vunpack.c.l.b16 %v5106
      %v5608 = vunpack.c.l.b16 %v5107
      %v5609 = vunpack.c.l.b16 %v5108
      %v5610 = vunpack.c.l.b16 %v5109
      %v5611 = vunpack.c.l.b16 %v5110
      %v5612 = vunpack.c.l.b16 %v5111
      %v5613 = vunpack.c.l.b16 %v5112
      %v5614 = vunpack.c.l.b16 %v5113
      %v5615 = vunpack.c.l.b16 %v5114
      %v5616 = vunpack.c.l.b16 %v5115
      %v5617 = vunpack.c.l.b16 %v5116
      %v5618 = vunpack.c.l.b16 %v5117
      %v5619 = vunpack.c.l.b16 %v5118
      %v5620 = vunpack.c.l.b16 %v5119
      %v5621 = vunpack.c.l.b16 %v5120
      %v5622 = vunpack.c.l.b16 %v5121
      %v5623 = vunpack.c.l.b16 %v5122
      %v5624 = vunpack.c.l.b16 %v5123
      %v5625 = vunpack.c.l.b16 %v5124
      %v5626 = vunpack.c.l.b16 %v5125
      %v5627 = vunpack.c.l.b16 %v5126
      %v5628 = vunpack.c.l.b16 %v5127
      %v5629 = vunpack.c.l.b16 %v5128
      %v5630 = vunpack.c.l.b16 %v5129
      %v5631 = vunpack.c.l.b16 %v5130
      %v5632 = vunpack.c.l.b16 %v5131
      %v5633 = vunpack.c.l.b16 %v5132
      %v5634 = vunpack.c.l.b16 %v5133
      %v5635 = vunpack.c.l.b16 %v5134
      %v5636 = vunpack.c.l.b16 %v5135
      %v5637 = vunpack.c.l.b16 %v5136
      %v5638 = vunpack.c.l.b16 %v5137
      %v5639 = vunpack.c.l.b16 %v5138
      %v5640 = vunpack.c.l.b16 %v5139
      %v5641 = vunpack.c.l.b16 %v5140
      %v5642 = vunpack.c.l.b16 %v5141
      %v5643 = vunpack.c.l.b16 %v5142
      %v5644 = vunpack.c.l.b16 %v5143
      %v5645 = vunpack.c.l.b16 %v5144
      %v5646 = vunpack.c.l.b16 %v5145
      %v5647 = vunpack.c.l.b16 %v5146
      %v5648 = vunpack.c.l.b16 %v5147
      %v5649 = vunpack.c.l.b16 %v5148
      %v5650 = vunpack.c.l.b16 %v5149
      %v5651 = vunpack.c.l.b16 %v5150
      %v5652 = vunpack.c.l.b16 %v5151
      %v5653 = vunpack.c.l.b16 %v5152
      %v5654 = vunpack.c.l.b16 %v5153
      %v5655 = vunpack.c.l.b16 %v5154
      %v5656 = vunpack.c.l.b16 %v5155
      %v5657 = vunpack.c.l.b16 %v5156
      %v5658 = vunpack.c.l.b16 %v5157
      %v5659 = vunpack.c.l.b16 %v5158
      %v5660 = vunpack.c.l.b16 %v5159
      %v5661 = vunpack.c.l.b16 %v5160
      %v5662 = vunpack.c.l.b16 %v5161
      %v5663 = vunpack.c.l.b16 %v5162
      %v5664 = vunpack.c.l.b16 %v5163
      %v5665 = vunpack.c.l.b16 %v5164
      %v5666 = vunpack.c.l.b16 %v5165
      %v5667 = vunpack.c.l.b16 %v5166
      %v5668 = vunpack.c.l.b16 %v5167
      %v5669 = vunpack.c.l.b16 %v5168
      %v5670 = vunpack.c.l.b16 %v5169
      %v5671 = vunpack.c.l.b16 %v5170
      %v5672 = vunpack.c.l.b16 %v5171
      %v5673 = vunpack.c.l.b16 %v5172
      %v5674 = vunpack.c.l.b16 %v5173
      %v5675 = vunpack.c.l.b16 %v5174
      %v5676 = vunpack.c.l.b16 %v5175
      %v5677 = vunpack.c.l.b16 %v5176
      %v5678 = vunpack.c.l.b16 %v5177
      %v5679 = vunpack.c.l.b16 %v5178
      %v5680 = vunpack.c.l.b16 %v5179
      %v5681 = vpack.c.b16 %v5538, %v5537
      %v5682 = vpack.c.b16 %v5540, %v5539
      %v5683 = vpack.c.b16 %v5542, %v5541
      %v5684 = vpack.c.b16 %v5544, %v5543
      %v5685 = vpack.c.b16 %v5546, %v5545
      %v5686 = vpack.c.b16 %v5548, %v5547
      %v5687 = vpack.c.b16 %v5550, %v5549
      %v5688 = vpack.c.b16 %v5552, %v5551
      %v5689 = vpack.c.b16 %v5554, %v5553
      %v5690 = vpack.c.b16 %v5556, %v5555
      %v5691 = vpack.c.b16 %v5558, %v5557
      %v5692 = vpack.c.b16 %v5560, %v5559
      %v5693 = vpack.c.b16 %v5562, %v5561
      %v5694 = vpack.c.b16 %v5564, %v5563
      %v5695 = vpack.c.b16 %v5566, %v5565
      %v5696 = vpack.c.b16 %v5568, %v5567
      %v5697 = vpack.c.b16 %v5570, %v5569
      %v5698 = vpack.c.b16 %v5572, %v5571
      %v5699 = vpack.c.b16 %v5574, %v5573
      %v5700 = vpack.c.b16 %v5576, %v5575
      %v5701 = vpack.c.b16 %v5578, %v5577
      %v5702 = vpack.c.b16 %v5580, %v5579
      %v5703 = vpack.c.b16 %v5582, %v5581
      %v5704 = vpack.c.b16 %v5584, %v5583
      %v5705 = vpack.c.b16 %v5586, %v5585
      %v5706 = vpack.c.b16 %v5588, %v5587
      %v5707 = vpack.c.b16 %v5590, %v5589
      %v5708 = vpack.c.b16 %v5592, %v5591
      %v5709 = vpack.c.b16 %v5594, %v5593
      %v5710 = vpack.c.b16 %v5596, %v5595
      %v5711 = vpack.c.b16 %v5598, %v5597
      %v5712 = vpack.c.b16 %v5600, %v5599
      %v5713 = vpack.c.b16 %v5602, %v5601
      %v5714 = vpack.c.b16 %v5604, %v5603
      %v5715 = vpack.c.b16 %v5606, %v5605
      %v5716 = vpack.c.b16 %v5608, %v5607
      %v5717 = vpack.c.b16 %v5610, %v5609
      %v5718 = vpack.c.b16 %v5612, %v5611
      %v5719 = vpack.c.b16 %v5614, %v5613
      %v5720 = vpack.c.b16 %v5616, %v5615
      %v5721 = vpack.c.b16 %v5618, %v5617
      %v5722 = vpack.c.b16 %v5620, %v5619
      %v5723 = vpack.c.b16 %v5622, %v5621
      %v5724 = vpack.c.b16 %v5624, %v5623
      %v5725 = vpack.c.b16 %v5626, %v5625
      %v5726 = vpack.c.b16 %v5628, %v5627
      %v5727 = vpack.c.b16 %v5630, %v5629
      %v5728 = vpack.c.b16 %v5632, %v5631
      %v5729 = vpack.c.b16 %v5634, %v5633
      %v5730 = vpack.c.b16 %v5636, %v5635
      %v5731 = vpack.c.b16 %v5638, %v5637
      %v5732 = vpack.c.b16 %v5640, %v5639
      %v5733 = vpack.c.b16 %v5642, %v5641
      %v5734 = vpack.c.b16 %v5644, %v5643
      %v5735 = vpack.c.b16 %v5646, %v5645
      %v5736 = vpack.c.b16 %v5648, %v5647
      %v5737 = vpack.c.b16 %v5650, %v5649
      %v5738 = vpack.c.b16 %v5652, %v5651
      %v5739 = vpack.c.b16 %v5654, %v5653
      %v5740 = vpack.c.b16 %v5656, %v5655
      %v5741 = vpack.c.b16 %v5658, %v5657
      %v5742 = vpack.c.b16 %v5660, %v5659
      %v5743 = vpack.c.b16 %v5662, %v5661
      %v5744 = vpack.c.b16 %v5664, %v5663
      %v5745 = vpack.c.b16 %v5666, %v5665
      %v5746 = vpack.c.b16 %v5668, %v5667
      %v5747 = vpack.c.b16 %v5670, %v5669
      %v5748 = vpack.c.b16 %v5672, %v5671
      %v5749 = vpack.c.b16 %v5674, %v5673
      %v5750 = vpack.c.b16 %v5676, %v5675
      %v5751 = vpack.c.b16 %v5678, %v5677
      %v5752 = vpack.c.b16 %v5680, %v5679
      %5825 = vmatpush.bf16.msra.mxu0 %v5688
      %5826 = vmatpush.bf16.msra.mxu0 %v5687
      %5827 = vmatpush.bf16.msra.mxu0 %v5686
      %5828 = vmatpush.bf16.msra.mxu0 %v5685
      %5829 = vmatpush.bf16.msra.mxu0 %v5684
      %5830 = vmatpush.bf16.msra.mxu0 %v5683
      %5831 = vmatpush.bf16.msra.mxu0 %v5682
      %5832 = vmatpush.bf16.msra.mxu0 %v5681
      %5833 = vmatmul.bf16.gmra.mxu0 %v5191
      %v5834 = vpop.f32.mrf.mxu0
      %v5835 = vadd.f32 %v5182, %v5834
      %v5836 = vpop.f32.mrf.mxu0
      %v5837 = vadd.f32 %v5182, %v5836
      %5838 = vmatmul.bf16.gmra.mxu0 %v4939
      %v5839 = vpop.f32.mrf.mxu0
      %v5840 = vadd.f32 %v5182, %v5839
      %v5841 = vpop.f32.mrf.mxu0
      %v5842 = vadd.f32 %v5182, %v5841
      %5843 = vmatmul.bf16.gmra.mxu0 %v4942
      %v5844 = vpop.f32.mrf.mxu0
      %v5845 = vadd.f32 %v5182, %v5844
      %v5846 = vpop.f32.mrf.mxu0
      %5847 = vdwg.mxu0
      %5848 = vmatpush.bf16.msra.mxu0 %v5696
      %5849 = vmatpush.bf16.msra.mxu0 %v5695
      %5850 = vmatpush.bf16.msra.mxu0 %v5694
      %5851 = vmatpush.bf16.msra.mxu0 %v5693
      %5852 = vmatpush.bf16.msra.mxu0 %v5692
      %5853 = vmatpush.bf16.msra.mxu0 %v5691
      %5854 = vmatpush.bf16.msra.mxu0 %v5690
      %5855 = vmatpush.bf16.msra.mxu0 %v5689
      %5856 = vmatmul.bf16.gmra.mxu0 %v5203
      %v5857 = vpop.f32.mrf.mxu0
      %v5858 = vadd.f32 %v5835, %v5857
      %v5859 = vpop.f32.mrf.mxu0
      %v5860 = vadd.f32 %v5837, %v5859
      %5861 = vmatmul.bf16.gmra.mxu0 %v5287
      %v5862 = vpop.f32.mrf.mxu0
      %v5863 = vadd.f32 %v5840, %v5862
      %v5864 = vpop.f32.mrf.mxu0
      %v5865 = vadd.f32 %v5842, %v5864
      %5866 = vmatmul.bf16.gmra.mxu0 %v5344
      %v5867 = vpop.f32.mrf.mxu0
      %v5868 = vadd.f32 %v5845, %v5867
      %v5869 = vpop.f32.mrf.mxu0
      %5870 = vdwg.mxu0
      %5871 = vmatpush.bf16.msra.mxu0 %v5704
      %5872 = vmatpush.bf16.msra.mxu0 %v5703
      %5873 = vmatpush.bf16.msra.mxu0 %v5702
      %5874 = vmatpush.bf16.msra.mxu0 %v5701
      %5875 = vmatpush.bf16.msra.mxu0 %v5700
      %5876 = vmatpush.bf16.msra.mxu0 %v5699
      %5877 = vmatpush.bf16.msra.mxu0 %v5698
      %5878 = vmatpush.bf16.msra.mxu0 %v5697
      %5879 = vmatmul.bf16.gmra.mxu0 %v5215
      %v5880 = vpop.f32.mrf.mxu0
      %v5881 = vadd.f32 %v5858, %v5880
      %v5882 = vpop.f32.mrf.mxu0
      %v5883 = vadd.f32 %v5860, %v5882
      %5884 = vmatmul.bf16.gmra.mxu0 %v5295
      %v5885 = vpop.f32.mrf.mxu0
      %v5886 = vadd.f32 %v5863, %v5885
      %v5887 = vpop.f32.mrf.mxu0
      %v5888 = vadd.f32 %v5865, %v5887
      %5889 = vmatmul.bf16.gmra.mxu0 %v5347
      %v5890 = vpop.f32.mrf.mxu0
      %v5891 = vadd.f32 %v5868, %v5890
      %v5892 = vpop.f32.mrf.mxu0
      %5893 = vdwg.mxu0
      %5894 = vmatpush.bf16.msra.mxu0 %v5712
      %5895 = vmatpush.bf16.msra.mxu0 %v5711
      %5896 = vmatpush.bf16.msra.mxu0 %v5710
      %5897 = vmatpush.bf16.msra.mxu0 %v5709
      %5898 = vmatpush.bf16.msra.mxu0 %v5708
      %5899 = vmatpush.bf16.msra.mxu0 %v5707
      %5900 = vmatpush.bf16.msra.mxu0 %v5706
      %5901 = vmatpush.bf16.msra.mxu0 %v5705
      %5902 = vmatmul.bf16.gmra.mxu0 %v5227
      %v5903 = vpop.f32.mrf.mxu0
      %v5904 = vadd.f32 %v5881, %v5903
      %v5905 = vpop.f32.mrf.mxu0
      %v5906 = vadd.f32 %v5883, %v5905
      %5907 = vmatmul.bf16.gmra.mxu0 %v5303
      %v5908 = vpop.f32.mrf.mxu0
      %v5909 = vadd.f32 %v5886, %v5908
      %v5910 = vpop.f32.mrf.mxu0
      %v5911 = vadd.f32 %v5888, %v5910
      %5912 = vmatmul.bf16.gmra.mxu0 %v5350
      %v5913 = vpop.f32.mrf.mxu0
      %v5914 = vadd.f32 %v5891, %v5913
      %v5915 = vpop.f32.mrf.mxu0
      %5916 = vdwg.mxu0
      %5917 = vmatpush.bf16.msra.mxu0 %v5720
      %5918 = vmatpush.bf16.msra.mxu0 %v5719
      %5919 = vmatpush.bf16.msra.mxu0 %v5718
      %5920 = vmatpush.bf16.msra.mxu0 %v5717
      %5921 = vmatpush.bf16.msra.mxu0 %v5716
      %5922 = vmatpush.bf16.msra.mxu0 %v5715
      %5923 = vmatpush.bf16.msra.mxu0 %v5714
      %5924 = vmatpush.bf16.msra.mxu0 %v5713
      %5925 = vmatmul.bf16.gmra.mxu0 %v5239
      %v5926 = vpop.f32.mrf.mxu0
      %v5927 = vadd.f32 %v5904, %v5926
      %v5928 = vpop.f32.mrf.mxu0
      %v5929 = vadd.f32 %v5906, %v5928
      %5930 = vmatmul.bf16.gmra.mxu0 %v5311
      %v5931 = vpop.f32.mrf.mxu0
      %v5932 = vadd.f32 %v5909, %v5931
      %v5933 = vpop.f32.mrf.mxu0
      %v5934 = vadd.f32 %v5911, %v5933
      %5935 = vmatmul.bf16.gmra.mxu0 %v5353
      %v5936 = vpop.f32.mrf.mxu0
      %v5937 = vadd.f32 %v5914, %v5936
      %v5938 = vpop.f32.mrf.mxu0
      %5939 = vdwg.mxu0
      %5940 = vmatpush.bf16.msra.mxu0 %v5728
      %5941 = vmatpush.bf16.msra.mxu0 %v5727
      %5942 = vmatpush.bf16.msra.mxu0 %v5726
      %5943 = vmatpush.bf16.msra.mxu0 %v5725
      %5944 = vmatpush.bf16.msra.mxu0 %v5724
      %5945 = vmatpush.bf16.msra.mxu0 %v5723
      %5946 = vmatpush.bf16.msra.mxu0 %v5722
      %5947 = vmatpush.bf16.msra.mxu0 %v5721
      %5948 = vmatmul.bf16.gmra.mxu0 %v5243
      %v5949 = vpop.f32.mrf.mxu0
      %v5950 = vadd.f32 %v5927, %v5949
      %v5951 = vpop.f32.mrf.mxu0
      %v5952 = vadd.f32 %v5929, %v5951
      %5953 = vmatmul.bf16.gmra.mxu0 %v5317
      %v5954 = vpop.f32.mrf.mxu0
      %v5955 = vadd.f32 %v5932, %v5954
      %v5956 = vpop.f32.mrf.mxu0
      %v5957 = vadd.f32 %v5934, %v5956
      %5958 = vmatmul.bf16.gmra.mxu0 %v5356
      %v5959 = vpop.f32.mrf.mxu0
      %v5960 = vadd.f32 %v5937, %v5959
      %v5961 = vpop.f32.mrf.mxu0
      %5962 = vdwg.mxu0
      %5963 = vmatpush.bf16.msra.mxu0 %v5736
      %5964 = vmatpush.bf16.msra.mxu0 %v5735
      %5965 = vmatpush.bf16.msra.mxu0 %v5734
      %5966 = vmatpush.bf16.msra.mxu0 %v5733
      %5967 = vmatpush.bf16.msra.mxu0 %v5732
      %5968 = vmatpush.bf16.msra.mxu0 %v5731
      %5969 = vmatpush.bf16.msra.mxu0 %v5730
      %5970 = vmatpush.bf16.msra.mxu0 %v5729
      %5971 = vmatmul.bf16.gmra.mxu0 %v5255
      %v5972 = vpop.f32.mrf.mxu0
      %v5973 = vadd.f32 %v5950, %v5972
      %v5974 = vpop.f32.mrf.mxu0
      %v5975 = vadd.f32 %v5952, %v5974
      %5976 = vmatmul.bf16.gmra.mxu0 %v5325
      %v5977 = vpop.f32.mrf.mxu0
      %v5978 = vadd.f32 %v5955, %v5977
      %v5979 = vpop.f32.mrf.mxu0
      %v5980 = vadd.f32 %v5957, %v5979
      %5981 = vmatmul.bf16.gmra.mxu0 %v5359
      %v5982 = vpop.f32.mrf.mxu0
      %v5983 = vadd.f32 %v5960, %v5982
      %v5984 = vpop.f32.mrf.mxu0
      %5985 = vdwg.mxu0
      %5986 = vmatpush.bf16.msra.mxu0 %v5744
      %5987 = vmatpush.bf16.msra.mxu0 %v5743
      %5988 = vmatpush.bf16.msra.mxu0 %v5742
      %5989 = vmatpush.bf16.msra.mxu0 %v5741
      %5990 = vmatpush.bf16.msra.mxu0 %v5740
      %5991 = vmatpush.bf16.msra.mxu0 %v5739
      %5992 = vmatpush.bf16.msra.mxu0 %v5738
      %5993 = vmatpush.bf16.msra.mxu0 %v5737
      %5994 = vmatmul.bf16.gmra.mxu0 %v5267
      %v5995 = vpop.f32.mrf.mxu0
      %v5996 = vadd.f32 %v5973, %v5995
      %v5997 = vpop.f32.mrf.mxu0
      %v5998 = vadd.f32 %v5975, %v5997
      %5999 = vmatmul.bf16.gmra.mxu0 %v5333
      %v6000 = vpop.f32.mrf.mxu0
      %v6001 = vadd.f32 %v5978, %v6000
      %v6002 = vpop.f32.mrf.mxu0
      %v6003 = vadd.f32 %v5980, %v6002
      %6004 = vmatmul.bf16.gmra.mxu0 %v5362
      %v6005 = vpop.f32.mrf.mxu0
      %v6006 = vadd.f32 %v5983, %v6005
      %v6007 = vpop.f32.mrf.mxu0
      %6008 = vdwg.mxu0
      %6009 = vmatpush.bf16.msra.mxu0 %v5752
      %6010 = vmatpush.bf16.msra.mxu0 %v5751
      %6011 = vmatpush.bf16.msra.mxu0 %v5750
      %6012 = vmatpush.bf16.msra.mxu0 %v5749
      %6013 = vmatpush.bf16.msra.mxu0 %v5748
      %6014 = vmatpush.bf16.msra.mxu0 %v5747
      %6015 = vmatpush.bf16.msra.mxu0 %v5746
      %6016 = vmatpush.bf16.msra.mxu0 %v5745
      %6017 = vmatmul.bf16.gmra.mxu0 %v5279
      %v6018 = vpop.f32.mrf.mxu0
      %v6019 = vadd.f32 %v5996, %v6018
      %v6020 = vpop.f32.mrf.mxu0
      %v6021 = vadd.f32 %v5998, %v6020
      %6022 = vmatmul.bf16.gmra.mxu0 %v5341
      %v6023 = vpop.f32.mrf.mxu0
      %v6024 = vadd.f32 %v6001, %v6023
      %v6025 = vpop.f32.mrf.mxu0
      %v6026 = vadd.f32 %v6003, %v6025
      %6027 = vmatmul.bf16.gmra.mxu0 %v5365
      %v6028 = vpop.f32.mrf.mxu0
      %v6029 = vadd.f32 %v6006, %v6028
      %v6030 = vpop.f32.mrf.mxu0
      %6031 = vdwg.mxu0
      %v6032 = vadd.f32 %v6019, %v3711
      %v6033 = vadd.f32 %v6021, %v3712
      %v6034 = vadd.f32 %v6024, %v3713
      %v6035 = vadd.f32 %v6026, %v3714
      %v6036 = vadd.f32 %v6029, %v3715
      %v6037 = vmax.f32 %v6032, 0.0
      %v6038 = vmax.f32 %v6033, 0.0
      %v6039 = vmax.f32 %v6034, 0.0
      %v6040 = vmax.f32 %v6035, 0.0
      %v6041 = vmax.f32 %v6036, 0.0
      %v6042 = vsel %vm2538, %v6037, 0.0
      %v6043 = vsel %vm2539, %v6038, 0.0
      %v6044 = vsel %vm2540, %v6039, 0.0
      %v6045 = vsel %vm2541, %v6040, 0.0
      %v6046 = vsel %vm2542, %v6041, 0.0
      %v6047 = vld [vmem:[%s6] sm:$0xff]
      %vm6048 = vcmask 293888
      %v6050 = vsel %vm6048, %v6047, 0
      %v6053 = vsel %vm1246, %v6046, 0
      %6055 = vmatpush.msra.mxu0 0.0
      %6056 = vmatpush.msra.mxu0 0.0
      %6057 = vmatpush.msra.mxu0 0.0
      %6058 = vmatpush.msra.mxu0 0.0
      %6059 = vmatpush.msra.mxu0 0.0
      %6060 = vmatpush.msra.mxu0 0.0
      %6061 = vmatpush.msra.mxu0 0.0
      %6062 = vmatpush.msra.mxu0 0.0
      %6063 = vmatpush.msra.mxu0 0.0
      %6064 = vmatpush.msra.mxu0 0.0
      %6065 = vmatpush.msra.mxu0 0.0
      %6066 = vmatpush.msra.mxu0 %v6053
      %6067 = vmatpush.msra.mxu0 %v6045
      %6068 = vmatpush.msra.mxu0 %v6044
      %6069 = vmatpush.msra.mxu0 %v6043
      %6070 = vmatpush.msra.mxu0 %v6042
      %6071 = vmatmul.f32.gmra.mxu0 %v6050
      %v6072 = vpop.f32.mrf.mxu0
      %v6073 = vadd.f32 0.0, %v6072
      %6074 = vdwg.mxu0
      %v6075 = vld [vmem:[%s15] sm:$0xff]
      %v6076 = vld [vmem:[%s15 + $0x8] sm:$0xff]
      %v6077 = vld [vmem:[%s15 + $0x10] sm:$0xff]
      %v6078 = vld [vmem:[%s15 + $0x18] sm:$0xff]
      %v6079 = vld [vmem:[%s15 + $0x20] sm:$0xff]
      %v6080 = vld [vmem:[%s15 + $0x28] sm:$0xff]
      %v6081 = vld [vmem:[%s15 + $0x30] sm:$0xff]
      %v6082 = vld [vmem:[%s15 + $0x38] sm:$0xff]
      %v6083 = vld [vmem:[%s15 + $0x40] sm:$0xff]
      %v6084 = vld [vmem:[%s15 + $0x48] sm:$0xff]
      %v6085 = vld [vmem:[%s15 + $0x50] sm:$0xff]
      %v6086 = vld [vmem:[%s15 + $0x58] sm:$0xff]
      %v6087 = vld [vmem:[%s15 + $0x60] sm:$0xff]
      %v6088 = vld [vmem:[%s15 + $0x68] sm:$0xff]
      %v6089 = vld [vmem:[%s15 + $0x70] sm:$0xff]
      %v6090 = vld [vmem:[%s15 + $0x78] sm:$0xff]
      %v6091 = vld [vmem:[%s16] sm:$0x1]
      %v6093 = vperm.slane %v6091, 0
      %6095 = vmatpush.msra.mxu0 %v6090
      %6096 = vmatpush.msra.mxu0 %v6089
      %6097 = vmatpush.msra.mxu0 %v6088
      %6098 = vmatpush.msra.mxu0 %v6087
      %6099 = vmatpush.msra.mxu0 %v6086
      %6100 = vmatpush.msra.mxu0 %v6085
      %6101 = vmatpush.msra.mxu0 %v6084
      %6102 = vmatpush.msra.mxu0 %v6083
      %6103 = vmatpush.msra.mxu0 %v6082
      %6104 = vmatpush.msra.mxu0 %v6081
      %6105 = vmatpush.msra.mxu0 %v6080
      %6106 = vmatpush.msra.mxu0 %v6079
      %6107 = vmatpush.msra.mxu0 %v6078
      %6108 = vmatpush.msra.mxu0 %v6077
      %6109 = vmatpush.msra.mxu0 %v6076
      %6110 = vmatpush.msra.mxu0 %v6075
      %6111 = vmatmul.f32.gmra.mxu0 %v6073
      %v6112 = vpop.f32.mrf.mxu0
      %v6113 = vadd.f32 %v6093, %v6112
      %6114 = vdwg.mxu0
      %v6115 = vmax.f32 %v6113, 0.0
      %v6116 = vld [vmem:[%s17] sm:$0xff]
      %v6117 = vld [vmem:[%s17 + $0x8] sm:$0xff]
      %v6118 = vld [vmem:[%s17 + $0x10] sm:$0xff]
      %v6119 = vld [vmem:[%s17 + $0x18] sm:$0xff]
      %v6120 = vld [vmem:[%s18] sm:$0x1]
      %v6122 = vperm.slane %v6120, 0
      %vm6124 = vcmask 261120
      %v6126 = vsel %vm6124, %v6115, 0
      %6128 = vmatpush.msra.mxu0 0.0
      %6129 = vmatpush.msra.mxu0 0.0
      %6130 = vmatpush.msra.mxu0 0.0
      %6131 = vmatpush.msra.mxu0 0.0
      %6132 = vmatpush.msra.mxu0 0.0
      %6133 = vmatpush.msra.mxu0 0.0
      %6134 = vmatpush.msra.mxu0 0.0
      %6135 = vmatpush.msra.mxu0 0.0
      %6136 = vmatpush.msra.mxu0 0.0
      %6137 = vmatpush.msra.mxu0 0.0
      %6138 = vmatpush.msra.mxu0 0.0
      %6139 = vmatpush.msra.mxu0 0.0
      %6140 = vmatpush.msra.mxu0 %v6119
      %6141 = vmatpush.msra.mxu0 %v6118
      %6142 = vmatpush.msra.mxu0 %v6117
      %6143 = vmatpush.msra.mxu0 %v6116
      %6144 = vmatmul.f32.gmra.mxu0 %v6126
      %v6145 = vpop.f32.mrf.mxu0
      %v6146 = vadd.f32 %v6122, %v6145
      %6147 = vdwg.mxu0
      %v6148 = vmax.f32 %v6146, 0.0
      %v6149 = vld [vmem:[%s19] sm:$0xff]
      %v6150 = vld [vmem:[%s19 + $0x8] sm:$0xff]
      %v6151 = vld [vmem:[%s20] sm:$0x1]
      %v6153 = vperm.slane %v6151, 0
      %vm6155 = vcmask 130048
      %v6157 = vsel %vm6155, %v6148, 0
      %6159 = vmatpush.msra.mxu0 0.0
      %6160 = vmatpush.msra.mxu0 0.0
      %6161 = vmatpush.msra.mxu0 0.0
      %6162 = vmatpush.msra.mxu0 0.0
      %6163 = vmatpush.msra.mxu0 0.0
      %6164 = vmatpush.msra.mxu0 0.0
      %6165 = vmatpush.msra.mxu0 0.0
      %6166 = vmatpush.msra.mxu0 0.0
      %6167 = vmatpush.msra.mxu0 0.0
      %6168 = vmatpush.msra.mxu0 0.0
      %6169 = vmatpush.msra.mxu0 0.0
      %6170 = vmatpush.msra.mxu0 0.0
      %6171 = vmatpush.msra.mxu0 0.0
      %6172 = vmatpush.msra.mxu0 0.0
      %6173 = vmatpush.msra.mxu0 %v6150
      %6174 = vmatpush.msra.mxu0 %v6149
      %6175 = vmatmul.f32.gmra.mxu0 %v6157
      %v6176 = vpop.f32.mrf.mxu0
      %v6177 = vadd.f32 %v6153, %v6176
      %6178 = vdwg.mxu0
      %6179 = vst [vmem:[%s652] sm:$0x1] %v6177
      %p6180 = scmp.lt.s32.totalorder %s32, 1
      %s6181 = scalar_select %p6180, %s32, 1
      %s6182 = scalar_lea.vmem %s21, %s6181
      // Predicated region
      $region105: #{spatial_only_resnet18_forward.1} parent=103 // pred_check
        %p6183 = pneg %p496
      $region106: #{spatial_only_resnet18_forward.1} parent=103 // pred_check_branch
        %6185 = sbr.rel (%p6183) target = $region108
      $region107: #{spatial_only_resnet18_forward.1} parent=103 // pred_region
        _
      $region108: #{spatial_only_resnet18_forward.1} parent=103 // pred_fallthru
        _
    $region104: #{spatial_only_resnet18_forward.1} parent=5 // pred_fallthru
      _
    %p6186 = scmp.le.s32.totalorder 2, %s27
    // Predicated region
    $region109: #{spatial_only_resnet18_forward.1} parent=5 // pred_check
      %p6187 = pneg %p6186
    $region110: #{spatial_only_resnet18_forward.1} parent=5 // pred_check_branch
      %6189 = sbr.rel (%p6187) target = $region112
    $region111: #{spatial_only_resnet18_forward.1} parent=5 // pred_region
      %s6190 = ssub.s32 %s27, 2
      // Predicated region
      $region113: #{spatial_only_resnet18_forward.1} parent=111 // pred_check
        %p6191 = pneg %p502
      $region114: #{spatial_only_resnet18_forward.1} parent=111 // pred_check_branch
        %6193 = sbr.rel (%p6191) target = $region116
      $region115: #{spatial_only_resnet18_forward.1} parent=111 // pred_region
        %p6194 = scmp.lt.s32.totalorder %s33, 1
        %s6195 = scalar_select %p6194, %s33, 1
        %s6196 = scalar_lea.vmem %s21, %s6195
      $region116: #{spatial_only_resnet18_forward.1} parent=111 // pred_fallthru
        _
    $region112: #{spatial_only_resnet18_forward.1} parent=5 // pred_fallthru
      _
  $region6: #{spatial_only_resnet18_forward.1} parent=0 // loop_footer
    %s31 = sadd.s32 1, %s27
  $region7: #{spatial_only_resnet18_forward.1} parent=0 // loop_footer_branch
    %26 = sbr.rel target = $region3
  $region8: #{spatial_only_resnet18_forward.1} parent=0 // loop_exit
    _

</llo_original>
